<compile_context>
chip_gen: v7x
topology: tpu7x:2x2x1
jax: 0.10.0
libtpu: 0.0.40
codegen_flags: <defaults>
</compile_context>

<pallas_src>
import functools

import jax
import jax.numpy as jnp
from jax.experimental import pallas as pl
from jax.experimental.pallas import tpu as pltpu

BN_MOMENTUM = 1 - 0.9997   # as in the PyTorch module (unused in eval-mode fold)
BN_EPS = 1e-5


def _const_spec(block_shape, index_map):
    """BlockSpec for a grid-constant operand: single-buffered if supported."""
    try:
        return pl.BlockSpec(block_shape, index_map, pipeline_mode=pl.Buffered(1))
    except (TypeError, AttributeError):
        return pl.BlockSpec(block_shape, index_map)


def _conv_bn_relu_kernel(x_ref, w_ref, b_ref, o_ref, xp_ref, *,
                         K, stride, pad, H, W, Cin, Ho, Wo, Cout, skip):
    """One grid step == one batch element (whole image resident in VMEM).

    x_ref : (1, H, W, Cin)     bf16 NHWC input tile
    w_ref : (K*K, Cin, Cout)   bf16 BN-folded conv weight (single-buffered)
    b_ref : (1, Cout)          f32  BN-folded bias         (single-buffered)
    o_ref : (1, Ho*Wo, Cout)   output tile (true channel width, no lane padding)
    xp_ref: (H+2p, W+2p, Cin)  VMEM scratch: zero-padded input
    """
    M = Ho * Wo

    # Zero-pad the input inside VMEM (no extra HBM pass for jnp.pad).
    if pad > 0:
        xp_ref[...] = jnp.zeros_like(xp_ref)
    xp_ref[pl.ds(pad, H), pl.ds(pad, W), :] = x_ref[0]

    # K*K shifted taps: each is a tall (M, Cin) @ (Cin, Cout) MXU dot, f32 acc.
    acc = jnp.zeros((M, Cout), jnp.float32)
    for kh in range(K):
        for kw in range(K):
            if stride == 1:
                tap = xp_ref[pl.ds(kh, Ho), pl.ds(kw, Wo), :]
            else:
                tap = xp_ref[pl.ds(kh, Ho, stride), pl.ds(kw, Wo, stride), :]
            acc = acc + jnp.dot(tap.reshape(M, Cin), w_ref[kh * K + kw],
                                preferred_element_type=jnp.float32)

    # Folded BatchNorm bias + ReLU epilogue (BN scale already in the weight).
    out = jnp.maximum(acc + b_ref[...], 0.0)

    if skip:
        # identity residual (stride==1, Cin==Cout): x tile is already resident,
        # same channel width as the output -> plain VPU add, no relayout.
        out = out + x_ref[0].reshape(M, Cin).astype(jnp.float32)

    o_ref[0] = out.astype(o_ref.dtype)


def regular_conv_forward_nhwc(x_nhwc, weight_oihw, gamma, beta, running_mean,
                              running_var, *, kernel_size, stride, skip,
                              compute_dtype=jnp.bfloat16):
    """Conv2d -> BatchNorm(eval) -> ReLU (+ identity skip). NHWC in, NHWC out."""
    N, H, W, Cin = x_nhwc.shape
    Cout = weight_oihw.shape[0]
    K = kernel_size
    pad = K // 2
    Ho = (H + 2 * pad - K) // stride + 1
    Wo = (W + 2 * pad - K) // stride + 1
    M = Ho * Wo
    Hp, Wp = H + 2 * pad, W + 2 * pad
    out_dtype = x_nhwc.dtype

    use_skip = (skip == 'identity')
    if use_skip:
        assert stride == 1 and Cin == Cout, \
            "identity skip requires stride==1 and Cin==Cout"

    # Fold eval-mode BatchNorm into weight + bias:
    #   ReLU(BN(conv(x, w))) == ReLU(conv(x, w * scale) + shift)
    scale = gamma / jnp.sqrt(running_var + BN_EPS)                 # (Cout,)
    shift = (beta - running_mean * scale).astype(jnp.float32)      # (Cout,)
    w_kkio = jnp.transpose(weight_oihw, (2, 3, 1, 0)).reshape(K * K, Cin, Cout)
    w_kkio = (w_kkio * scale[None, None, :]).astype(compute_dtype)
    bias = shift.reshape(1, Cout)

    # bf16 activations on the wire; f32 accumulation inside the kernel.
    x_in = x_nhwc.astype(compute_dtype)

    kernel = functools.partial(
        _conv_bn_relu_kernel, K=K, stride=stride, pad=pad, H=H, W=W, Cin=Cin,
        Ho=Ho, Wo=Wo, Cout=Cout, skip=use_skip)

    # ---- VMEM budget: keep headroom for v7x's 64 MiB/TC ---------------------
    itm = jnp.dtype(compute_dtype).itemsize
    o_itm = jnp.dtype(out_dtype).itemsize
    x_blk = H * W * Cin * itm
    o_blk = M * Cout * o_itm
    wb_b = K * K * Cin * Cout * itm + Cout * 4
    scratch_b = Hp * Wp * Cin * itm
    interm_b = 3 * M * Cout * 4 + M * Cin * 4          # acc + epilogue temps
    est = 2 * x_blk + 2 * o_blk + wb_b + scratch_b + interm_b
    vmem_limit = int(min(max(2 * est, 8 << 20), 48 << 20))

    flops = 2 * N * M * K * K * Cin * Cout + 3 * N * M * Cout
    bytes_accessed = int(N * x_blk + wb_b + N * o_blk)

    out = pl.pallas_call(
        kernel,
        out_shape=jax.ShapeDtypeStruct((N, M, Cout), out_dtype),
        grid_spec=pltpu.PrefetchScalarGridSpec(
            num_scalar_prefetch=0,
            grid=(N,),                                  # >=2 steps -> megacore
            in_specs=[
                pl.BlockSpec((1, H, W, Cin), lambda n: (n, 0, 0, 0)),
                _const_spec((K * K, Cin, Cout), lambda n: (0, 0, 0)),
                _const_spec((1, Cout), lambda n: (0, 0)),
            ],
            out_specs=pl.BlockSpec((1, M, Cout), lambda n: (n, 0, 0)),
            scratch_shapes=[pltpu.VMEM((Hp, Wp, Cin), compute_dtype)],
        ),
        compiler_params=pltpu.CompilerParams(
            dimension_semantics=("parallel",),
            vmem_limit_bytes=vmem_limit),
        cost_estimate=pl.CostEstimate(
            flops=flops, transcendentals=0, bytes_accessed=bytes_accessed),
    )(x_in, w_kkio, bias)

    return out.reshape(N, Ho, Wo, Cout)


def regular_conv_forward(x_nchw, weight_oihw, gamma, beta, running_mean,
                         running_var, *, kernel_size, stride, skip,
                         compute_dtype=jnp.bfloat16):
    """NCHW shim matching the PyTorch interface.

    For a chain of MNASNet blocks, call regular_conv_forward_nhwc end-to-end
    and drop these NCHW<->NHWC transposes (one full HBM pass each).
    """
    x_nhwc = jnp.transpose(x_nchw, (0, 2, 3, 1))
    y = regular_conv_forward_nhwc(
        x_nhwc, weight_oihw, gamma, beta, running_mean, running_var,
        kernel_size=kernel_size, stride=stride, skip=skip,
        compute_dtype=compute_dtype)
    return jnp.transpose(y, (0, 3, 1, 2))


def _reference(x_nchw, weight_oihw, gamma, beta, running_mean, running_var,
               *, kernel_size, stride, skip):
    pad = kernel_size // 2
    conv = jax.lax.conv_general_dilated(
        x_nchw, weight_oihw, window_strides=(stride, stride),
        padding=((pad, pad), (pad, pad)),
        dimension_numbers=('NCHW', 'OIHW', 'NCHW'))
    scale = (gamma / jnp.sqrt(running_var + BN_EPS))[None, :, None, None]
    shift = (beta - running_mean * gamma / jnp.sqrt(running_var + BN_EPS)
             )[None, :, None, None]
    out = jnp.maximum(conv * scale + shift, 0.0)     # Conv -> BN -> ReLU
    if skip == 'identity':
        out = out + x_nchw
    return out


if __name__ == "__main__":
    key = jax.random.PRNGKey(0)
    k = jax.random.split(key, 12)

    # bf16 operands (per perf review) -> loosened tolerance vs f32 reference.
    ATOL = RTOL = 5e-2

    # ---- Block A: RegularConv, stride 1, identity skip (Cin == Cout) --------
    N, Cin, H, W = 2, 8, 16, 16
    Cout, K, stride, skip = 8, 3, 1, 'identity'

    x = jax.random.normal(k[0], (N, Cin, H, W), dtype=jnp.float32)
    w = jax.random.normal(k[1], (Cout, Cin, K, K), dtype=jnp.float32) * 0.1
    gamma = 1.0 + 0.1 * jax.random.normal(k[2], (Cout,), dtype=jnp.float32)
    beta = 0.1 * jax.random.normal(k[3], (Cout,), dtype=jnp.float32)
    mean = 0.1 * jax.random.normal(k[4], (Cout,), dtype=jnp.float32)
    var = jnp.abs(jax.random.normal(k[5], (Cout,), dtype=jnp.float32)) + 0.5

    out = jax.block_until_ready(regular_conv_forward(
        x, w, gamma, beta, mean, var, kernel_size=K, stride=stride, skip=skip))
    ref = _reference(x, w, gamma, beta, mean, var,
                     kernel_size=K, stride=stride, skip=skip)
    assert out.shape == ref.shape, (out.shape, ref.shape)
    assert jnp.allclose(out, ref, atol=ATOL, rtol=RTOL), (
        float(jnp.max(jnp.abs(out - ref))))

    # ---- Block B: RegularConv, stride 2, no skip (downsampling stage) -------
    Cout2, K2, stride2, skip2 = 16, 3, 2, 'no'
    w2 = jax.random.normal(k[6], (Cout2, Cin, K2, K2), dtype=jnp.float32) * 0.1
    gamma2 = 1.0 + 0.1 * jax.random.normal(k[7], (Cout2,), dtype=jnp.float32)
    beta2 = 0.1 * jax.random.normal(k[8], (Cout2,), dtype=jnp.float32)
    mean2 = 0.1 * jax.random.normal(k[9], (Cout2,), dtype=jnp.float32)
    var2 = jnp.abs(jax.random.normal(k[10], (Cout2,), dtype=jnp.float32)) + 0.5

    out2 = jax.block_until_ready(regular_conv_forward(
        x, w2, gamma2, beta2, mean2, var2,
        kernel_size=K2, stride=stride2, skip=skip2))
    ref2 = _reference(x, w2, gamma2, beta2, mean2, var2,
                      kernel_size=K2, stride=stride2, skip=skip2)
    assert out2.shape == ref2.shape, (out2.shape, ref2.shape)
    assert jnp.allclose(out2, ref2, atol=ATOL, rtol=RTOL), (
        float(jnp.max(jnp.abs(out2 - ref2))))

    print("KERNEL_OK")
</pallas_src>

<mosaic_0001>
module attributes {stable_mosaic.version = 11 : i64} {
  func.func @_conv_bn_relu_kernel(%arg0: i32, %arg1: memref<1x16x16x8xbf16, #tpu.memory_space<vmem>>, %arg2: memref<9x8x8xbf16, #tpu.memory_space<vmem>>, %arg3: memref<1x8xf32, #tpu.memory_space<vmem>>, %arg4: memref<1x256x8xf32, #tpu.memory_space<vmem>>, %arg5: memref<18x18x8xbf16, #tpu.memory_space<vmem>>) attributes {dimension_semantics = [#tpu.dimension_semantics<parallel>], iteration_bounds = array<i64: 2>, scalar_prefetch = 0 : i64, scratch_operands = 1 : i64, tpu.core_type = #tpu.core_type<tc>, window_params = [{transform_indices = @transform_0, window_bounds = array<i64: 1, 16, 16, 8>}, {pipeline_mode = #tpu.pipeline_mode<synchronous>, transform_indices = @transform_1, window_bounds = array<i64: 9, 8, 8>}, {pipeline_mode = #tpu.pipeline_mode<synchronous>, transform_indices = @transform_2, window_bounds = array<i64: 1, 8>}, {transform_indices = @transform_3, window_bounds = array<i64: 1, 256, 8>}]} {
    %cst = arith.constant 0.000000e+00 : bf16
    %0 = vector.broadcast %cst : bf16 to vector<18x18x8xbf16>
    %c0 = arith.constant 0 : index
    %c0_0 = arith.constant 0 : index
    %c0_1 = arith.constant 0 : index
    %1 = vector.load %arg5[%c0, %c0_0, %c0_1] : memref<18x18x8xbf16, #tpu.memory_space<vmem>>, vector<18x18x8xbf16>
    tpu.vector_store %arg5[%c0, %c0_0, %c0_1], %0 {strides = array<i32>} : memref<18x18x8xbf16, #tpu.memory_space<vmem>>, vector<18x18x8xbf16>,
    %c0_2 = arith.constant 0 : index
    %c0_3 = arith.constant 0 : index
    %c0_4 = arith.constant 0 : index
    %c0_5 = arith.constant 0 : index
    %2 = vector.load %arg1[%c0_2, %c0_3, %c0_4, %c0_5] : memref<1x16x16x8xbf16, #tpu.memory_space<vmem>>, vector<1x16x16x8xbf16>
    %3 = vector.shape_cast %2 : vector<1x16x16x8xbf16> to vector<16x16x8xbf16>
    %c1 = arith.constant 1 : index
    %c1_6 = arith.constant 1 : index
    %c0_7 = arith.constant 0 : index
    %4 = vector.load %arg5[%c1, %c1_6, %c0_7] : memref<18x18x8xbf16, #tpu.memory_space<vmem>>, vector<16x16x8xbf16>
    tpu.vector_store %arg5[%c1, %c1_6, %c0_7], %3 {strides = array<i32>} : memref<18x18x8xbf16, #tpu.memory_space<vmem>>, vector<16x16x8xbf16>,
    %cst_8 = arith.constant 0.000000e+00 : f32
    %5 = vector.broadcast %cst_8 : f32 to vector<256x8xf32>
    %c0_9 = arith.constant 0 : index
    %c0_10 = arith.constant 0 : index
    %c0_11 = arith.constant 0 : index
    %6 = vector.load %arg5[%c0_9, %c0_10, %c0_11] : memref<18x18x8xbf16, #tpu.memory_space<vmem>>, vector<16x16x8xbf16>
    %7 = vector.shape_cast %6 : vector<16x16x8xbf16> to vector<256x8xbf16>
    %c0_12 = arith.constant 0 : index
    %c0_13 = arith.constant 0 : index
    %c0_14 = arith.constant 0 : index
    %8 = vector.load %arg2[%c0_12, %c0_13, %c0_14] : memref<9x8x8xbf16, #tpu.memory_space<vmem>>, vector<1x8x8xbf16>
    %9 = vector.shape_cast %8 : vector<1x8x8xbf16> to vector<8x8xbf16>
    %cst_15 = arith.constant dense<0.000000e+00> : vector<256x8xf32>
    %10 = tpu.matmul %7, %9, %cst_15 {dimension_numbers = #tpu.dot_dimension_numbers<[1], [0], [0], [1], [0, 0, 1, 1], [], []>} : vector<256x8xbf16>, vector<8x8xbf16>, vector<256x8xf32> -> vector<256x8xf32>
    %11 = arith.addf %5, %10 : vector<256x8xf32>
    %c0_16 = arith.constant 0 : index
    %c1_17 = arith.constant 1 : index
    %c0_18 = arith.constant 0 : index
    %12 = vector.load %arg5[%c0_16, %c1_17, %c0_18] : memref<18x18x8xbf16, #tpu.memory_space<vmem>>, vector<16x16x8xbf16>
    %13 = vector.shape_cast %12 : vector<16x16x8xbf16> to vector<256x8xbf16>
    %c1_19 = arith.constant 1 : index
    %c0_20 = arith.constant 0 : index
    %c0_21 = arith.constant 0 : index
    %14 = vector.load %arg2[%c1_19, %c0_20, %c0_21] : memref<9x8x8xbf16, #tpu.memory_space<vmem>>, vector<1x8x8xbf16>
    %15 = vector.shape_cast %14 : vector<1x8x8xbf16> to vector<8x8xbf16>
    %cst_22 = arith.constant dense<0.000000e+00> : vector<256x8xf32>
    %16 = tpu.matmul %13, %15, %cst_22 {dimension_numbers = #tpu.dot_dimension_numbers<[1], [0], [0], [1], [0, 0, 1, 1], [], []>} : vector<256x8xbf16>, vector<8x8xbf16>, vector<256x8xf32> -> vector<256x8xf32>
    %17 = arith.addf %11, %16 : vector<256x8xf32>
    %c0_23 = arith.constant 0 : index
    %c2 = arith.constant 2 : index
    %c0_24 = arith.constant 0 : index
    %18 = vector.load %arg5[%c0_23, %c2, %c0_24] : memref<18x18x8xbf16, #tpu.memory_space<vmem>>, vector<16x16x8xbf16>
    %19 = vector.shape_cast %18 : vector<16x16x8xbf16> to vector<256x8xbf16>
    %c2_25 = arith.constant 2 : index
    %c0_26 = arith.constant 0 : index
    %c0_27 = arith.constant 0 : index
    %20 = vector.load %arg2[%c2_25, %c0_26, %c0_27] : memref<9x8x8xbf16, #tpu.memory_space<vmem>>, vector<1x8x8xbf16>
    %21 = vector.shape_cast %20 : vector<1x8x8xbf16> to vector<8x8xbf16>
    %cst_28 = arith.constant dense<0.000000e+00> : vector<256x8xf32>
    %22 = tpu.matmul %19, %21, %cst_28 {dimension_numbers = #tpu.dot_dimension_numbers<[1], [0], [0], [1], [0, 0, 1, 1], [], []>} : vector<256x8xbf16>, vector<8x8xbf16>, vector<256x8xf32> -> vector<256x8xf32>
    %23 = arith.addf %17, %22 : vector<256x8xf32>
    %c1_29 = arith.constant 1 : index
    %c0_30 = arith.constant 0 : index
    %c0_31 = arith.constant 0 : index
    %24 = vector.load %arg5[%c1_29, %c0_30, %c0_31] : memref<18x18x8xbf16, #tpu.memory_space<vmem>>, vector<16x16x8xbf16>
    %25 = vector.shape_cast %24 : vector<16x16x8xbf16> to vector<256x8xbf16>
    %c3 = arith.constant 3 : index
    %c0_32 = arith.constant 0 : index
    %c0_33 = arith.constant 0 : index
    %26 = vector.load %arg2[%c3, %c0_32, %c0_33] : memref<9x8x8xbf16, #tpu.memory_space<vmem>>, vector<1x8x8xbf16>
    %27 = vector.shape_cast %26 : vector<1x8x8xbf16> to vector<8x8xbf16>
    %cst_34 = arith.constant dense<0.000000e+00> : vector<256x8xf32>
    %28 = tpu.matmul %25, %27, %cst_34 {dimension_numbers = #tpu.dot_dimension_numbers<[1], [0], [0], [1], [0, 0, 1, 1], [], []>} : vector<256x8xbf16>, vector<8x8xbf16>, vector<256x8xf32> -> vector<256x8xf32>
    %29 = arith.addf %23, %28 : vector<256x8xf32>
    %c1_35 = arith.constant 1 : index
    %c1_36 = arith.constant 1 : index
    %c0_37 = arith.constant 0 : index
    %30 = vector.load %arg5[%c1_35, %c1_36, %c0_37] : memref<18x18x8xbf16, #tpu.memory_space<vmem>>, vector<16x16x8xbf16>
    %31 = vector.shape_cast %30 : vector<16x16x8xbf16> to vector<256x8xbf16>
    %c4 = arith.constant 4 : index
    %c0_38 = arith.constant 0 : index
    %c0_39 = arith.constant 0 : index
    %32 = vector.load %arg2[%c4, %c0_38, %c0_39] : memref<9x8x8xbf16, #tpu.memory_space<vmem>>, vector<1x8x8xbf16>
    %33 = vector.shape_cast %32 : vector<1x8x8xbf16> to vector<8x8xbf16>
    %cst_40 = arith.constant dense<0.000000e+00> : vector<256x8xf32>
    %34 = tpu.matmul %31, %33, %cst_40 {dimension_numbers = #tpu.dot_dimension_numbers<[1], [0], [0], [1], [0, 0, 1, 1], [], []>} : vector<256x8xbf16>, vector<8x8xbf16>, vector<256x8xf32> -> vector<256x8xf32>
    %35 = arith.addf %29, %34 : vector<256x8xf32>
    %c1_41 = arith.constant 1 : index
    %c2_42 = arith.constant 2 : index
    %c0_43 = arith.constant 0 : index
    %36 = vector.load %arg5[%c1_41, %c2_42, %c0_43] : memref<18x18x8xbf16, #tpu.memory_space<vmem>>, vector<16x16x8xbf16>
    %37 = vector.shape_cast %36 : vector<16x16x8xbf16> to vector<256x8xbf16>
    %c5 = arith.constant 5 : index
    %c0_44 = arith.constant 0 : index
    %c0_45 = arith.constant 0 : index
    %38 = vector.load %arg2[%c5, %c0_44, %c0_45] : memref<9x8x8xbf16, #tpu.memory_space<vmem>>, vector<1x8x8xbf16>
    %39 = vector.shape_cast %38 : vector<1x8x8xbf16> to vector<8x8xbf16>
    %cst_46 = arith.constant dense<0.000000e+00> : vector<256x8xf32>
    %40 = tpu.matmul %37, %39, %cst_46 {dimension_numbers = #tpu.dot_dimension_numbers<[1], [0], [0], [1], [0, 0, 1, 1], [], []>} : vector<256x8xbf16>, vector<8x8xbf16>, vector<256x8xf32> -> vector<256x8xf32>
    %41 = arith.addf %35, %40 : vector<256x8xf32>
    %c2_47 = arith.constant 2 : index
    %c0_48 = arith.constant 0 : index
    %c0_49 = arith.constant 0 : index
    %42 = vector.load %arg5[%c2_47, %c0_48, %c0_49] : memref<18x18x8xbf16, #tpu.memory_space<vmem>>, vector<16x16x8xbf16>
    %43 = vector.shape_cast %42 : vector<16x16x8xbf16> to vector<256x8xbf16>
    %c6 = arith.constant 6 : index
    %c0_50 = arith.constant 0 : index
    %c0_51 = arith.constant 0 : index
    %44 = vector.load %arg2[%c6, %c0_50, %c0_51] : memref<9x8x8xbf16, #tpu.memory_space<vmem>>, vector<1x8x8xbf16>
    %45 = vector.shape_cast %44 : vector<1x8x8xbf16> to vector<8x8xbf16>
    %cst_52 = arith.constant dense<0.000000e+00> : vector<256x8xf32>
    %46 = tpu.matmul %43, %45, %cst_52 {dimension_numbers = #tpu.dot_dimension_numbers<[1], [0], [0], [1], [0, 0, 1, 1], [], []>} : vector<256x8xbf16>, vector<8x8xbf16>, vector<256x8xf32> -> vector<256x8xf32>
    %47 = arith.addf %41, %46 : vector<256x8xf32>
    %c2_53 = arith.constant 2 : index
    %c1_54 = arith.constant 1 : index
    %c0_55 = arith.constant 0 : index
    %48 = vector.load %arg5[%c2_53, %c1_54, %c0_55] : memref<18x18x8xbf16, #tpu.memory_space<vmem>>, vector<16x16x8xbf16>
    %49 = vector.shape_cast %48 : vector<16x16x8xbf16> to vector<256x8xbf16>
    %c7 = arith.constant 7 : index
    %c0_56 = arith.constant 0 : index
    %c0_57 = arith.constant 0 : index
    %50 = vector.load %arg2[%c7, %c0_56, %c0_57] : memref<9x8x8xbf16, #tpu.memory_space<vmem>>, vector<1x8x8xbf16>
    %51 = vector.shape_cast %50 : vector<1x8x8xbf16> to vector<8x8xbf16>
    %cst_58 = arith.constant dense<0.000000e+00> : vector<256x8xf32>
    %52 = tpu.matmul %49, %51, %cst_58 {dimension_numbers = #tpu.dot_dimension_numbers<[1], [0], [0], [1], [0, 0, 1, 1], [], []>} : vector<256x8xbf16>, vector<8x8xbf16>, vector<256x8xf32> -> vector<256x8xf32>
    %53 = arith.addf %47, %52 : vector<256x8xf32>
    %c2_59 = arith.constant 2 : index
    %c2_60 = arith.constant 2 : index
    %c0_61 = arith.constant 0 : index
    %54 = vector.load %arg5[%c2_59, %c2_60, %c0_61] : memref<18x18x8xbf16, #tpu.memory_space<vmem>>, vector<16x16x8xbf16>
    %55 = vector.shape_cast %54 : vector<16x16x8xbf16> to vector<256x8xbf16>
    %c8 = arith.constant 8 : index
    %c0_62 = arith.constant 0 : index
    %c0_63 = arith.constant 0 : index
    %56 = vector.load %arg2[%c8, %c0_62, %c0_63] : memref<9x8x8xbf16, #tpu.memory_space<vmem>>, vector<1x8x8xbf16>
    %57 = vector.shape_cast %56 : vector<1x8x8xbf16> to vector<8x8xbf16>
    %cst_64 = arith.constant dense<0.000000e+00> : vector<256x8xf32>
    %58 = tpu.matmul %55, %57, %cst_64 {dimension_numbers = #tpu.dot_dimension_numbers<[1], [0], [0], [1], [0, 0, 1, 1], [], []>} : vector<256x8xbf16>, vector<8x8xbf16>, vector<256x8xf32> -> vector<256x8xf32>
    %59 = arith.addf %53, %58 : vector<256x8xf32>
    %c0_65 = arith.constant 0 : index
    %c0_66 = arith.constant 0 : index
    %60 = vector.load %arg3[%c0_65, %c0_66] : memref<1x8xf32, #tpu.memory_space<vmem>>, vector<1x8xf32>
    %61 = vector.broadcast %60 : vector<1x8xf32> to vector<256x8xf32>
    %62 = arith.addf %59, %61 : vector<256x8xf32>
    %cst_67 = arith.constant 0.000000e+00 : f32
    %63 = vector.broadcast %cst_67 : f32 to vector<256x8xf32>
    %64 = arith.maximumf %62, %63 : vector<256x8xf32>
    %c0_68 = arith.constant 0 : index
    %c0_69 = arith.constant 0 : index
    %c0_70 = arith.constant 0 : index
    %c0_71 = arith.constant 0 : index
    %65 = vector.load %arg1[%c0_68, %c0_69, %c0_70, %c0_71] : memref<1x16x16x8xbf16, #tpu.memory_space<vmem>>, vector<1x16x16x8xbf16>
    %66 = vector.shape_cast %65 : vector<1x16x16x8xbf16> to vector<16x16x8xbf16>
    %67 = vector.shape_cast %66 : vector<16x16x8xbf16> to vector<256x8xbf16>
    %68 = arith.extf %67 : vector<256x8xbf16> to vector<256x8xf32>
    %69 = arith.addf %64, %68 : vector<256x8xf32>
    %c0_72 = arith.constant 0 : index
    %c0_73 = arith.constant 0 : index
    %c0_74 = arith.constant 0 : index
    %70 = vector.load %arg4[%c0_72, %c0_73, %c0_74] : memref<1x256x8xf32, #tpu.memory_space<vmem>>, vector<1x256x8xf32>
    %71 = vector.shape_cast %70 : vector<1x256x8xf32> to vector<256x8xf32>
    %72 = vector.shape_cast %69 : vector<256x8xf32> to vector<1x256x8xf32>
    tpu.vector_store %arg4[%c0_72, %c0_73, %c0_74], %72 {strides = array<i32>} : memref<1x256x8xf32, #tpu.memory_space<vmem>>, vector<1x256x8xf32>,
    return
  }
  func.func @transform_0(%arg0: i32) -> (i32, i32, i32, i32) {
    %c0_i32 = arith.constant 0 : i32
    %c0_i32_0 = arith.constant 0 : i32
    %c0_i32_1 = arith.constant 0 : i32
    %c0_i32_2 = arith.constant 0 : i32
    return %arg0, %c0_i32, %c0_i32_0, %c0_i32_1 : i32, i32, i32, i32
  }
  func.func @transform_1(%arg0: i32) -> (i32, i32, i32) {
    %c0_i32 = arith.constant 0 : i32
    %c0_i32_0 = arith.constant 0 : i32
    %c0_i32_1 = arith.constant 0 : i32
    %c0_i32_2 = arith.constant 0 : i32
    return %c0_i32, %c0_i32_0, %c0_i32_1 : i32, i32, i32
  }
  func.func @transform_2(%arg0: i32) -> (i32, i32) {
    %c0_i32 = arith.constant 0 : i32
    %c0_i32_0 = arith.constant 0 : i32
    %c0_i32_1 = arith.constant 0 : i32
    return %c0_i32, %c0_i32_0 : i32, i32
  }
  func.func @transform_3(%arg0: i32) -> (i32, i32, i32) {
    %c0_i32 = arith.constant 0 : i32
    %c0_i32_0 = arith.constant 0 : i32
    %c0_i32_1 = arith.constant 0 : i32
    return %arg0, %c0_i32, %c0_i32_0 : i32, i32, i32
  }
}

</mosaic_0001>

<llo_original>
// kernel: tpu_custom_call.1
$region0: #{tpu_custom_call.1}
  #allocation0 [shape = 'u32[]', space=smem, size = 0x4, offset = 0x4, fixed_abs, tag = 'smem constant byte address 0x4 - core index']
  #allocation1 [shape = 'u32[144,128]{1,0:T(1,128)}', space=vmem, size = 0x12000, scoped, tag = 'internal scratch']
  #allocation2 [shape = 'bf16[18,18,8]{2,1,0:T(8,128)(2,1)}', space=vmem, size = 0x1b000, scoped, tag = 'scratch operand']
  %s0 = inlined_call_operand.vmem [shape: bf16[2,16,16,8], index: 0, kind: input, shape index: {}]
  %s1 = inlined_call_operand.vmem [shape: bf16[9,8,8], index: 1, kind: input, shape index: {}]
  %s2 = inlined_call_operand.vmem [shape: f32[1,8], index: 2, kind: input, shape index: {}]
  %s3 = inlined_call_operand.vmem [shape: f32[2,256,8], index: 3, kind: output, shape index: {}]
  %s4 = sld [smem:[#allocation0]]
  $region45: #{tpu_custom_call.1} parent=0
    _
  %s6 = ssub.s32 1, %s4
  %s7 = scalar_select 0, %s6, %s4
  loop: start=0, step=1, limit=4
  $region2: #{tpu_custom_call.1} parent=0 // loop_pre_header
    _
  $region3: #{tpu_custom_call.1} parent=0 // loop_header
    %s9 = sphi 0, %s13
    %p10 = scmp.ge.s32.totalorder %s9, 4
    %s19 = sphi 0, %s21
    %s22 = sphi 0, %s19
    %s23 = sphi 0, %s22
    %s39 = sphi 0, %s23
    %s43 = sphi 0, %s43
    %s45 = sphi 0, %s43
    %s46 = sphi 0, %s45
    %s60 = sphi 0, %s46
    %s64 = sphi 0, %s64
    %s66 = sphi 0, %s64
    %s67 = sphi 0, %s66
    %s81 = sphi 0, %s67
    %s87 = sphi 0, %s89
    %s90 = sphi 0, %s87
    %s91 = sphi 0, %s90
    %s107 = sphi 0, %s91
  $region4: #{tpu_custom_call.1} parent=0 // loop_header_branch
    %12 = sbr.rel (%p10) target = $region8
  $region5: #{tpu_custom_call.1} parent=0 // loop_body
    %s14 = ssub.s32 %s9, 1
    %s15 = ssub.s32 %s9, 2
    %s16 = sadd.s32 %s9, 1
    %s17 = ssub.s32 %s9, %s16
    %p18 = scmp.eq.s32.totalorder %s17, 0
    %s20 = sadd.s32 %s19, 1
    %s21 = scalar_select %p18, %s19, %s20
    %p24 = pneg %p18
    %p25 = scmp.eq.s32.totalorder %s9, 1
    %p26 = por %p24, %p25
    %p27 = scmp.ne.s32.totalorder %s19, %s22
    %p28 = scmp.eq.s32.totalorder %s9, 0
    %p29 = por %p27, %p28
    %p30 = scmp.ne.s32.totalorder %s19, %s22
    %p31 = scmp.eq.s32.totalorder %s14, 1
    %p32 = por %p30, %p31
    %p33 = scmp.ne.s32.totalorder %s22, %s23
    %p34 = scmp.eq.s32.totalorder %s14, 0
    %p35 = por %p33, %p34
    %p36 = scmp.ne.s32.totalorder %s22, %s23
    %p37 = scmp.eq.s32.totalorder %s15, 1
    %p38 = por %p36, %p37
    %p40 = scmp.ne.s32.totalorder %s23, %s39
    %p41 = scmp.eq.s32.totalorder %s15, 0
    %p42 = por %p40, %p41
    %s44 = sadd.s32 %s43, 1
    %p47 = scmp.eq.s32.totalorder %s9, 1
    %p48 = scmp.ne.s32.totalorder %s43, %s45
    %p49 = scmp.eq.s32.totalorder %s9, 0
    %p50 = por %p48, %p49
    %p51 = scmp.ne.s32.totalorder %s43, %s45
    %p52 = scmp.eq.s32.totalorder %s14, 1
    %p53 = por %p51, %p52
    %p54 = scmp.ne.s32.totalorder %s45, %s46
    %p55 = scmp.eq.s32.totalorder %s14, 0
    %p56 = por %p54, %p55
    %p57 = scmp.ne.s32.totalorder %s45, %s46
    %p58 = scmp.eq.s32.totalorder %s15, 1
    %p59 = por %p57, %p58
    %p61 = scmp.ne.s32.totalorder %s46, %s60
    %p62 = scmp.eq.s32.totalorder %s15, 0
    %p63 = por %p61, %p62
    %s65 = sadd.s32 %s64, 1
    %p68 = scmp.eq.s32.totalorder %s9, 1
    %p69 = scmp.ne.s32.totalorder %s64, %s66
    %p70 = scmp.eq.s32.totalorder %s9, 0
    %p71 = por %p69, %p70
    %p72 = scmp.ne.s32.totalorder %s64, %s66
    %p73 = scmp.eq.s32.totalorder %s14, 1
    %p74 = por %p72, %p73
    %p75 = scmp.ne.s32.totalorder %s66, %s67
    %p76 = scmp.eq.s32.totalorder %s14, 0
    %p77 = por %p75, %p76
    %p78 = scmp.ne.s32.totalorder %s66, %s67
    %p79 = scmp.eq.s32.totalorder %s15, 1
    %p80 = por %p78, %p79
    %p82 = scmp.ne.s32.totalorder %s67, %s81
    %p83 = scmp.eq.s32.totalorder %s15, 0
    %p84 = por %p82, %p83
    %s85 = ssub.s32 %s9, %s16
    %p86 = scmp.eq.s32.totalorder %s85, 0
    %s88 = sadd.s32 %s87, 1
    %s89 = scalar_select %p86, %s87, %s88
    %p92 = pneg %p86
    %p93 = scmp.eq.s32.totalorder %s9, 1
    %p94 = por %p92, %p93
    %p95 = scmp.ne.s32.totalorder %s87, %s90
    %p96 = scmp.eq.s32.totalorder %s9, 0
    %p97 = por %p95, %p96
    %p98 = scmp.ne.s32.totalorder %s87, %s90
    %p99 = scmp.eq.s32.totalorder %s14, 1
    %p100 = por %p98, %p99
    %p101 = scmp.ne.s32.totalorder %s90, %s91
    %p102 = scmp.eq.s32.totalorder %s14, 0
    %p103 = por %p101, %p102
    %p104 = scmp.ne.s32.totalorder %s90, %s91
    %p105 = scmp.eq.s32.totalorder %s15, 1
    %p106 = por %p104, %p105
    %p108 = scmp.ne.s32.totalorder %s91, %s107
    %p109 = scmp.eq.s32.totalorder %s15, 0
    %p110 = por %p108, %p109
    %p111 = scmp.le.s32.totalorder 1, %s9
    %p112 = scmp.lt.s32.totalorder %s9, 3
    %p113 = pnand %p111, %p112
    %p114 = pneg %p113
    // Predicated region
    $region9: #{tpu_custom_call.1} parent=5 // pred_check
      _
    $region10: #{tpu_custom_call.1} parent=5 // pred_check_branch
      %116 = sbr.rel (%p113) target = $region12
    $region11: #{tpu_custom_call.1} parent=5 // pred_region
      %s117 = ssub.s32 %s9, 1
      // Predicated region
      $region13: #{tpu_custom_call.1} parent=11 // pred_check
        %p118 = pneg %p56
      $region14: #{tpu_custom_call.1} parent=11 // pred_check_branch
        %120 = sbr.rel (%p118) target = $region16
      $region15: #{tpu_custom_call.1} parent=11 // pred_region
        _
      $region16: #{tpu_custom_call.1} parent=11 // pred_fallthru
        _
      // Predicated region
      $region17: #{tpu_custom_call.1} parent=11 // pred_check
        %p121 = pneg %p77
      $region18: #{tpu_custom_call.1} parent=11 // pred_check_branch
        %123 = sbr.rel (%p121) target = $region20
      $region19: #{tpu_custom_call.1} parent=11 // pred_region
        _
      $region20: #{tpu_custom_call.1} parent=11 // pred_fallthru
        _
    $region12: #{tpu_custom_call.1} parent=5 // pred_fallthru
      _
    %p124 = scmp.lt.s32.totalorder %s9, 2
    // Predicated region
    $region21: #{tpu_custom_call.1} parent=5 // pred_check
      %p125 = pneg %p124
    $region22: #{tpu_custom_call.1} parent=5 // pred_check_branch
      %127 = sbr.rel (%p125) target = $region24
    $region23: #{tpu_custom_call.1} parent=5 // pred_region
      // Predicated region
      $region25: #{tpu_custom_call.1} parent=23 // pred_check
        %p128 = pneg %p29
      $region26: #{tpu_custom_call.1} parent=23 // pred_check_branch
        %130 = sbr.rel (%p128) target = $region28
      $region27: #{tpu_custom_call.1} parent=23 // pred_region
        %p131 = scmp.lt.s32.totalorder %s9, 1
        %s132 = scalar_select %p131, %s9, 1
        %s133 = smul.addr %s132, 32
        %s134 = smul.addr %s133, 4
        %s135 = scalar_lea.vmem %s0, %s134
      $region28: #{tpu_custom_call.1} parent=23 // pred_fallthru
        _
    $region24: #{tpu_custom_call.1} parent=5 // pred_fallthru
      _
    %p136 = scmp.le.s32.totalorder 1, %s9
    %p137 = scmp.lt.s32.totalorder %s9, 3
    %p138 = pnand %p136, %p137
    %p139 = pneg %p138
    // Predicated region
    $region29: #{tpu_custom_call.1} parent=5 // pred_check
      _
    $region30: #{tpu_custom_call.1} parent=5 // pred_check_branch
      %141 = sbr.rel (%p138) target = $region32
    $region31: #{tpu_custom_call.1} parent=5 // pred_region
      %s142 = ssub.s32 %s9, 1
      %p143 = scmp.lt.s32.totalorder %s14, 1
      %s144 = scalar_select %p143, %s14, 1
      %s145 = smul.addr %s144, 32
      %s146 = smul.addr %s145, 4
      %s147 = scalar_lea.vmem %s0, %s146
      %p148 = pneg %p35
      %p149 = pneg %p32
      %p150 = pneg %p56
      %p151 = pneg %p53
      %p152 = pneg %p77
      %p153 = pneg %p74
      %p154 = pneg %p103
      %p155 = pneg %p100
      %p156 = scmp.lt.s32.totalorder %s14, 1
      %s157 = scalar_select %p156, %s14, 1
      %s158 = smul.addr %s157, 32
      %s159 = smul.addr %s158, 8
      %s160 = scalar_lea.vmem %s3, %s159
      %p161 = scmp.lt.s32.totalorder %s14, 1
      %s162 = scalar_select %p161, %s14, 1
      %s163 = smul.addr %s162, 32
      %s164 = smul.addr %s163, 4
      %s165 = scalar_lea.vmem %s0, %s164
      %p166 = scmp.lt.s32.totalorder %s14, 1
      %s167 = scalar_select %p166, %s14, 1
      %s168 = smul.addr %s167, 32
      %s169 = smul.addr %s168, 8
      %s170 = scalar_lea.vmem %s3, %s169
      %vm172 = vcmask 60416
      %173 = vst.msk [vmem:[#allocation2] sm:$0xf] %vm172, 0
      %174 = vst.msk [vmem:[#allocation2 + $0x4] sm:$0xf] %vm172, 0
      %vm175 = vcmask 57344
      %176 = vst.msk [vmem:[#allocation2 + $0x8] sm:$0x1] %vm175, 0
      %177 = vst.msk [vmem:[#allocation2 + $0xc] sm:$0xf] %vm172, 0
      %178 = vst.msk [vmem:[#allocation2 + $0x10] sm:$0xf] %vm172, 0
      %179 = vst.msk [vmem:[#allocation2 + $0x14] sm:$0x1] %vm175, 0
      %180 = vst.msk [vmem:[#allocation2 + $0x18] sm:$0xf] %vm172, 0
      %181 = vst.msk [vmem:[#allocation2 + $0x1c] sm:$0xf] %vm172, 0
      %182 = vst.msk [vmem:[#allocation2 + $0x20] sm:$0x1] %vm175, 0
      %183 = vst.msk [vmem:[#allocation2 + $0x24] sm:$0xf] %vm172, 0
      %184 = vst.msk [vmem:[#allocation2 + $0x28] sm:$0xf] %vm172, 0
      %185 = vst.msk [vmem:[#allocation2 + $0x2c] sm:$0x1] %vm175, 0
      %186 = vst.msk [vmem:[#allocation2 + $0x30] sm:$0xf] %vm172, 0
      %187 = vst.msk [vmem:[#allocation2 + $0x34] sm:$0xf] %vm172, 0
      %188 = vst.msk [vmem:[#allocation2 + $0x38] sm:$0x1] %vm175, 0
      %189 = vst.msk [vmem:[#allocation2 + $0x3c] sm:$0xf] %vm172, 0
      %190 = vst.msk [vmem:[#allocation2 + $0x40] sm:$0xf] %vm172, 0
      %191 = vst.msk [vmem:[#allocation2 + $0x44] sm:$0x1] %vm175, 0
      %192 = vst.msk [vmem:[#allocation2 + $0x48] sm:$0xf] %vm172, 0
      %193 = vst.msk [vmem:[#allocation2 + $0x4c] sm:$0xf] %vm172, 0
      %194 = vst.msk [vmem:[#allocation2 + $0x50] sm:$0x1] %vm175, 0
      %195 = vst.msk [vmem:[#allocation2 + $0x54] sm:$0xf] %vm172, 0
      %196 = vst.msk [vmem:[#allocation2 + $0x58] sm:$0xf] %vm172, 0
      %197 = vst.msk [vmem:[#allocation2 + $0x5c] sm:$0x1] %vm175, 0
      %198 = vst.msk [vmem:[#allocation2 + $0x60] sm:$0xf] %vm172, 0
      %199 = vst.msk [vmem:[#allocation2 + $0x64] sm:$0xf] %vm172, 0
      %200 = vst.msk [vmem:[#allocation2 + $0x68] sm:$0x1] %vm175, 0
      %201 = vst.msk [vmem:[#allocation2 + $0x6c] sm:$0xf] %vm172, 0
      %202 = vst.msk [vmem:[#allocation2 + $0x70] sm:$0xf] %vm172, 0
      %203 = vst.msk [vmem:[#allocation2 + $0x74] sm:$0x1] %vm175, 0
      %204 = vst.msk [vmem:[#allocation2 + $0x78] sm:$0xf] %vm172, 0
      %205 = vst.msk [vmem:[#allocation2 + $0x7c] sm:$0xf] %vm172, 0
      %206 = vst.msk [vmem:[#allocation2 + $0x80] sm:$0x1] %vm175, 0
      %207 = vst.msk [vmem:[#allocation2 + $0x84] sm:$0xf] %vm172, 0
      %208 = vst.msk [vmem:[#allocation2 + $0x88] sm:$0xf] %vm172, 0
      %209 = vst.msk [vmem:[#allocation2 + $0x8c] sm:$0x1] %vm175, 0
      %210 = vst.msk [vmem:[#allocation2 + $0x90] sm:$0xf] %vm172, 0
      %211 = vst.msk [vmem:[#allocation2 + $0x94] sm:$0xf] %vm172, 0
      %212 = vst.msk [vmem:[#allocation2 + $0x98] sm:$0x1] %vm175, 0
      %213 = vst.msk [vmem:[#allocation2 + $0x9c] sm:$0xf] %vm172, 0
      %214 = vst.msk [vmem:[#allocation2 + $0xa0] sm:$0xf] %vm172, 0
      %215 = vst.msk [vmem:[#allocation2 + $0xa4] sm:$0x1] %vm175, 0
      %216 = vst.msk [vmem:[#allocation2 + $0xa8] sm:$0xf] %vm172, 0
      %217 = vst.msk [vmem:[#allocation2 + $0xac] sm:$0xf] %vm172, 0
      %218 = vst.msk [vmem:[#allocation2 + $0xb0] sm:$0x1] %vm175, 0
      %219 = vst.msk [vmem:[#allocation2 + $0xb4] sm:$0xf] %vm172, 0
      %220 = vst.msk [vmem:[#allocation2 + $0xb8] sm:$0xf] %vm172, 0
      %221 = vst.msk [vmem:[#allocation2 + $0xbc] sm:$0x1] %vm175, 0
      %222 = vst.msk [vmem:[#allocation2 + $0xc0] sm:$0xf] %vm172, 0
      %223 = vst.msk [vmem:[#allocation2 + $0xc4] sm:$0xf] %vm172, 0
      %224 = vst.msk [vmem:[#allocation2 + $0xc8] sm:$0x1] %vm175, 0
      %225 = vst.msk [vmem:[#allocation2 + $0xcc] sm:$0xf] %vm172, 0
      %226 = vst.msk [vmem:[#allocation2 + $0xd0] sm:$0xf] %vm172, 0
      %227 = vst.msk [vmem:[#allocation2 + $0xd4] sm:$0x1] %vm175, 0
      %v228 = vld [vmem:[%s165] sm:$0xf]
      %v229 = vld [vmem:[%s165 + $0x4] sm:$0xf]
      %v230 = vld [vmem:[%s165 + $0x8] sm:$0xf]
      %v231 = vld [vmem:[%s165 + $0xc] sm:$0xf]
      %v232 = vld [vmem:[%s165 + $0x10] sm:$0xf]
      %v233 = vld [vmem:[%s165 + $0x14] sm:$0xf]
      %v234 = vld [vmem:[%s165 + $0x18] sm:$0xf]
      %v235 = vld [vmem:[%s165 + $0x1c] sm:$0xf]
      %v236 = vld [vmem:[%s165 + $0x20] sm:$0xf]
      %v237 = vld [vmem:[%s165 + $0x24] sm:$0xf]
      %v238 = vld [vmem:[%s165 + $0x28] sm:$0xf]
      %v239 = vld [vmem:[%s165 + $0x2c] sm:$0xf]
      %v240 = vld [vmem:[%s165 + $0x30] sm:$0xf]
      %v241 = vld [vmem:[%s165 + $0x34] sm:$0xf]
      %v242 = vld [vmem:[%s165 + $0x38] sm:$0xf]
      %v243 = vld [vmem:[%s165 + $0x3c] sm:$0xf]
      %v244 = vld [vmem:[%s165 + $0x40] sm:$0xf]
      %v245 = vld [vmem:[%s165 + $0x44] sm:$0xf]
      %v246 = vld [vmem:[%s165 + $0x48] sm:$0xf]
      %v247 = vld [vmem:[%s165 + $0x4c] sm:$0xf]
      %v248 = vld [vmem:[%s165 + $0x50] sm:$0xf]
      %v249 = vld [vmem:[%s165 + $0x54] sm:$0xf]
      %v250 = vld [vmem:[%s165 + $0x58] sm:$0xf]
      %v251 = vld [vmem:[%s165 + $0x5c] sm:$0xf]
      %v252 = vld [vmem:[%s165 + $0x60] sm:$0xf]
      %v253 = vld [vmem:[%s165 + $0x64] sm:$0xf]
      %v254 = vld [vmem:[%s165 + $0x68] sm:$0xf]
      %v255 = vld [vmem:[%s165 + $0x6c] sm:$0xf]
      %v256 = vld [vmem:[%s165 + $0x70] sm:$0xf]
      %v257 = vld [vmem:[%s165 + $0x74] sm:$0xf]
      %v258 = vld [vmem:[%s165 + $0x78] sm:$0xf]
      %v259 = vld [vmem:[%s165 + $0x7c] sm:$0xf]
      %vm260 = vsmask.f32 256
      %vm261 = vsmask.f32 4368
      %vm262 = vmor %vm260, %vm261
      %v264 = vshrl.u32 %v228, 16
      %v266 = vrot.slane %v264, 7
      %v267 = vshll.u32 %v228, 16
      %v269 = vor.u32 %v266, %v267
      %v270 = vrot.slane %v266, 4
      %v272 = vshrl.u32 %v229, 16
      %v274 = vrot.slane %v272, 7
      %v275 = vshll.u32 %v229, 16
      %v277 = vor.u32 %v274, %v275
      %v278 = vsel %vm262, %v270, %v277
      %v279 = vrot.slane %v274, 4
      %v281 = vshrl.u32 %v230, 16
      %v283 = vrot.slane %v281, 7
      %v284 = vshll.u32 %v230, 16
      %v286 = vor.u32 %v283, %v284
      %v287 = vrot.slane %v283, 4
      %v289 = vshrl.u32 %v231, 16
      %v291 = vrot.slane %v289, 7
      %v292 = vshll.u32 %v231, 16
      %v294 = vor.u32 %v291, %v292
      %v295 = vsel %vm262, %v287, %v294
      %v296 = vrot.slane %v291, 4
      %v298 = vshrl.u32 %v232, 16
      %v300 = vrot.slane %v298, 7
      %v301 = vshll.u32 %v232, 16
      %v303 = vor.u32 %v300, %v301
      %v304 = vrot.slane %v300, 4
      %v306 = vshrl.u32 %v233, 16
      %v308 = vrot.slane %v306, 7
      %v309 = vshll.u32 %v233, 16
      %v311 = vor.u32 %v308, %v309
      %v312 = vsel %vm262, %v304, %v311
      %v313 = vrot.slane %v308, 4
      %v315 = vshrl.u32 %v234, 16
      %v317 = vrot.slane %v315, 7
      %v318 = vshll.u32 %v234, 16
      %v320 = vor.u32 %v317, %v318
      %v321 = vrot.slane %v317, 4
      %v323 = vshrl.u32 %v235, 16
      %v325 = vrot.slane %v323, 7
      %v326 = vshll.u32 %v235, 16
      %v328 = vor.u32 %v325, %v326
      %v329 = vsel %vm262, %v321, %v328
      %v330 = vrot.slane %v325, 4
      %v332 = vshrl.u32 %v236, 16
      %v334 = vrot.slane %v332, 7
      %v335 = vshll.u32 %v236, 16
      %v337 = vor.u32 %v334, %v335
      %v338 = vrot.slane %v334, 4
      %v340 = vshrl.u32 %v237, 16
      %v342 = vrot.slane %v340, 7
      %v343 = vshll.u32 %v237, 16
      %v345 = vor.u32 %v342, %v343
      %v346 = vsel %vm262, %v338, %v345
      %v347 = vrot.slane %v342, 4
      %v349 = vshrl.u32 %v238, 16
      %v351 = vrot.slane %v349, 7
      %v352 = vshll.u32 %v238, 16
      %v354 = vor.u32 %v351, %v352
      %v355 = vrot.slane %v351, 4
      %v357 = vshrl.u32 %v239, 16
      %v359 = vrot.slane %v357, 7
      %v360 = vshll.u32 %v239, 16
      %v362 = vor.u32 %v359, %v360
      %v363 = vsel %vm262, %v355, %v362
      %v364 = vrot.slane %v359, 4
      %v366 = vshrl.u32 %v240, 16
      %v368 = vrot.slane %v366, 7
      %v369 = vshll.u32 %v240, 16
      %v371 = vor.u32 %v368, %v369
      %v372 = vrot.slane %v368, 4
      %v374 = vshrl.u32 %v241, 16
      %v376 = vrot.slane %v374, 7
      %v377 = vshll.u32 %v241, 16
      %v379 = vor.u32 %v376, %v377
      %v380 = vsel %vm262, %v372, %v379
      %v381 = vrot.slane %v376, 4
      %v383 = vshrl.u32 %v242, 16
      %v385 = vrot.slane %v383, 7
      %v386 = vshll.u32 %v242, 16
      %v388 = vor.u32 %v385, %v386
      %v389 = vrot.slane %v385, 4
      %v391 = vshrl.u32 %v243, 16
      %v393 = vrot.slane %v391, 7
      %v394 = vshll.u32 %v243, 16
      %v396 = vor.u32 %v393, %v394
      %v397 = vsel %vm262, %v389, %v396
      %v398 = vrot.slane %v393, 4
      %v400 = vshrl.u32 %v244, 16
      %v402 = vrot.slane %v400, 7
      %v403 = vshll.u32 %v244, 16
      %v405 = vor.u32 %v402, %v403
      %v406 = vrot.slane %v402, 4
      %v408 = vshrl.u32 %v245, 16
      %v410 = vrot.slane %v408, 7
      %v411 = vshll.u32 %v245, 16
      %v413 = vor.u32 %v410, %v411
      %v414 = vsel %vm262, %v406, %v413
      %v415 = vrot.slane %v410, 4
      %v417 = vshrl.u32 %v246, 16
      %v419 = vrot.slane %v417, 7
      %v420 = vshll.u32 %v246, 16
      %v422 = vor.u32 %v419, %v420
      %v423 = vrot.slane %v419, 4
      %v425 = vshrl.u32 %v247, 16
      %v427 = vrot.slane %v425, 7
      %v428 = vshll.u32 %v247, 16
      %v430 = vor.u32 %v427, %v428
      %v431 = vsel %vm262, %v423, %v430
      %v432 = vrot.slane %v427, 4
      %v434 = vshrl.u32 %v248, 16
      %v436 = vrot.slane %v434, 7
      %v437 = vshll.u32 %v248, 16
      %v439 = vor.u32 %v436, %v437
      %v440 = vrot.slane %v436, 4
      %v442 = vshrl.u32 %v249, 16
      %v444 = vrot.slane %v442, 7
      %v445 = vshll.u32 %v249, 16
      %v447 = vor.u32 %v444, %v445
      %v448 = vsel %vm262, %v440, %v447
      %v449 = vrot.slane %v444, 4
      %v451 = vshrl.u32 %v250, 16
      %v453 = vrot.slane %v451, 7
      %v454 = vshll.u32 %v250, 16
      %v456 = vor.u32 %v453, %v454
      %v457 = vrot.slane %v453, 4
      %v459 = vshrl.u32 %v251, 16
      %v461 = vrot.slane %v459, 7
      %v462 = vshll.u32 %v251, 16
      %v464 = vor.u32 %v461, %v462
      %v465 = vsel %vm262, %v457, %v464
      %v466 = vrot.slane %v461, 4
      %v468 = vshrl.u32 %v252, 16
      %v470 = vrot.slane %v468, 7
      %v471 = vshll.u32 %v252, 16
      %v473 = vor.u32 %v470, %v471
      %v474 = vrot.slane %v470, 4
      %v476 = vshrl.u32 %v253, 16
      %v478 = vrot.slane %v476, 7
      %v479 = vshll.u32 %v253, 16
      %v481 = vor.u32 %v478, %v479
      %v482 = vsel %vm262, %v474, %v481
      %v483 = vrot.slane %v478, 4
      %v485 = vshrl.u32 %v254, 16
      %v487 = vrot.slane %v485, 7
      %v488 = vshll.u32 %v254, 16
      %v490 = vor.u32 %v487, %v488
      %v491 = vrot.slane %v487, 4
      %v493 = vshrl.u32 %v255, 16
      %v495 = vrot.slane %v493, 7
      %v496 = vshll.u32 %v255, 16
      %v498 = vor.u32 %v495, %v496
      %v499 = vsel %vm262, %v491, %v498
      %v500 = vrot.slane %v495, 4
      %v502 = vshrl.u32 %v256, 16
      %v504 = vrot.slane %v502, 7
      %v505 = vshll.u32 %v256, 16
      %v507 = vor.u32 %v504, %v505
      %v508 = vrot.slane %v504, 4
      %v510 = vshrl.u32 %v257, 16
      %v512 = vrot.slane %v510, 7
      %v513 = vshll.u32 %v257, 16
      %v515 = vor.u32 %v512, %v513
      %v516 = vsel %vm262, %v508, %v515
      %v517 = vrot.slane %v512, 4
      %v519 = vshrl.u32 %v258, 16
      %v521 = vrot.slane %v519, 7
      %v522 = vshll.u32 %v258, 16
      %v524 = vor.u32 %v521, %v522
      %v525 = vrot.slane %v521, 4
      %v527 = vshrl.u32 %v259, 16
      %v529 = vrot.slane %v527, 7
      %v530 = vshll.u32 %v259, 16
      %v532 = vor.u32 %v529, %v530
      %v533 = vsel %vm262, %v525, %v532
      %v534 = vrot.slane %v529, 4
      %s583 = scalar_lea.vmem [#allocation2], 12
      %vm584 = vcmask 60416
      %vm585 = vsmask.f32 7938
      %vm586 = vmand %vm584, %vm585
      %v587 = vld [vmem:[%s583] sm:$0xf]
      %v588 = vsel %vm586, %v269, %v587
      %589 = vst [vmem:[%s583] sm:$0xf] %v588
      %590 = vst.msk [vmem:[%s583 + $0x4] sm:$0xf] %vm172, %v278
      %vm591 = vcmask 57344
      %vm592 = vmand %vm591, %vm260
      %v593 = vld [vmem:[%s583 + $0x8] sm:$0x1]
      %v594 = vsel %vm592, %v279, %v593
      %595 = vst [vmem:[%s583 + $0x8] sm:$0x1] %v594
      %v596 = vld [vmem:[%s583 + $0xc] sm:$0xf]
      %v597 = vsel %vm586, %v286, %v596
      %598 = vst [vmem:[%s583 + $0xc] sm:$0xf] %v597
      %599 = vst.msk [vmem:[%s583 + $0x10] sm:$0xf] %vm172, %v295
      %v600 = vld [vmem:[%s583 + $0x14] sm:$0x1]
      %v601 = vsel %vm592, %v296, %v600
      %602 = vst [vmem:[%s583 + $0x14] sm:$0x1] %v601
      %v603 = vld [vmem:[%s583 + $0x18] sm:$0xf]
      %v604 = vsel %vm586, %v303, %v603
      %605 = vst [vmem:[%s583 + $0x18] sm:$0xf] %v604
      %606 = vst.msk [vmem:[%s583 + $0x1c] sm:$0xf] %vm172, %v312
      %v607 = vld [vmem:[%s583 + $0x20] sm:$0x1]
      %v608 = vsel %vm592, %v313, %v607
      %609 = vst [vmem:[%s583 + $0x20] sm:$0x1] %v608
      %v610 = vld [vmem:[%s583 + $0x24] sm:$0xf]
      %v611 = vsel %vm586, %v320, %v610
      %612 = vst [vmem:[%s583 + $0x24] sm:$0xf] %v611
      %613 = vst.msk [vmem:[%s583 + $0x28] sm:$0xf] %vm172, %v329
      %v614 = vld [vmem:[%s583 + $0x2c] sm:$0x1]
      %v615 = vsel %vm592, %v330, %v614
      %616 = vst [vmem:[%s583 + $0x2c] sm:$0x1] %v615
      %v617 = vld [vmem:[%s583 + $0x30] sm:$0xf]
      %v618 = vsel %vm586, %v337, %v617
      %619 = vst [vmem:[%s583 + $0x30] sm:$0xf] %v618
      %620 = vst.msk [vmem:[%s583 + $0x34] sm:$0xf] %vm172, %v346
      %v621 = vld [vmem:[%s583 + $0x38] sm:$0x1]
      %v622 = vsel %vm592, %v347, %v621
      %623 = vst [vmem:[%s583 + $0x38] sm:$0x1] %v622
      %v624 = vld [vmem:[%s583 + $0x3c] sm:$0xf]
      %v625 = vsel %vm586, %v354, %v624
      %626 = vst [vmem:[%s583 + $0x3c] sm:$0xf] %v625
      %627 = vst.msk [vmem:[%s583 + $0x40] sm:$0xf] %vm172, %v363
      %v628 = vld [vmem:[%s583 + $0x44] sm:$0x1]
      %v629 = vsel %vm592, %v364, %v628
      %630 = vst [vmem:[%s583 + $0x44] sm:$0x1] %v629
      %v631 = vld [vmem:[%s583 + $0x48] sm:$0xf]
      %v632 = vsel %vm586, %v371, %v631
      %633 = vst [vmem:[%s583 + $0x48] sm:$0xf] %v632
      %634 = vst.msk [vmem:[%s583 + $0x4c] sm:$0xf] %vm172, %v380
      %v635 = vld [vmem:[%s583 + $0x50] sm:$0x1]
      %v636 = vsel %vm592, %v381, %v635
      %637 = vst [vmem:[%s583 + $0x50] sm:$0x1] %v636
      %v638 = vld [vmem:[%s583 + $0x54] sm:$0xf]
      %v639 = vsel %vm586, %v388, %v638
      %640 = vst [vmem:[%s583 + $0x54] sm:$0xf] %v639
      %641 = vst.msk [vmem:[%s583 + $0x58] sm:$0xf] %vm172, %v397
      %v642 = vld [vmem:[%s583 + $0x5c] sm:$0x1]
      %v643 = vsel %vm592, %v398, %v642
      %644 = vst [vmem:[%s583 + $0x5c] sm:$0x1] %v643
      %v645 = vld [vmem:[%s583 + $0x60] sm:$0xf]
      %v646 = vsel %vm586, %v405, %v645
      %647 = vst [vmem:[%s583 + $0x60] sm:$0xf] %v646
      %648 = vst.msk [vmem:[%s583 + $0x64] sm:$0xf] %vm172, %v414
      %v649 = vld [vmem:[%s583 + $0x68] sm:$0x1]
      %v650 = vsel %vm592, %v415, %v649
      %651 = vst [vmem:[%s583 + $0x68] sm:$0x1] %v650
      %v652 = vld [vmem:[%s583 + $0x6c] sm:$0xf]
      %v653 = vsel %vm586, %v422, %v652
      %654 = vst [vmem:[%s583 + $0x6c] sm:$0xf] %v653
      %655 = vst.msk [vmem:[%s583 + $0x70] sm:$0xf] %vm172, %v431
      %v656 = vld [vmem:[%s583 + $0x74] sm:$0x1]
      %v657 = vsel %vm592, %v432, %v656
      %658 = vst [vmem:[%s583 + $0x74] sm:$0x1] %v657
      %v659 = vld [vmem:[%s583 + $0x78] sm:$0xf]
      %v660 = vsel %vm586, %v439, %v659
      %661 = vst [vmem:[%s583 + $0x78] sm:$0xf] %v660
      %662 = vst.msk [vmem:[%s583 + $0x7c] sm:$0xf] %vm172, %v448
      %v663 = vld [vmem:[%s583 + $0x80] sm:$0x1]
      %v664 = vsel %vm592, %v449, %v663
      %665 = vst [vmem:[%s583 + $0x80] sm:$0x1] %v664
      %v666 = vld [vmem:[%s583 + $0x84] sm:$0xf]
      %v667 = vsel %vm586, %v456, %v666
      %668 = vst [vmem:[%s583 + $0x84] sm:$0xf] %v667
      %669 = vst.msk [vmem:[%s583 + $0x88] sm:$0xf] %vm172, %v465
      %v670 = vld [vmem:[%s583 + $0x8c] sm:$0x1]
      %v671 = vsel %vm592, %v466, %v670
      %672 = vst [vmem:[%s583 + $0x8c] sm:$0x1] %v671
      %v673 = vld [vmem:[%s583 + $0x90] sm:$0xf]
      %v674 = vsel %vm586, %v473, %v673
      %675 = vst [vmem:[%s583 + $0x90] sm:$0xf] %v674
      %676 = vst.msk [vmem:[%s583 + $0x94] sm:$0xf] %vm172, %v482
      %v677 = vld [vmem:[%s583 + $0x98] sm:$0x1]
      %v678 = vsel %vm592, %v483, %v677
      %679 = vst [vmem:[%s583 + $0x98] sm:$0x1] %v678
      %v680 = vld [vmem:[%s583 + $0x9c] sm:$0xf]
      %v681 = vsel %vm586, %v490, %v680
      %682 = vst [vmem:[%s583 + $0x9c] sm:$0xf] %v681
      %683 = vst.msk [vmem:[%s583 + $0xa0] sm:$0xf] %vm172, %v499
      %v684 = vld [vmem:[%s583 + $0xa4] sm:$0x1]
      %v685 = vsel %vm592, %v500, %v684
      %686 = vst [vmem:[%s583 + $0xa4] sm:$0x1] %v685
      %v687 = vld [vmem:[%s583 + $0xa8] sm:$0xf]
      %v688 = vsel %vm586, %v507, %v687
      %689 = vst [vmem:[%s583 + $0xa8] sm:$0xf] %v688
      %690 = vst.msk [vmem:[%s583 + $0xac] sm:$0xf] %vm172, %v516
      %v691 = vld [vmem:[%s583 + $0xb0] sm:$0x1]
      %v692 = vsel %vm592, %v517, %v691
      %693 = vst [vmem:[%s583 + $0xb0] sm:$0x1] %v692
      %v694 = vld [vmem:[%s583 + $0xb4] sm:$0xf]
      %v695 = vsel %vm586, %v524, %v694
      %696 = vst [vmem:[%s583 + $0xb4] sm:$0xf] %v695
      %697 = vst.msk [vmem:[%s583 + $0xb8] sm:$0xf] %vm172, %v533
      %v698 = vld [vmem:[%s583 + $0xbc] sm:$0x1]
      %v699 = vsel %vm592, %v534, %v698
      %700 = vst [vmem:[%s583 + $0xbc] sm:$0x1] %v699
      %v701 = vld [vmem:[#allocation2] sm:$0xf]
      %v702 = vld [vmem:[#allocation2 + $0x4] sm:$0xf]
      %v703 = vld [vmem:[#allocation2 + $0xc] sm:$0xf]
      %v704 = vld [vmem:[#allocation2 + $0x10] sm:$0xf]
      %v705 = vld [vmem:[#allocation2 + $0x18] sm:$0xf]
      %v706 = vld [vmem:[#allocation2 + $0x1c] sm:$0xf]
      %v707 = vld [vmem:[#allocation2 + $0x24] sm:$0xf]
      %v708 = vld [vmem:[#allocation2 + $0x28] sm:$0xf]
      %v709 = vld [vmem:[#allocation2 + $0x30] sm:$0xf]
      %v710 = vld [vmem:[#allocation2 + $0x34] sm:$0xf]
      %v711 = vld [vmem:[#allocation2 + $0x3c] sm:$0xf]
      %v712 = vld [vmem:[#allocation2 + $0x40] sm:$0xf]
      %v713 = vld [vmem:[#allocation2 + $0x48] sm:$0xf]
      %v714 = vld [vmem:[#allocation2 + $0x4c] sm:$0xf]
      %v715 = vld [vmem:[#allocation2 + $0x54] sm:$0xf]
      %v716 = vld [vmem:[#allocation2 + $0x58] sm:$0xf]
      %v717 = vld [vmem:[#allocation2 + $0x60] sm:$0xf]
      %v718 = vld [vmem:[#allocation2 + $0x64] sm:$0xf]
      %v719 = vld [vmem:[#allocation2 + $0x6c] sm:$0xf]
      %v720 = vld [vmem:[#allocation2 + $0x70] sm:$0xf]
      %v721 = vld [vmem:[#allocation2 + $0x78] sm:$0xf]
      %v722 = vld [vmem:[#allocation2 + $0x7c] sm:$0xf]
      %v723 = vld [vmem:[#allocation2 + $0x84] sm:$0xf]
      %v724 = vld [vmem:[#allocation2 + $0x88] sm:$0xf]
      %v725 = vld [vmem:[#allocation2 + $0x90] sm:$0xf]
      %v726 = vld [vmem:[#allocation2 + $0x94] sm:$0xf]
      %v727 = vld [vmem:[#allocation2 + $0x9c] sm:$0xf]
      %v728 = vld [vmem:[#allocation2 + $0xa0] sm:$0xf]
      %v729 = vld [vmem:[#allocation2 + $0xa8] sm:$0xf]
      %v730 = vld [vmem:[#allocation2 + $0xac] sm:$0xf]
      %v731 = vld [vmem:[#allocation2 + $0xb4] sm:$0xf]
      %v732 = vld [vmem:[#allocation2 + $0xb8] sm:$0xf]
      %v733 = vld [vmem:[%s1] sm:$0xf]
      %v734 = vld [vmem:[#allocation2 + $0x8] sm:$0x1]
      %v735 = vld [vmem:[#allocation2 + $0x14] sm:$0x1]
      %v736 = vld [vmem:[#allocation2 + $0x20] sm:$0x1]
      %v737 = vld [vmem:[#allocation2 + $0x2c] sm:$0x1]
      %v738 = vld [vmem:[#allocation2 + $0x38] sm:$0x1]
      %v739 = vld [vmem:[#allocation2 + $0x44] sm:$0x1]
      %v740 = vld [vmem:[#allocation2 + $0x50] sm:$0x1]
      %v741 = vld [vmem:[#allocation2 + $0x5c] sm:$0x1]
      %v742 = vld [vmem:[#allocation2 + $0x68] sm:$0x1]
      %v743 = vld [vmem:[#allocation2 + $0x74] sm:$0x1]
      %v744 = vld [vmem:[#allocation2 + $0x80] sm:$0x1]
      %v745 = vld [vmem:[#allocation2 + $0x8c] sm:$0x1]
      %v746 = vld [vmem:[#allocation2 + $0x98] sm:$0x1]
      %v747 = vld [vmem:[#allocation2 + $0xa4] sm:$0x1]
      %v748 = vld [vmem:[#allocation2 + $0xb0] sm:$0x1]
      %v749 = vld [vmem:[#allocation2 + $0xbc] sm:$0x1]
      %vm750 = vsmask.f32 3328
      %vm751 = vsmask.f32 7440
      %vm752 = vmor %vm750, %vm751
      %v754 = vshrl.u32 %v701, 16
      %v756 = vrot.slane %v754, 4
      %v757 = vshll.u32 %v701, 16
      %v759 = vrot.slane %v757, 5
      %v760 = vor.u32 %v756, %v759
      %v761 = vrot.slane %v760, 4
      %v763 = vshll.u32 %v702, 16
      %v765 = vrot.slane %v763, 5
      %v766 = vsel %vm752, %v761, %v765
      %v767 = vshrl.u32 %v702, 16
      %v769 = vrot.slane %v767, 4
      %v770 = vor.u32 %v769, %v765
      %v771 = vrot.slane %v770, 4
      %v773 = vshll.u32 %v734, 16
      %v775 = vrot.slane %v773, 5
      %v776 = vsel %vm752, %v771, %v775
      %v778 = vshrl.u32 %v703, 16
      %v780 = vrot.slane %v778, 4
      %v781 = vshll.u32 %v703, 16
      %v783 = vrot.slane %v781, 5
      %v784 = vor.u32 %v780, %v783
      %v785 = vrot.slane %v784, 4
      %v787 = vshll.u32 %v704, 16
      %v789 = vrot.slane %v787, 5
      %v790 = vsel %vm752, %v785, %v789
      %v791 = vshrl.u32 %v704, 16
      %v793 = vrot.slane %v791, 4
      %v794 = vor.u32 %v793, %v789
      %v795 = vrot.slane %v794, 4
      %v797 = vshll.u32 %v735, 16
      %v799 = vrot.slane %v797, 5
      %v800 = vsel %vm752, %v795, %v799
      %v802 = vshrl.u32 %v705, 16
      %v804 = vrot.slane %v802, 4
      %v805 = vshll.u32 %v705, 16
      %v807 = vrot.slane %v805, 5
      %v808 = vor.u32 %v804, %v807
      %v809 = vrot.slane %v808, 4
      %v811 = vshll.u32 %v706, 16
      %v813 = vrot.slane %v811, 5
      %v814 = vsel %vm752, %v809, %v813
      %v815 = vshrl.u32 %v706, 16
      %v817 = vrot.slane %v815, 4
      %v818 = vor.u32 %v817, %v813
      %v819 = vrot.slane %v818, 4
      %v821 = vshll.u32 %v736, 16
      %v823 = vrot.slane %v821, 5
      %v824 = vsel %vm752, %v819, %v823
      %v826 = vshrl.u32 %v707, 16
      %v828 = vrot.slane %v826, 4
      %v829 = vshll.u32 %v707, 16
      %v831 = vrot.slane %v829, 5
      %v832 = vor.u32 %v828, %v831
      %v833 = vrot.slane %v832, 4
      %v835 = vshll.u32 %v708, 16
      %v837 = vrot.slane %v835, 5
      %v838 = vsel %vm752, %v833, %v837
      %v839 = vshrl.u32 %v708, 16
      %v841 = vrot.slane %v839, 4
      %v842 = vor.u32 %v841, %v837
      %v843 = vrot.slane %v842, 4
      %v845 = vshll.u32 %v737, 16
      %v847 = vrot.slane %v845, 5
      %v848 = vsel %vm752, %v843, %v847
      %v850 = vshrl.u32 %v709, 16
      %v852 = vrot.slane %v850, 4
      %v853 = vshll.u32 %v709, 16
      %v855 = vrot.slane %v853, 5
      %v856 = vor.u32 %v852, %v855
      %v857 = vrot.slane %v856, 4
      %v859 = vshll.u32 %v710, 16
      %v861 = vrot.slane %v859, 5
      %v862 = vsel %vm752, %v857, %v861
      %v863 = vshrl.u32 %v710, 16
      %v865 = vrot.slane %v863, 4
      %v866 = vor.u32 %v865, %v861
      %v867 = vrot.slane %v866, 4
      %v869 = vshll.u32 %v738, 16
      %v871 = vrot.slane %v869, 5
      %v872 = vsel %vm752, %v867, %v871
      %v874 = vshrl.u32 %v711, 16
      %v876 = vrot.slane %v874, 4
      %v877 = vshll.u32 %v711, 16
      %v879 = vrot.slane %v877, 5
      %v880 = vor.u32 %v876, %v879
      %v881 = vrot.slane %v880, 4
      %v883 = vshll.u32 %v712, 16
      %v885 = vrot.slane %v883, 5
      %v886 = vsel %vm752, %v881, %v885
      %v887 = vshrl.u32 %v712, 16
      %v889 = vrot.slane %v887, 4
      %v890 = vor.u32 %v889, %v885
      %v891 = vrot.slane %v890, 4
      %v893 = vshll.u32 %v739, 16
      %v895 = vrot.slane %v893, 5
      %v896 = vsel %vm752, %v891, %v895
      %v898 = vshrl.u32 %v713, 16
      %v900 = vrot.slane %v898, 4
      %v901 = vshll.u32 %v713, 16
      %v903 = vrot.slane %v901, 5
      %v904 = vor.u32 %v900, %v903
      %v905 = vrot.slane %v904, 4
      %v907 = vshll.u32 %v714, 16
      %v909 = vrot.slane %v907, 5
      %v910 = vsel %vm752, %v905, %v909
      %v911 = vshrl.u32 %v714, 16
      %v913 = vrot.slane %v911, 4
      %v914 = vor.u32 %v913, %v909
      %v915 = vrot.slane %v914, 4
      %v917 = vshll.u32 %v740, 16
      %v919 = vrot.slane %v917, 5
      %v920 = vsel %vm752, %v915, %v919
      %v922 = vshrl.u32 %v715, 16
      %v924 = vrot.slane %v922, 4
      %v925 = vshll.u32 %v715, 16
      %v927 = vrot.slane %v925, 5
      %v928 = vor.u32 %v924, %v927
      %v929 = vrot.slane %v928, 4
      %v931 = vshll.u32 %v716, 16
      %v933 = vrot.slane %v931, 5
      %v934 = vsel %vm752, %v929, %v933
      %v935 = vshrl.u32 %v716, 16
      %v937 = vrot.slane %v935, 4
      %v938 = vor.u32 %v937, %v933
      %v939 = vrot.slane %v938, 4
      %v941 = vshll.u32 %v741, 16
      %v943 = vrot.slane %v941, 5
      %v944 = vsel %vm752, %v939, %v943
      %v946 = vshrl.u32 %v717, 16
      %v948 = vrot.slane %v946, 4
      %v949 = vshll.u32 %v717, 16
      %v951 = vrot.slane %v949, 5
      %v952 = vor.u32 %v948, %v951
      %v953 = vrot.slane %v952, 4
      %v955 = vshll.u32 %v718, 16
      %v957 = vrot.slane %v955, 5
      %v958 = vsel %vm752, %v953, %v957
      %v959 = vshrl.u32 %v718, 16
      %v961 = vrot.slane %v959, 4
      %v962 = vor.u32 %v961, %v957
      %v963 = vrot.slane %v962, 4
      %v965 = vshll.u32 %v742, 16
      %v967 = vrot.slane %v965, 5
      %v968 = vsel %vm752, %v963, %v967
      %v970 = vshrl.u32 %v719, 16
      %v972 = vrot.slane %v970, 4
      %v973 = vshll.u32 %v719, 16
      %v975 = vrot.slane %v973, 5
      %v976 = vor.u32 %v972, %v975
      %v977 = vrot.slane %v976, 4
      %v979 = vshll.u32 %v720, 16
      %v981 = vrot.slane %v979, 5
      %v982 = vsel %vm752, %v977, %v981
      %v983 = vshrl.u32 %v720, 16
      %v985 = vrot.slane %v983, 4
      %v986 = vor.u32 %v985, %v981
      %v987 = vrot.slane %v986, 4
      %v989 = vshll.u32 %v743, 16
      %v991 = vrot.slane %v989, 5
      %v992 = vsel %vm752, %v987, %v991
      %v994 = vshrl.u32 %v721, 16
      %v996 = vrot.slane %v994, 4
      %v997 = vshll.u32 %v721, 16
      %v999 = vrot.slane %v997, 5
      %v1000 = vor.u32 %v996, %v999
      %v1001 = vrot.slane %v1000, 4
      %v1003 = vshll.u32 %v722, 16
      %v1005 = vrot.slane %v1003, 5
      %v1006 = vsel %vm752, %v1001, %v1005
      %v1007 = vshrl.u32 %v722, 16
      %v1009 = vrot.slane %v1007, 4
      %v1010 = vor.u32 %v1009, %v1005
      %v1011 = vrot.slane %v1010, 4
      %v1013 = vshll.u32 %v744, 16
      %v1015 = vrot.slane %v1013, 5
      %v1016 = vsel %vm752, %v1011, %v1015
      %v1018 = vshrl.u32 %v723, 16
      %v1020 = vrot.slane %v1018, 4
      %v1021 = vshll.u32 %v723, 16
      %v1023 = vrot.slane %v1021, 5
      %v1024 = vor.u32 %v1020, %v1023
      %v1025 = vrot.slane %v1024, 4
      %v1027 = vshll.u32 %v724, 16
      %v1029 = vrot.slane %v1027, 5
      %v1030 = vsel %vm752, %v1025, %v1029
      %v1031 = vshrl.u32 %v724, 16
      %v1033 = vrot.slane %v1031, 4
      %v1034 = vor.u32 %v1033, %v1029
      %v1035 = vrot.slane %v1034, 4
      %v1037 = vshll.u32 %v745, 16
      %v1039 = vrot.slane %v1037, 5
      %v1040 = vsel %vm752, %v1035, %v1039
      %v1042 = vshrl.u32 %v725, 16
      %v1044 = vrot.slane %v1042, 4
      %v1045 = vshll.u32 %v725, 16
      %v1047 = vrot.slane %v1045, 5
      %v1048 = vor.u32 %v1044, %v1047
      %v1049 = vrot.slane %v1048, 4
      %v1051 = vshll.u32 %v726, 16
      %v1053 = vrot.slane %v1051, 5
      %v1054 = vsel %vm752, %v1049, %v1053
      %v1055 = vshrl.u32 %v726, 16
      %v1057 = vrot.slane %v1055, 4
      %v1058 = vor.u32 %v1057, %v1053
      %v1059 = vrot.slane %v1058, 4
      %v1061 = vshll.u32 %v746, 16
      %v1063 = vrot.slane %v1061, 5
      %v1064 = vsel %vm752, %v1059, %v1063
      %v1066 = vshrl.u32 %v727, 16
      %v1068 = vrot.slane %v1066, 4
      %v1069 = vshll.u32 %v727, 16
      %v1071 = vrot.slane %v1069, 5
      %v1072 = vor.u32 %v1068, %v1071
      %v1073 = vrot.slane %v1072, 4
      %v1075 = vshll.u32 %v728, 16
      %v1077 = vrot.slane %v1075, 5
      %v1078 = vsel %vm752, %v1073, %v1077
      %v1079 = vshrl.u32 %v728, 16
      %v1081 = vrot.slane %v1079, 4
      %v1082 = vor.u32 %v1081, %v1077
      %v1083 = vrot.slane %v1082, 4
      %v1085 = vshll.u32 %v747, 16
      %v1087 = vrot.slane %v1085, 5
      %v1088 = vsel %vm752, %v1083, %v1087
      %v1090 = vshrl.u32 %v729, 16
      %v1092 = vrot.slane %v1090, 4
      %v1093 = vshll.u32 %v729, 16
      %v1095 = vrot.slane %v1093, 5
      %v1096 = vor.u32 %v1092, %v1095
      %v1097 = vrot.slane %v1096, 4
      %v1099 = vshll.u32 %v730, 16
      %v1101 = vrot.slane %v1099, 5
      %v1102 = vsel %vm752, %v1097, %v1101
      %v1103 = vshrl.u32 %v730, 16
      %v1105 = vrot.slane %v1103, 4
      %v1106 = vor.u32 %v1105, %v1101
      %v1107 = vrot.slane %v1106, 4
      %v1109 = vshll.u32 %v748, 16
      %v1111 = vrot.slane %v1109, 5
      %v1112 = vsel %vm752, %v1107, %v1111
      %v1114 = vshrl.u32 %v731, 16
      %v1116 = vrot.slane %v1114, 4
      %v1117 = vshll.u32 %v731, 16
      %v1119 = vrot.slane %v1117, 5
      %v1120 = vor.u32 %v1116, %v1119
      %v1121 = vrot.slane %v1120, 4
      %v1123 = vshll.u32 %v732, 16
      %v1125 = vrot.slane %v1123, 5
      %v1126 = vsel %vm752, %v1121, %v1125
      %v1127 = vshrl.u32 %v732, 16
      %v1129 = vrot.slane %v1127, 4
      %v1130 = vor.u32 %v1129, %v1125
      %v1131 = vrot.slane %v1130, 4
      %v1133 = vshll.u32 %v749, 16
      %v1135 = vrot.slane %v1133, 5
      %v1136 = vsel %vm752, %v1131, %v1135
      %s1137 = scalar_lea.vmem %s1, 4
      %v1138 = vld [vmem:[%s1137] sm:$0xf]
      %v1139 = vunpack.c.l.b16 %v766
      %v1140 = vunpack.c.l.b16 %v776
      %v1141 = vunpack.c.l.b16 %v790
      %v1142 = vunpack.c.l.b16 %v800
      %v1143 = vunpack.c.l.b16 %v814
      %v1144 = vunpack.c.l.b16 %v824
      %v1145 = vunpack.c.l.b16 %v838
      %v1146 = vunpack.c.l.b16 %v848
      %v1147 = vunpack.c.l.b16 %v862
      %v1148 = vunpack.c.l.b16 %v872
      %v1149 = vunpack.c.l.b16 %v886
      %v1150 = vunpack.c.l.b16 %v896
      %v1151 = vunpack.c.l.b16 %v910
      %v1152 = vunpack.c.l.b16 %v920
      %v1153 = vunpack.c.l.b16 %v934
      %v1154 = vunpack.c.l.b16 %v944
      %v1155 = vunpack.c.l.b16 %v958
      %v1156 = vunpack.c.l.b16 %v968
      %v1157 = vunpack.c.l.b16 %v982
      %v1158 = vunpack.c.l.b16 %v992
      %v1159 = vunpack.c.l.b16 %v1006
      %v1160 = vunpack.c.l.b16 %v1016
      %v1161 = vunpack.c.l.b16 %v1030
      %v1162 = vunpack.c.l.b16 %v1040
      %v1163 = vunpack.c.l.b16 %v1054
      %v1164 = vunpack.c.l.b16 %v1064
      %v1165 = vunpack.c.l.b16 %v1078
      %v1166 = vunpack.c.l.b16 %v1088
      %v1167 = vunpack.c.l.b16 %v1102
      %v1168 = vunpack.c.l.b16 %v1112
      %v1169 = vunpack.c.l.b16 %v1126
      %v1170 = vunpack.c.l.b16 %v1136
      %v1171 = vpack.c.b16 %v1140, %v1139
      %v1172 = vpack.c.b16 %v1142, %v1141
      %v1173 = vpack.c.b16 %v1144, %v1143
      %v1174 = vpack.c.b16 %v1146, %v1145
      %v1175 = vpack.c.b16 %v1148, %v1147
      %v1176 = vpack.c.b16 %v1150, %v1149
      %v1177 = vpack.c.b16 %v1152, %v1151
      %v1178 = vpack.c.b16 %v1154, %v1153
      %v1179 = vpack.c.b16 %v1156, %v1155
      %v1180 = vpack.c.b16 %v1158, %v1157
      %v1181 = vpack.c.b16 %v1160, %v1159
      %v1182 = vpack.c.b16 %v1162, %v1161
      %v1183 = vpack.c.b16 %v1164, %v1163
      %v1184 = vpack.c.b16 %v1166, %v1165
      %v1185 = vpack.c.b16 %v1168, %v1167
      %v1186 = vpack.c.b16 %v1170, %v1169
      %vm1187 = vcmask 64512
      %v1189 = vsel %vm1187, %v1171, 0
      %v1192 = vsel %vm1187, %v1172, 0
      %v1195 = vsel %vm1187, %v1173, 0
      %v1198 = vsel %vm1187, %v1174, 0
      %v1201 = vsel %vm1187, %v1175, 0
      %v1204 = vsel %vm1187, %v1176, 0
      %v1207 = vsel %vm1187, %v1177, 0
      %v1210 = vsel %vm1187, %v1178, 0
      %v1213 = vsel %vm1187, %v1179, 0
      %v1216 = vsel %vm1187, %v1180, 0
      %v1219 = vsel %vm1187, %v1181, 0
      %v1222 = vsel %vm1187, %v1182, 0
      %v1225 = vsel %vm1187, %v1183, 0
      %v1228 = vsel %vm1187, %v1184, 0
      %v1231 = vsel %vm1187, %v1185, 0
      %v1234 = vsel %vm1187, %v1186, 0
      %vm1236 = vcmask 1043456
      %v1238 = vsel %vm1236, %v1138, 0
      %1240 = vmatprep.subr.bf16.mxu0 0
      %1241 = vmatpush1.bf16.msra.mxu0 %v1238
      %1242 = vmatprep.subr.bf16.mxu0 0
      %1243 = vmatpush1.bf16.msra.mxu0 0
      %1244 = vmatprep.subr.bf16.mxu0 0
      %1245 = vmatpush1.bf16.msra.mxu0 0
      %1246 = vmatprep.subr.bf16.mxu0 0
      %1247 = vmatpush1.bf16.msra.mxu0 0
      %1248 = vmatprep.subr.bf16.mxu0 0
      %1249 = vmatpush1.bf16.msra.mxu0 0
      %1250 = vmatprep.subr.bf16.mxu0 0
      %1251 = vmatpush1.bf16.msra.mxu0 0
      %1252 = vmatprep.subr.bf16.mxu0 0
      %1253 = vmatpush1.bf16.msra.mxu0 0
      %1254 = vmatprep.subr.bf16.mxu0 0
      %1255 = vmatpush1.bf16.msra.mxu0 0
      %1256 = vmatprep.subr.bf16.mxu0 0
      %1257 = vmatpush1.bf16.msra.mxu0 0
      %1258 = vmatprep.subr.bf16.mxu0 0
      %1259 = vmatpush1.bf16.msra.mxu0 0
      %1260 = vmatprep.subr.bf16.mxu0 0
      %1261 = vmatpush1.bf16.msra.mxu0 0
      %1262 = vmatprep.subr.bf16.mxu0 0
      %1263 = vmatpush1.bf16.msra.mxu0 0
      %1264 = vmatprep.subr.bf16.mxu0 0
      %1265 = vmatpush1.bf16.msra.mxu0 0
      %1266 = vmatprep.subr.bf16.mxu0 0
      %1267 = vmatpush1.bf16.msra.mxu0 0
      %1268 = vmatprep.subr.bf16.mxu0 0
      %1269 = vmatpush1.bf16.msra.mxu0 0
      %1270 = vmatprep.subr.bf16.mxu0 0
      %1271 = vmatpush1.bf16.msra.mxu0 0
      %1272 = vmatprep.mubr.bf16.mxu0 0
      %1273 = vmatmul.mubr.bf16.gmra.mrb[0].mxu0 %v1189
      %v1274 = vpop.f32.mrb[0].mxu0
      %v1275 = vadd.f32 0.0, %v1274
      %v1276 = vpop.f32.mrb[0].mxu0
      %v1277 = vpop.f32.mrb[0].mxu0
      %v1278 = vadd.f32 0.0, %v1277
      %v1279 = vpop.f32.mrb[0].mxu0
      %1280 = vmatprep.mubr.bf16.mxu0 0
      %1281 = vmatmul.mubr.bf16.gmra.mrb[0].mxu0 %v1192
      %v1282 = vpop.f32.mrb[0].mxu0
      %v1283 = vadd.f32 0.0, %v1282
      %v1284 = vpop.f32.mrb[0].mxu0
      %v1285 = vpop.f32.mrb[0].mxu0
      %v1286 = vadd.f32 0.0, %v1285
      %v1287 = vpop.f32.mrb[0].mxu0
      %1288 = vmatprep.mubr.bf16.mxu0 0
      %1289 = vmatmul.mubr.bf16.gmra.mrb[0].mxu0 %v1195
      %v1290 = vpop.f32.mrb[0].mxu0
      %v1291 = vadd.f32 0.0, %v1290
      %v1292 = vpop.f32.mrb[0].mxu0
      %v1293 = vpop.f32.mrb[0].mxu0
      %v1294 = vadd.f32 0.0, %v1293
      %v1295 = vpop.f32.mrb[0].mxu0
      %1296 = vmatprep.mubr.bf16.mxu0 0
      %1297 = vmatmul.mubr.bf16.gmra.mrb[0].mxu0 %v1198
      %v1298 = vpop.f32.mrb[0].mxu0
      %v1299 = vadd.f32 0.0, %v1298
      %v1300 = vpop.f32.mrb[0].mxu0
      %v1301 = vpop.f32.mrb[0].mxu0
      %v1302 = vadd.f32 0.0, %v1301
      %v1303 = vpop.f32.mrb[0].mxu0
      %1304 = vmatprep.mubr.bf16.mxu0 0
      %1305 = vmatmul.mubr.bf16.gmra.mrb[0].mxu0 %v1201
      %v1306 = vpop.f32.mrb[0].mxu0
      %v1307 = vadd.f32 0.0, %v1306
      %v1308 = vpop.f32.mrb[0].mxu0
      %v1309 = vpop.f32.mrb[0].mxu0
      %v1310 = vadd.f32 0.0, %v1309
      %v1311 = vpop.f32.mrb[0].mxu0
      %1312 = vmatprep.mubr.bf16.mxu0 0
      %1313 = vmatmul.mubr.bf16.gmra.mrb[0].mxu0 %v1204
      %v1314 = vpop.f32.mrb[0].mxu0
      %v1315 = vadd.f32 0.0, %v1314
      %v1316 = vpop.f32.mrb[0].mxu0
      %v1317 = vpop.f32.mrb[0].mxu0
      %v1318 = vadd.f32 0.0, %v1317
      %v1319 = vpop.f32.mrb[0].mxu0
      %1320 = vmatprep.mubr.bf16.mxu0 0
      %1321 = vmatmul.mubr.bf16.gmra.mrb[0].mxu0 %v1207
      %v1322 = vpop.f32.mrb[0].mxu0
      %v1323 = vadd.f32 0.0, %v1322
      %v1324 = vpop.f32.mrb[0].mxu0
      %v1325 = vpop.f32.mrb[0].mxu0
      %v1326 = vadd.f32 0.0, %v1325
      %v1327 = vpop.f32.mrb[0].mxu0
      %1328 = vmatprep.mubr.bf16.mxu0 0
      %1329 = vmatmul.mubr.bf16.gmra.mrb[0].mxu0 %v1210
      %v1330 = vpop.f32.mrb[0].mxu0
      %v1331 = vadd.f32 0.0, %v1330
      %v1332 = vpop.f32.mrb[0].mxu0
      %v1333 = vpop.f32.mrb[0].mxu0
      %v1334 = vadd.f32 0.0, %v1333
      %v1335 = vpop.f32.mrb[0].mxu0
      %1336 = vmatprep.mubr.bf16.mxu0 0
      %1337 = vmatmul.mubr.bf16.gmra.mrb[0].mxu0 %v1213
      %v1338 = vpop.f32.mrb[0].mxu0
      %v1339 = vadd.f32 0.0, %v1338
      %v1340 = vpop.f32.mrb[0].mxu0
      %v1341 = vpop.f32.mrb[0].mxu0
      %v1342 = vadd.f32 0.0, %v1341
      %v1343 = vpop.f32.mrb[0].mxu0
      %1344 = vmatprep.mubr.bf16.mxu0 0
      %1345 = vmatmul.mubr.bf16.gmra.mrb[0].mxu0 %v1216
      %v1346 = vpop.f32.mrb[0].mxu0
      %v1347 = vadd.f32 0.0, %v1346
      %v1348 = vpop.f32.mrb[0].mxu0
      %v1349 = vpop.f32.mrb[0].mxu0
      %v1350 = vadd.f32 0.0, %v1349
      %v1351 = vpop.f32.mrb[0].mxu0
      %1352 = vmatprep.mubr.bf16.mxu0 0
      %1353 = vmatmul.mubr.bf16.gmra.mrb[0].mxu0 %v1219
      %v1354 = vpop.f32.mrb[0].mxu0
      %v1355 = vadd.f32 0.0, %v1354
      %v1356 = vpop.f32.mrb[0].mxu0
      %v1357 = vpop.f32.mrb[0].mxu0
      %v1358 = vadd.f32 0.0, %v1357
      %v1359 = vpop.f32.mrb[0].mxu0
      %1360 = vmatprep.mubr.bf16.mxu0 0
      %1361 = vmatmul.mubr.bf16.gmra.mrb[0].mxu0 %v1222
      %v1362 = vpop.f32.mrb[0].mxu0
      %v1363 = vadd.f32 0.0, %v1362
      %v1364 = vpop.f32.mrb[0].mxu0
      %v1365 = vpop.f32.mrb[0].mxu0
      %v1366 = vadd.f32 0.0, %v1365
      %v1367 = vpop.f32.mrb[0].mxu0
      %1368 = vmatprep.mubr.bf16.mxu0 0
      %1369 = vmatmul.mubr.bf16.gmra.mrb[0].mxu0 %v1225
      %v1370 = vpop.f32.mrb[0].mxu0
      %v1371 = vadd.f32 0.0, %v1370
      %v1372 = vpop.f32.mrb[0].mxu0
      %v1373 = vpop.f32.mrb[0].mxu0
      %v1374 = vadd.f32 0.0, %v1373
      %v1375 = vpop.f32.mrb[0].mxu0
      %1376 = vmatprep.mubr.bf16.mxu0 0
      %1377 = vmatmul.mubr.bf16.gmra.mrb[0].mxu0 %v1228
      %v1378 = vpop.f32.mrb[0].mxu0
      %v1379 = vadd.f32 0.0, %v1378
      %v1380 = vpop.f32.mrb[0].mxu0
      %v1381 = vpop.f32.mrb[0].mxu0
      %v1382 = vadd.f32 0.0, %v1381
      %v1383 = vpop.f32.mrb[0].mxu0
      %1384 = vmatprep.mubr.bf16.mxu0 0
      %1385 = vmatmul.mubr.bf16.gmra.mrb[0].mxu0 %v1231
      %v1386 = vpop.f32.mrb[0].mxu0
      %v1387 = vadd.f32 0.0, %v1386
      %v1388 = vpop.f32.mrb[0].mxu0
      %v1389 = vpop.f32.mrb[0].mxu0
      %v1390 = vadd.f32 0.0, %v1389
      %v1391 = vpop.f32.mrb[0].mxu0
      %1392 = vmatprep.mubr.bf16.mxu0 0
      %1393 = vmatmul.mubr.bf16.gmra.mrb[0].mxu0 %v1234
      %v1394 = vpop.f32.mrb[0].mxu0
      %v1395 = vadd.f32 0.0, %v1394
      %v1396 = vpop.f32.mrb[0].mxu0
      %v1397 = vpop.f32.mrb[0].mxu0
      %v1398 = vadd.f32 0.0, %v1397
      %v1399 = vpop.f32.mrb[0].mxu0
      %1400 = vdwg.mxu0
      %v1433 = vunpack.c.l.b16 %v701
      %v1434 = vunpack.c.l.b16 %v702
      %v1435 = vunpack.c.l.b16 %v703
      %v1436 = vunpack.c.l.b16 %v704
      %v1437 = vunpack.c.l.b16 %v705
      %v1438 = vunpack.c.l.b16 %v706
      %v1439 = vunpack.c.l.b16 %v707
      %v1440 = vunpack.c.l.b16 %v708
      %v1441 = vunpack.c.l.b16 %v709
      %v1442 = vunpack.c.l.b16 %v710
      %v1443 = vunpack.c.l.b16 %v711
      %v1444 = vunpack.c.l.b16 %v712
      %v1445 = vunpack.c.l.b16 %v713
      %v1446 = vunpack.c.l.b16 %v714
      %v1447 = vunpack.c.l.b16 %v715
      %v1448 = vunpack.c.l.b16 %v716
      %v1449 = vunpack.c.l.b16 %v717
      %v1450 = vunpack.c.l.b16 %v718
      %v1451 = vunpack.c.l.b16 %v719
      %v1452 = vunpack.c.l.b16 %v720
      %v1453 = vunpack.c.l.b16 %v721
      %v1454 = vunpack.c.l.b16 %v722
      %v1455 = vunpack.c.l.b16 %v723
      %v1456 = vunpack.c.l.b16 %v724
      %v1457 = vunpack.c.l.b16 %v725
      %v1458 = vunpack.c.l.b16 %v726
      %v1459 = vunpack.c.l.b16 %v727
      %v1460 = vunpack.c.l.b16 %v728
      %v1461 = vunpack.c.l.b16 %v729
      %v1462 = vunpack.c.l.b16 %v730
      %v1463 = vunpack.c.l.b16 %v731
      %v1464 = vunpack.c.l.b16 %v732
      %v1465 = vpack.c.b16 %v1434, %v1433
      %v1466 = vpack.c.b16 %v1436, %v1435
      %v1467 = vpack.c.b16 %v1438, %v1437
      %v1468 = vpack.c.b16 %v1440, %v1439
      %v1469 = vpack.c.b16 %v1442, %v1441
      %v1470 = vpack.c.b16 %v1444, %v1443
      %v1471 = vpack.c.b16 %v1446, %v1445
      %v1472 = vpack.c.b16 %v1448, %v1447
      %v1473 = vpack.c.b16 %v1450, %v1449
      %v1474 = vpack.c.b16 %v1452, %v1451
      %v1475 = vpack.c.b16 %v1454, %v1453
      %v1476 = vpack.c.b16 %v1456, %v1455
      %v1477 = vpack.c.b16 %v1458, %v1457
      %v1478 = vpack.c.b16 %v1460, %v1459
      %v1479 = vpack.c.b16 %v1462, %v1461
      %v1480 = vpack.c.b16 %v1464, %v1463
      %v1482 = vsel %vm1187, %v1465, 0
      %v1485 = vsel %vm1187, %v1466, 0
      %v1488 = vsel %vm1187, %v1467, 0
      %v1491 = vsel %vm1187, %v1468, 0
      %v1494 = vsel %vm1187, %v1469, 0
      %v1497 = vsel %vm1187, %v1470, 0
      %v1500 = vsel %vm1187, %v1471, 0
      %v1503 = vsel %vm1187, %v1472, 0
      %v1506 = vsel %vm1187, %v1473, 0
      %v1509 = vsel %vm1187, %v1474, 0
      %v1512 = vsel %vm1187, %v1475, 0
      %v1515 = vsel %vm1187, %v1476, 0
      %v1518 = vsel %vm1187, %v1477, 0
      %v1521 = vsel %vm1187, %v1478, 0
      %v1524 = vsel %vm1187, %v1479, 0
      %v1527 = vsel %vm1187, %v1480, 0
      %v1530 = vsel %vm1236, %v733, 0
      %1532 = vmatprep.subr.bf16.mxu0 0
      %1533 = vmatpush1.bf16.msra.mxu0 %v1530
      %1534 = vmatprep.subr.bf16.mxu0 0
      %1535 = vmatpush1.bf16.msra.mxu0 0
      %1536 = vmatprep.subr.bf16.mxu0 0
      %1537 = vmatpush1.bf16.msra.mxu0 0
      %1538 = vmatprep.subr.bf16.mxu0 0
      %1539 = vmatpush1.bf16.msra.mxu0 0
      %1540 = vmatprep.subr.bf16.mxu0 0
      %1541 = vmatpush1.bf16.msra.mxu0 0
      %1542 = vmatprep.subr.bf16.mxu0 0
      %1543 = vmatpush1.bf16.msra.mxu0 0
      %1544 = vmatprep.subr.bf16.mxu0 0
      %1545 = vmatpush1.bf16.msra.mxu0 0
      %1546 = vmatprep.subr.bf16.mxu0 0
      %1547 = vmatpush1.bf16.msra.mxu0 0
      %1548 = vmatprep.subr.bf16.mxu0 0
      %1549 = vmatpush1.bf16.msra.mxu0 0
      %1550 = vmatprep.subr.bf16.mxu0 0
      %1551 = vmatpush1.bf16.msra.mxu0 0
      %1552 = vmatprep.subr.bf16.mxu0 0
      %1553 = vmatpush1.bf16.msra.mxu0 0
      %1554 = vmatprep.subr.bf16.mxu0 0
      %1555 = vmatpush1.bf16.msra.mxu0 0
      %1556 = vmatprep.subr.bf16.mxu0 0
      %1557 = vmatpush1.bf16.msra.mxu0 0
      %1558 = vmatprep.subr.bf16.mxu0 0
      %1559 = vmatpush1.bf16.msra.mxu0 0
      %1560 = vmatprep.subr.bf16.mxu0 0
      %1561 = vmatpush1.bf16.msra.mxu0 0
      %1562 = vmatprep.subr.bf16.mxu0 0
      %1563 = vmatpush1.bf16.msra.mxu0 0
      %1564 = vmatprep.mubr.bf16.mxu0 0
      %1565 = vmatmul.mubr.bf16.gmra.mrb[0].mxu0 %v1482
      %v1566 = vpop.f32.mrb[0].mxu0
      %v1567 = vadd.f32 %v1275, %v1566
      %v1568 = vpop.f32.mrb[0].mxu0
      %v1569 = vpop.f32.mrb[0].mxu0
      %v1570 = vadd.f32 %v1278, %v1569
      %v1571 = vpop.f32.mrb[0].mxu0
      %1572 = vmatprep.mubr.bf16.mxu0 0
      %1573 = vmatmul.mubr.bf16.gmra.mrb[0].mxu0 %v1485
      %v1574 = vpop.f32.mrb[0].mxu0
      %v1575 = vadd.f32 %v1283, %v1574
      %v1576 = vpop.f32.mrb[0].mxu0
      %v1577 = vpop.f32.mrb[0].mxu0
      %v1578 = vadd.f32 %v1286, %v1577
      %v1579 = vpop.f32.mrb[0].mxu0
      %1580 = vmatprep.mubr.bf16.mxu0 0
      %1581 = vmatmul.mubr.bf16.gmra.mrb[0].mxu0 %v1488
      %v1582 = vpop.f32.mrb[0].mxu0
      %v1583 = vadd.f32 %v1291, %v1582
      %v1584 = vpop.f32.mrb[0].mxu0
      %v1585 = vpop.f32.mrb[0].mxu0
      %v1586 = vadd.f32 %v1294, %v1585
      %v1587 = vpop.f32.mrb[0].mxu0
      %1588 = vmatprep.mubr.bf16.mxu0 0
      %1589 = vmatmul.mubr.bf16.gmra.mrb[0].mxu0 %v1491
      %v1590 = vpop.f32.mrb[0].mxu0
      %v1591 = vadd.f32 %v1299, %v1590
      %v1592 = vpop.f32.mrb[0].mxu0
      %v1593 = vpop.f32.mrb[0].mxu0
      %v1594 = vadd.f32 %v1302, %v1593
      %v1595 = vpop.f32.mrb[0].mxu0
      %1596 = vmatprep.mubr.bf16.mxu0 0
      %1597 = vmatmul.mubr.bf16.gmra.mrb[0].mxu0 %v1494
      %v1598 = vpop.f32.mrb[0].mxu0
      %v1599 = vadd.f32 %v1307, %v1598
      %v1600 = vpop.f32.mrb[0].mxu0
      %v1601 = vpop.f32.mrb[0].mxu0
      %v1602 = vadd.f32 %v1310, %v1601
      %v1603 = vpop.f32.mrb[0].mxu0
      %1604 = vmatprep.mubr.bf16.mxu0 0
      %1605 = vmatmul.mubr.bf16.gmra.mrb[0].mxu0 %v1497
      %v1606 = vpop.f32.mrb[0].mxu0
      %v1607 = vadd.f32 %v1315, %v1606
      %v1608 = vpop.f32.mrb[0].mxu0
      %v1609 = vpop.f32.mrb[0].mxu0
      %v1610 = vadd.f32 %v1318, %v1609
      %v1611 = vpop.f32.mrb[0].mxu0
      %1612 = vmatprep.mubr.bf16.mxu0 0
      %1613 = vmatmul.mubr.bf16.gmra.mrb[0].mxu0 %v1500
      %v1614 = vpop.f32.mrb[0].mxu0
      %v1615 = vadd.f32 %v1323, %v1614
      %v1616 = vpop.f32.mrb[0].mxu0
      %v1617 = vpop.f32.mrb[0].mxu0
      %v1618 = vadd.f32 %v1326, %v1617
      %v1619 = vpop.f32.mrb[0].mxu0
      %1620 = vmatprep.mubr.bf16.mxu0 0
      %1621 = vmatmul.mubr.bf16.gmra.mrb[0].mxu0 %v1503
      %v1622 = vpop.f32.mrb[0].mxu0
      %v1623 = vadd.f32 %v1331, %v1622
      %v1624 = vpop.f32.mrb[0].mxu0
      %v1625 = vpop.f32.mrb[0].mxu0
      %v1626 = vadd.f32 %v1334, %v1625
      %v1627 = vpop.f32.mrb[0].mxu0
      %1628 = vmatprep.mubr.bf16.mxu0 0
      %1629 = vmatmul.mubr.bf16.gmra.mrb[0].mxu0 %v1506
      %v1630 = vpop.f32.mrb[0].mxu0
      %v1631 = vadd.f32 %v1339, %v1630
      %v1632 = vpop.f32.mrb[0].mxu0
      %v1633 = vpop.f32.mrb[0].mxu0
      %v1634 = vadd.f32 %v1342, %v1633
      %v1635 = vpop.f32.mrb[0].mxu0
      %1636 = vmatprep.mubr.bf16.mxu0 0
      %1637 = vmatmul.mubr.bf16.gmra.mrb[0].mxu0 %v1509
      %v1638 = vpop.f32.mrb[0].mxu0
      %v1639 = vadd.f32 %v1347, %v1638
      %v1640 = vpop.f32.mrb[0].mxu0
      %v1641 = vpop.f32.mrb[0].mxu0
      %v1642 = vadd.f32 %v1350, %v1641
      %v1643 = vpop.f32.mrb[0].mxu0
      %1644 = vmatprep.mubr.bf16.mxu0 0
      %1645 = vmatmul.mubr.bf16.gmra.mrb[0].mxu0 %v1512
      %v1646 = vpop.f32.mrb[0].mxu0
      %v1647 = vadd.f32 %v1355, %v1646
      %v1648 = vpop.f32.mrb[0].mxu0
      %v1649 = vpop.f32.mrb[0].mxu0
      %v1650 = vadd.f32 %v1358, %v1649
      %v1651 = vpop.f32.mrb[0].mxu0
      %1652 = vmatprep.mubr.bf16.mxu0 0
      %1653 = vmatmul.mubr.bf16.gmra.mrb[0].mxu0 %v1515
      %v1654 = vpop.f32.mrb[0].mxu0
      %v1655 = vadd.f32 %v1363, %v1654
      %v1656 = vpop.f32.mrb[0].mxu0
      %v1657 = vpop.f32.mrb[0].mxu0
      %v1658 = vadd.f32 %v1366, %v1657
      %v1659 = vpop.f32.mrb[0].mxu0
      %1660 = vmatprep.mubr.bf16.mxu0 0
      %1661 = vmatmul.mubr.bf16.gmra.mrb[0].mxu0 %v1518
      %v1662 = vpop.f32.mrb[0].mxu0
      %v1663 = vadd.f32 %v1371, %v1662
      %v1664 = vpop.f32.mrb[0].mxu0
      %v1665 = vpop.f32.mrb[0].mxu0
      %v1666 = vadd.f32 %v1374, %v1665
      %v1667 = vpop.f32.mrb[0].mxu0
      %1668 = vmatprep.mubr.bf16.mxu0 0
      %1669 = vmatmul.mubr.bf16.gmra.mrb[0].mxu0 %v1521
      %v1670 = vpop.f32.mrb[0].mxu0
      %v1671 = vadd.f32 %v1379, %v1670
      %v1672 = vpop.f32.mrb[0].mxu0
      %v1673 = vpop.f32.mrb[0].mxu0
      %v1674 = vadd.f32 %v1382, %v1673
      %v1675 = vpop.f32.mrb[0].mxu0
      %1676 = vmatprep.mubr.bf16.mxu0 0
      %1677 = vmatmul.mubr.bf16.gmra.mrb[0].mxu0 %v1524
      %v1678 = vpop.f32.mrb[0].mxu0
      %v1679 = vadd.f32 %v1387, %v1678
      %v1680 = vpop.f32.mrb[0].mxu0
      %v1681 = vpop.f32.mrb[0].mxu0
      %v1682 = vadd.f32 %v1390, %v1681
      %v1683 = vpop.f32.mrb[0].mxu0
      %1684 = vmatprep.mubr.bf16.mxu0 0
      %1685 = vmatmul.mubr.bf16.gmra.mrb[0].mxu0 %v1527
      %v1686 = vpop.f32.mrb[0].mxu0
      %v1687 = vadd.f32 %v1395, %v1686
      %v1688 = vpop.f32.mrb[0].mxu0
      %v1689 = vpop.f32.mrb[0].mxu0
      %v1690 = vadd.f32 %v1398, %v1689
      %v1691 = vpop.f32.mrb[0].mxu0
      %1692 = vdwg.mxu0
      %v1693 = vld [vmem:[#allocation2] sm:$0xe]
      %v1694 = vld [vmem:[#allocation2 + $0xc] sm:$0xe]
      %v1695 = vld [vmem:[#allocation2 + $0x18] sm:$0xe]
      %v1696 = vld [vmem:[#allocation2 + $0x24] sm:$0xe]
      %v1697 = vld [vmem:[#allocation2 + $0x30] sm:$0xe]
      %v1698 = vld [vmem:[#allocation2 + $0x3c] sm:$0xe]
      %v1699 = vld [vmem:[#allocation2 + $0x48] sm:$0xe]
      %v1700 = vld [vmem:[#allocation2 + $0x54] sm:$0xe]
      %v1701 = vld [vmem:[#allocation2 + $0x60] sm:$0xe]
      %v1702 = vld [vmem:[#allocation2 + $0x6c] sm:$0xe]
      %v1703 = vld [vmem:[#allocation2 + $0x78] sm:$0xe]
      %v1704 = vld [vmem:[#allocation2 + $0x84] sm:$0xe]
      %v1705 = vld [vmem:[#allocation2 + $0x90] sm:$0xe]
      %v1706 = vld [vmem:[#allocation2 + $0x9c] sm:$0xe]
      %v1707 = vld [vmem:[#allocation2 + $0xa8] sm:$0xe]
      %v1708 = vld [vmem:[#allocation2 + $0xb4] sm:$0xe]
      %vm1741 = vcmask 1042432
      %vm1742 = vcmask 1046532
      %vm1743 = vmor %vm1741, %vm1742
      %v1744 = vrot.slane %v1693, 5
      %v1745 = vrot.slane %v1744, 4
      %v1746 = vrot.slane %v702, 5
      %v1747 = vsel %vm1743, %v1745, %v1746
      %v1748 = vrot.slane %v1746, 4
      %v1749 = vrot.slane %v734, 5
      %v1750 = vsel %vm1743, %v1748, %v1749
      %v1751 = vrot.slane %v1694, 5
      %v1752 = vrot.slane %v1751, 4
      %v1753 = vrot.slane %v704, 5
      %v1754 = vsel %vm1743, %v1752, %v1753
      %v1755 = vrot.slane %v1753, 4
      %v1756 = vrot.slane %v735, 5
      %v1757 = vsel %vm1743, %v1755, %v1756
      %v1758 = vrot.slane %v1695, 5
      %v1759 = vrot.slane %v1758, 4
      %v1760 = vrot.slane %v706, 5
      %v1761 = vsel %vm1743, %v1759, %v1760
      %v1762 = vrot.slane %v1760, 4
      %v1763 = vrot.slane %v736, 5
      %v1764 = vsel %vm1743, %v1762, %v1763
      %v1765 = vrot.slane %v1696, 5
      %v1766 = vrot.slane %v1765, 4
      %v1767 = vrot.slane %v708, 5
      %v1768 = vsel %vm1743, %v1766, %v1767
      %v1769 = vrot.slane %v1767, 4
      %v1770 = vrot.slane %v737, 5
      %v1771 = vsel %vm1743, %v1769, %v1770
      %v1772 = vrot.slane %v1697, 5
      %v1773 = vrot.slane %v1772, 4
      %v1774 = vrot.slane %v710, 5
      %v1775 = vsel %vm1743, %v1773, %v1774
      %v1776 = vrot.slane %v1774, 4
      %v1777 = vrot.slane %v738, 5
      %v1778 = vsel %vm1743, %v1776, %v1777
      %v1779 = vrot.slane %v1698, 5
      %v1780 = vrot.slane %v1779, 4
      %v1781 = vrot.slane %v712, 5
      %v1782 = vsel %vm1743, %v1780, %v1781
      %v1783 = vrot.slane %v1781, 4
      %v1784 = vrot.slane %v739, 5
      %v1785 = vsel %vm1743, %v1783, %v1784
      %v1786 = vrot.slane %v1699, 5
      %v1787 = vrot.slane %v1786, 4
      %v1788 = vrot.slane %v714, 5
      %v1789 = vsel %vm1743, %v1787, %v1788
      %v1790 = vrot.slane %v1788, 4
      %v1791 = vrot.slane %v740, 5
      %v1792 = vsel %vm1743, %v1790, %v1791
      %v1793 = vrot.slane %v1700, 5
      %v1794 = vrot.slane %v1793, 4
      %v1795 = vrot.slane %v716, 5
      %v1796 = vsel %vm1743, %v1794, %v1795
      %v1797 = vrot.slane %v1795, 4
      %v1798 = vrot.slane %v741, 5
      %v1799 = vsel %vm1743, %v1797, %v1798
      %v1800 = vrot.slane %v1701, 5
      %v1801 = vrot.slane %v1800, 4
      %v1802 = vrot.slane %v718, 5
      %v1803 = vsel %vm1743, %v1801, %v1802
      %v1804 = vrot.slane %v1802, 4
      %v1805 = vrot.slane %v742, 5
      %v1806 = vsel %vm1743, %v1804, %v1805
      %v1807 = vrot.slane %v1702, 5
      %v1808 = vrot.slane %v1807, 4
      %v1809 = vrot.slane %v720, 5
      %v1810 = vsel %vm1743, %v1808, %v1809
      %v1811 = vrot.slane %v1809, 4
      %v1812 = vrot.slane %v743, 5
      %v1813 = vsel %vm1743, %v1811, %v1812
      %v1814 = vrot.slane %v1703, 5
      %v1815 = vrot.slane %v1814, 4
      %v1816 = vrot.slane %v722, 5
      %v1817 = vsel %vm1743, %v1815, %v1816
      %v1818 = vrot.slane %v1816, 4
      %v1819 = vrot.slane %v744, 5
      %v1820 = vsel %vm1743, %v1818, %v1819
      %v1821 = vrot.slane %v1704, 5
      %v1822 = vrot.slane %v1821, 4
      %v1823 = vrot.slane %v724, 5
      %v1824 = vsel %vm1743, %v1822, %v1823
      %v1825 = vrot.slane %v1823, 4
      %v1826 = vrot.slane %v745, 5
      %v1827 = vsel %vm1743, %v1825, %v1826
      %v1828 = vrot.slane %v1705, 5
      %v1829 = vrot.slane %v1828, 4
      %v1830 = vrot.slane %v726, 5
      %v1831 = vsel %vm1743, %v1829, %v1830
      %v1832 = vrot.slane %v1830, 4
      %v1833 = vrot.slane %v746, 5
      %v1834 = vsel %vm1743, %v1832, %v1833
      %v1835 = vrot.slane %v1706, 5
      %v1836 = vrot.slane %v1835, 4
      %v1837 = vrot.slane %v728, 5
      %v1838 = vsel %vm1743, %v1836, %v1837
      %v1839 = vrot.slane %v1837, 4
      %v1840 = vrot.slane %v747, 5
      %v1841 = vsel %vm1743, %v1839, %v1840
      %v1842 = vrot.slane %v1707, 5
      %v1843 = vrot.slane %v1842, 4
      %v1844 = vrot.slane %v730, 5
      %v1845 = vsel %vm1743, %v1843, %v1844
      %v1846 = vrot.slane %v1844, 4
      %v1847 = vrot.slane %v748, 5
      %v1848 = vsel %vm1743, %v1846, %v1847
      %v1849 = vrot.slane %v1708, 5
      %v1850 = vrot.slane %v1849, 4
      %v1851 = vrot.slane %v732, 5
      %v1852 = vsel %vm1743, %v1850, %v1851
      %v1853 = vrot.slane %v1851, 4
      %v1854 = vrot.slane %v749, 5
      %v1855 = vsel %vm1743, %v1853, %v1854
      %s1856 = scalar_lea.vmem %s1, 8
      %v1857 = vld [vmem:[%s1856] sm:$0xf]
      %v1858 = vunpack.c.l.b16 %v1747
      %v1859 = vunpack.c.l.b16 %v1750
      %v1860 = vunpack.c.l.b16 %v1754
      %v1861 = vunpack.c.l.b16 %v1757
      %v1862 = vunpack.c.l.b16 %v1761
      %v1863 = vunpack.c.l.b16 %v1764
      %v1864 = vunpack.c.l.b16 %v1768
      %v1865 = vunpack.c.l.b16 %v1771
      %v1866 = vunpack.c.l.b16 %v1775
      %v1867 = vunpack.c.l.b16 %v1778
      %v1868 = vunpack.c.l.b16 %v1782
      %v1869 = vunpack.c.l.b16 %v1785
      %v1870 = vunpack.c.l.b16 %v1789
      %v1871 = vunpack.c.l.b16 %v1792
      %v1872 = vunpack.c.l.b16 %v1796
      %v1873 = vunpack.c.l.b16 %v1799
      %v1874 = vunpack.c.l.b16 %v1803
      %v1875 = vunpack.c.l.b16 %v1806
      %v1876 = vunpack.c.l.b16 %v1810
      %v1877 = vunpack.c.l.b16 %v1813
      %v1878 = vunpack.c.l.b16 %v1817
      %v1879 = vunpack.c.l.b16 %v1820
      %v1880 = vunpack.c.l.b16 %v1824
      %v1881 = vunpack.c.l.b16 %v1827
      %v1882 = vunpack.c.l.b16 %v1831
      %v1883 = vunpack.c.l.b16 %v1834
      %v1884 = vunpack.c.l.b16 %v1838
      %v1885 = vunpack.c.l.b16 %v1841
      %v1886 = vunpack.c.l.b16 %v1845
      %v1887 = vunpack.c.l.b16 %v1848
      %v1888 = vunpack.c.l.b16 %v1852
      %v1889 = vunpack.c.l.b16 %v1855
      %v1890 = vpack.c.b16 %v1859, %v1858
      %v1891 = vpack.c.b16 %v1861, %v1860
      %v1892 = vpack.c.b16 %v1863, %v1862
      %v1893 = vpack.c.b16 %v1865, %v1864
      %v1894 = vpack.c.b16 %v1867, %v1866
      %v1895 = vpack.c.b16 %v1869, %v1868
      %v1896 = vpack.c.b16 %v1871, %v1870
      %v1897 = vpack.c.b16 %v1873, %v1872
      %v1898 = vpack.c.b16 %v1875, %v1874
      %v1899 = vpack.c.b16 %v1877, %v1876
      %v1900 = vpack.c.b16 %v1879, %v1878
      %v1901 = vpack.c.b16 %v1881, %v1880
      %v1902 = vpack.c.b16 %v1883, %v1882
      %v1903 = vpack.c.b16 %v1885, %v1884
      %v1904 = vpack.c.b16 %v1887, %v1886
      %v1905 = vpack.c.b16 %v1889, %v1888
      %v1907 = vsel %vm1187, %v1890, 0
      %v1910 = vsel %vm1187, %v1891, 0
      %v1913 = vsel %vm1187, %v1892, 0
      %v1916 = vsel %vm1187, %v1893, 0
      %v1919 = vsel %vm1187, %v1894, 0
      %v1922 = vsel %vm1187, %v1895, 0
      %v1925 = vsel %vm1187, %v1896, 0
      %v1928 = vsel %vm1187, %v1897, 0
      %v1931 = vsel %vm1187, %v1898, 0
      %v1934 = vsel %vm1187, %v1899, 0
      %v1937 = vsel %vm1187, %v1900, 0
      %v1940 = vsel %vm1187, %v1901, 0
      %v1943 = vsel %vm1187, %v1902, 0
      %v1946 = vsel %vm1187, %v1903, 0
      %v1949 = vsel %vm1187, %v1904, 0
      %v1952 = vsel %vm1187, %v1905, 0
      %v1955 = vsel %vm1236, %v1857, 0
      %1957 = vmatprep.subr.bf16.mxu0 0
      %1958 = vmatpush1.bf16.msra.mxu0 %v1955
      %1959 = vmatprep.subr.bf16.mxu0 0
      %1960 = vmatpush1.bf16.msra.mxu0 0
      %1961 = vmatprep.subr.bf16.mxu0 0
      %1962 = vmatpush1.bf16.msra.mxu0 0
      %1963 = vmatprep.subr.bf16.mxu0 0
      %1964 = vmatpush1.bf16.msra.mxu0 0
      %1965 = vmatprep.subr.bf16.mxu0 0
      %1966 = vmatpush1.bf16.msra.mxu0 0
      %1967 = vmatprep.subr.bf16.mxu0 0
      %1968 = vmatpush1.bf16.msra.mxu0 0
      %1969 = vmatprep.subr.bf16.mxu0 0
      %1970 = vmatpush1.bf16.msra.mxu0 0
      %1971 = vmatprep.subr.bf16.mxu0 0
      %1972 = vmatpush1.bf16.msra.mxu0 0
      %1973 = vmatprep.subr.bf16.mxu0 0
      %1974 = vmatpush1.bf16.msra.mxu0 0
      %1975 = vmatprep.subr.bf16.mxu0 0
      %1976 = vmatpush1.bf16.msra.mxu0 0
      %1977 = vmatprep.subr.bf16.mxu0 0
      %1978 = vmatpush1.bf16.msra.mxu0 0
      %1979 = vmatprep.subr.bf16.mxu0 0
      %1980 = vmatpush1.bf16.msra.mxu0 0
      %1981 = vmatprep.subr.bf16.mxu0 0
      %1982 = vmatpush1.bf16.msra.mxu0 0
      %1983 = vmatprep.subr.bf16.mxu0 0
      %1984 = vmatpush1.bf16.msra.mxu0 0
      %1985 = vmatprep.subr.bf16.mxu0 0
      %1986 = vmatpush1.bf16.msra.mxu0 0
      %1987 = vmatprep.subr.bf16.mxu0 0
      %1988 = vmatpush1.bf16.msra.mxu0 0
      %1989 = vmatprep.mubr.bf16.mxu0 0
      %1990 = vmatmul.mubr.bf16.gmra.mrb[0].mxu0 %v1907
      %v1991 = vpop.f32.mrb[0].mxu0
      %v1992 = vadd.f32 0.0, %v1991
      %v1993 = vpop.f32.mrb[0].mxu0
      %v1994 = vpop.f32.mrb[0].mxu0
      %v1995 = vadd.f32 0.0, %v1994
      %v1996 = vpop.f32.mrb[0].mxu0
      %1997 = vmatprep.mubr.bf16.mxu0 0
      %1998 = vmatmul.mubr.bf16.gmra.mrb[0].mxu0 %v1910
      %v1999 = vpop.f32.mrb[0].mxu0
      %v2000 = vadd.f32 0.0, %v1999
      %v2001 = vpop.f32.mrb[0].mxu0
      %v2002 = vpop.f32.mrb[0].mxu0
      %v2003 = vadd.f32 0.0, %v2002
      %v2004 = vpop.f32.mrb[0].mxu0
      %2005 = vmatprep.mubr.bf16.mxu0 0
      %2006 = vmatmul.mubr.bf16.gmra.mrb[0].mxu0 %v1913
      %v2007 = vpop.f32.mrb[0].mxu0
      %v2008 = vadd.f32 0.0, %v2007
      %v2009 = vpop.f32.mrb[0].mxu0
      %v2010 = vpop.f32.mrb[0].mxu0
      %v2011 = vadd.f32 0.0, %v2010
      %v2012 = vpop.f32.mrb[0].mxu0
      %2013 = vmatprep.mubr.bf16.mxu0 0
      %2014 = vmatmul.mubr.bf16.gmra.mrb[0].mxu0 %v1916
      %v2015 = vpop.f32.mrb[0].mxu0
      %v2016 = vadd.f32 0.0, %v2015
      %v2017 = vpop.f32.mrb[0].mxu0
      %v2018 = vpop.f32.mrb[0].mxu0
      %v2019 = vadd.f32 0.0, %v2018
      %v2020 = vpop.f32.mrb[0].mxu0
      %2021 = vmatprep.mubr.bf16.mxu0 0
      %2022 = vmatmul.mubr.bf16.gmra.mrb[0].mxu0 %v1919
      %v2023 = vpop.f32.mrb[0].mxu0
      %v2024 = vadd.f32 0.0, %v2023
      %v2025 = vpop.f32.mrb[0].mxu0
      %v2026 = vpop.f32.mrb[0].mxu0
      %v2027 = vadd.f32 0.0, %v2026
      %v2028 = vpop.f32.mrb[0].mxu0
      %2029 = vmatprep.mubr.bf16.mxu0 0
      %2030 = vmatmul.mubr.bf16.gmra.mrb[0].mxu0 %v1922
      %v2031 = vpop.f32.mrb[0].mxu0
      %v2032 = vadd.f32 0.0, %v2031
      %v2033 = vpop.f32.mrb[0].mxu0
      %v2034 = vpop.f32.mrb[0].mxu0
      %v2035 = vadd.f32 0.0, %v2034
      %v2036 = vpop.f32.mrb[0].mxu0
      %2037 = vmatprep.mubr.bf16.mxu0 0
      %2038 = vmatmul.mubr.bf16.gmra.mrb[0].mxu0 %v1925
      %v2039 = vpop.f32.mrb[0].mxu0
      %v2040 = vadd.f32 0.0, %v2039
      %v2041 = vpop.f32.mrb[0].mxu0
      %v2042 = vpop.f32.mrb[0].mxu0
      %v2043 = vadd.f32 0.0, %v2042
      %v2044 = vpop.f32.mrb[0].mxu0
      %2045 = vmatprep.mubr.bf16.mxu0 0
      %2046 = vmatmul.mubr.bf16.gmra.mrb[0].mxu0 %v1928
      %v2047 = vpop.f32.mrb[0].mxu0
      %v2048 = vadd.f32 0.0, %v2047
      %v2049 = vpop.f32.mrb[0].mxu0
      %v2050 = vpop.f32.mrb[0].mxu0
      %v2051 = vadd.f32 0.0, %v2050
      %v2052 = vpop.f32.mrb[0].mxu0
      %2053 = vmatprep.mubr.bf16.mxu0 0
      %2054 = vmatmul.mubr.bf16.gmra.mrb[0].mxu0 %v1931
      %v2055 = vpop.f32.mrb[0].mxu0
      %v2056 = vadd.f32 0.0, %v2055
      %v2057 = vpop.f32.mrb[0].mxu0
      %v2058 = vpop.f32.mrb[0].mxu0
      %v2059 = vadd.f32 0.0, %v2058
      %v2060 = vpop.f32.mrb[0].mxu0
      %2061 = vmatprep.mubr.bf16.mxu0 0
      %2062 = vmatmul.mubr.bf16.gmra.mrb[0].mxu0 %v1934
      %v2063 = vpop.f32.mrb[0].mxu0
      %v2064 = vadd.f32 0.0, %v2063
      %v2065 = vpop.f32.mrb[0].mxu0
      %v2066 = vpop.f32.mrb[0].mxu0
      %v2067 = vadd.f32 0.0, %v2066
      %v2068 = vpop.f32.mrb[0].mxu0
      %2069 = vmatprep.mubr.bf16.mxu0 0
      %2070 = vmatmul.mubr.bf16.gmra.mrb[0].mxu0 %v1937
      %v2071 = vpop.f32.mrb[0].mxu0
      %v2072 = vadd.f32 0.0, %v2071
      %v2073 = vpop.f32.mrb[0].mxu0
      %v2074 = vpop.f32.mrb[0].mxu0
      %v2075 = vadd.f32 0.0, %v2074
      %v2076 = vpop.f32.mrb[0].mxu0
      %2077 = vmatprep.mubr.bf16.mxu0 0
      %2078 = vmatmul.mubr.bf16.gmra.mrb[0].mxu0 %v1940
      %v2079 = vpop.f32.mrb[0].mxu0
      %v2080 = vadd.f32 0.0, %v2079
      %v2081 = vpop.f32.mrb[0].mxu0
      %v2082 = vpop.f32.mrb[0].mxu0
      %v2083 = vadd.f32 0.0, %v2082
      %v2084 = vpop.f32.mrb[0].mxu0
      %2085 = vmatprep.mubr.bf16.mxu0 0
      %2086 = vmatmul.mubr.bf16.gmra.mrb[0].mxu0 %v1943
      %v2087 = vpop.f32.mrb[0].mxu0
      %v2088 = vadd.f32 0.0, %v2087
      %v2089 = vpop.f32.mrb[0].mxu0
      %v2090 = vpop.f32.mrb[0].mxu0
      %v2091 = vadd.f32 0.0, %v2090
      %v2092 = vpop.f32.mrb[0].mxu0
      %2093 = vmatprep.mubr.bf16.mxu0 0
      %2094 = vmatmul.mubr.bf16.gmra.mrb[0].mxu0 %v1946
      %v2095 = vpop.f32.mrb[0].mxu0
      %v2096 = vadd.f32 0.0, %v2095
      %v2097 = vpop.f32.mrb[0].mxu0
      %v2098 = vpop.f32.mrb[0].mxu0
      %v2099 = vadd.f32 0.0, %v2098
      %v2100 = vpop.f32.mrb[0].mxu0
      %2101 = vmatprep.mubr.bf16.mxu0 0
      %2102 = vmatmul.mubr.bf16.gmra.mrb[0].mxu0 %v1949
      %v2103 = vpop.f32.mrb[0].mxu0
      %v2104 = vadd.f32 0.0, %v2103
      %v2105 = vpop.f32.mrb[0].mxu0
      %v2106 = vpop.f32.mrb[0].mxu0
      %v2107 = vadd.f32 0.0, %v2106
      %v2108 = vpop.f32.mrb[0].mxu0
      %2109 = vmatprep.mubr.bf16.mxu0 0
      %2110 = vmatmul.mubr.bf16.gmra.mrb[0].mxu0 %v1952
      %v2111 = vpop.f32.mrb[0].mxu0
      %v2112 = vadd.f32 0.0, %v2111
      %v2113 = vpop.f32.mrb[0].mxu0
      %v2114 = vpop.f32.mrb[0].mxu0
      %v2115 = vadd.f32 0.0, %v2114
      %v2116 = vpop.f32.mrb[0].mxu0
      %2117 = vdwg.mxu0
      %v2118 = vadd.f32 %v1567, %v1992
      %v2119 = vadd.f32 %v1570, %v1995
      %v2120 = vadd.f32 %v1575, %v2000
      %v2121 = vadd.f32 %v1578, %v2003
      %v2122 = vadd.f32 %v1583, %v2008
      %v2123 = vadd.f32 %v1586, %v2011
      %v2124 = vadd.f32 %v1591, %v2016
      %v2125 = vadd.f32 %v1594, %v2019
      %v2126 = vadd.f32 %v1599, %v2024
      %v2127 = vadd.f32 %v1602, %v2027
      %v2128 = vadd.f32 %v1607, %v2032
      %v2129 = vadd.f32 %v1610, %v2035
      %v2130 = vadd.f32 %v1615, %v2040
      %v2131 = vadd.f32 %v1618, %v2043
      %v2132 = vadd.f32 %v1623, %v2048
      %v2133 = vadd.f32 %v1626, %v2051
      %v2134 = vadd.f32 %v1631, %v2056
      %v2135 = vadd.f32 %v1634, %v2059
      %v2136 = vadd.f32 %v1639, %v2064
      %v2137 = vadd.f32 %v1642, %v2067
      %v2138 = vadd.f32 %v1647, %v2072
      %v2139 = vadd.f32 %v1650, %v2075
      %v2140 = vadd.f32 %v1655, %v2080
      %v2141 = vadd.f32 %v1658, %v2083
      %v2142 = vadd.f32 %v1663, %v2088
      %v2143 = vadd.f32 %v1666, %v2091
      %v2144 = vadd.f32 %v1671, %v2096
      %v2145 = vadd.f32 %v1674, %v2099
      %v2146 = vadd.f32 %v1679, %v2104
      %v2147 = vadd.f32 %v1682, %v2107
      %v2148 = vadd.f32 %v1687, %v2112
      %v2149 = vadd.f32 %v1690, %v2115
      %v2150 = vld [vmem:[%s583] sm:$0xf]
      %v2151 = vld [vmem:[%s583 + $0x4] sm:$0xf]
      %v2152 = vld [vmem:[%s583 + $0xc] sm:$0xf]
      %v2153 = vld [vmem:[%s583 + $0x10] sm:$0xf]
      %v2154 = vld [vmem:[%s583 + $0x18] sm:$0xf]
      %v2155 = vld [vmem:[%s583 + $0x1c] sm:$0xf]
      %v2156 = vld [vmem:[%s583 + $0x24] sm:$0xf]
      %v2157 = vld [vmem:[%s583 + $0x28] sm:$0xf]
      %v2158 = vld [vmem:[%s583 + $0x30] sm:$0xf]
      %v2159 = vld [vmem:[%s583 + $0x34] sm:$0xf]
      %v2160 = vld [vmem:[%s583 + $0x3c] sm:$0xf]
      %v2161 = vld [vmem:[%s583 + $0x40] sm:$0xf]
      %v2162 = vld [vmem:[%s583 + $0x48] sm:$0xf]
      %v2163 = vld [vmem:[%s583 + $0x4c] sm:$0xf]
      %v2164 = vld [vmem:[%s583 + $0x54] sm:$0xf]
      %v2165 = vld [vmem:[%s583 + $0x58] sm:$0xf]
      %v2166 = vld [vmem:[%s583 + $0x60] sm:$0xf]
      %v2167 = vld [vmem:[%s583 + $0x64] sm:$0xf]
      %v2168 = vld [vmem:[%s583 + $0x6c] sm:$0xf]
      %v2169 = vld [vmem:[%s583 + $0x70] sm:$0xf]
      %v2170 = vld [vmem:[%s583 + $0x78] sm:$0xf]
      %v2171 = vld [vmem:[%s583 + $0x7c] sm:$0xf]
      %v2172 = vld [vmem:[%s583 + $0x84] sm:$0xf]
      %v2173 = vld [vmem:[%s583 + $0x88] sm:$0xf]
      %v2174 = vld [vmem:[%s583 + $0x90] sm:$0xf]
      %v2175 = vld [vmem:[%s583 + $0x94] sm:$0xf]
      %v2176 = vld [vmem:[%s583 + $0x9c] sm:$0xf]
      %v2177 = vld [vmem:[%s583 + $0xa0] sm:$0xf]
      %v2178 = vld [vmem:[%s583 + $0xa8] sm:$0xf]
      %v2179 = vld [vmem:[%s583 + $0xac] sm:$0xf]
      %v2180 = vld [vmem:[%s583 + $0xb4] sm:$0xf]
      %v2181 = vld [vmem:[%s583 + $0xb8] sm:$0xf]
      %s2182 = scalar_lea.vmem %s1, 12
      %v2183 = vld [vmem:[%s2182] sm:$0xf]
      %v2216 = vunpack.c.l.b16 %v2150
      %v2217 = vunpack.c.l.b16 %v2151
      %v2218 = vunpack.c.l.b16 %v2152
      %v2219 = vunpack.c.l.b16 %v2153
      %v2220 = vunpack.c.l.b16 %v2154
      %v2221 = vunpack.c.l.b16 %v2155
      %v2222 = vunpack.c.l.b16 %v2156
      %v2223 = vunpack.c.l.b16 %v2157
      %v2224 = vunpack.c.l.b16 %v2158
      %v2225 = vunpack.c.l.b16 %v2159
      %v2226 = vunpack.c.l.b16 %v2160
      %v2227 = vunpack.c.l.b16 %v2161
      %v2228 = vunpack.c.l.b16 %v2162
      %v2229 = vunpack.c.l.b16 %v2163
      %v2230 = vunpack.c.l.b16 %v2164
      %v2231 = vunpack.c.l.b16 %v2165
      %v2232 = vunpack.c.l.b16 %v2166
      %v2233 = vunpack.c.l.b16 %v2167
      %v2234 = vunpack.c.l.b16 %v2168
      %v2235 = vunpack.c.l.b16 %v2169
      %v2236 = vunpack.c.l.b16 %v2170
      %v2237 = vunpack.c.l.b16 %v2171
      %v2238 = vunpack.c.l.b16 %v2172
      %v2239 = vunpack.c.l.b16 %v2173
      %v2240 = vunpack.c.l.b16 %v2174
      %v2241 = vunpack.c.l.b16 %v2175
      %v2242 = vunpack.c.l.b16 %v2176
      %v2243 = vunpack.c.l.b16 %v2177
      %v2244 = vunpack.c.l.b16 %v2178
      %v2245 = vunpack.c.l.b16 %v2179
      %v2246 = vunpack.c.l.b16 %v2180
      %v2247 = vunpack.c.l.b16 %v2181
      %v2248 = vpack.c.b16 %v2217, %v2216
      %v2249 = vpack.c.b16 %v2219, %v2218
      %v2250 = vpack.c.b16 %v2221, %v2220
      %v2251 = vpack.c.b16 %v2223, %v2222
      %v2252 = vpack.c.b16 %v2225, %v2224
      %v2253 = vpack.c.b16 %v2227, %v2226
      %v2254 = vpack.c.b16 %v2229, %v2228
      %v2255 = vpack.c.b16 %v2231, %v2230
      %v2256 = vpack.c.b16 %v2233, %v2232
      %v2257 = vpack.c.b16 %v2235, %v2234
      %v2258 = vpack.c.b16 %v2237, %v2236
      %v2259 = vpack.c.b16 %v2239, %v2238
      %v2260 = vpack.c.b16 %v2241, %v2240
      %v2261 = vpack.c.b16 %v2243, %v2242
      %v2262 = vpack.c.b16 %v2245, %v2244
      %v2263 = vpack.c.b16 %v2247, %v2246
      %v2265 = vsel %vm1187, %v2248, 0
      %v2268 = vsel %vm1187, %v2249, 0
      %v2271 = vsel %vm1187, %v2250, 0
      %v2274 = vsel %vm1187, %v2251, 0
      %v2277 = vsel %vm1187, %v2252, 0
      %v2280 = vsel %vm1187, %v2253, 0
      %v2283 = vsel %vm1187, %v2254, 0
      %v2286 = vsel %vm1187, %v2255, 0
      %v2289 = vsel %vm1187, %v2256, 0
      %v2292 = vsel %vm1187, %v2257, 0
      %v2295 = vsel %vm1187, %v2258, 0
      %v2298 = vsel %vm1187, %v2259, 0
      %v2301 = vsel %vm1187, %v2260, 0
      %v2304 = vsel %vm1187, %v2261, 0
      %v2307 = vsel %vm1187, %v2262, 0
      %v2310 = vsel %vm1187, %v2263, 0
      %v2313 = vsel %vm1236, %v2183, 0
      %2315 = vmatprep.subr.bf16.mxu0 0
      %2316 = vmatpush1.bf16.msra.mxu0 %v2313
      %2317 = vmatprep.subr.bf16.mxu0 0
      %2318 = vmatpush1.bf16.msra.mxu0 0
      %2319 = vmatprep.subr.bf16.mxu0 0
      %2320 = vmatpush1.bf16.msra.mxu0 0
      %2321 = vmatprep.subr.bf16.mxu0 0
      %2322 = vmatpush1.bf16.msra.mxu0 0
      %2323 = vmatprep.subr.bf16.mxu0 0
      %2324 = vmatpush1.bf16.msra.mxu0 0
      %2325 = vmatprep.subr.bf16.mxu0 0
      %2326 = vmatpush1.bf16.msra.mxu0 0
      %2327 = vmatprep.subr.bf16.mxu0 0
      %2328 = vmatpush1.bf16.msra.mxu0 0
      %2329 = vmatprep.subr.bf16.mxu0 0
      %2330 = vmatpush1.bf16.msra.mxu0 0
      %2331 = vmatprep.subr.bf16.mxu0 0
      %2332 = vmatpush1.bf16.msra.mxu0 0
      %2333 = vmatprep.subr.bf16.mxu0 0
      %2334 = vmatpush1.bf16.msra.mxu0 0
      %2335 = vmatprep.subr.bf16.mxu0 0
      %2336 = vmatpush1.bf16.msra.mxu0 0
      %2337 = vmatprep.subr.bf16.mxu0 0
      %2338 = vmatpush1.bf16.msra.mxu0 0
      %2339 = vmatprep.subr.bf16.mxu0 0
      %2340 = vmatpush1.bf16.msra.mxu0 0
      %2341 = vmatprep.subr.bf16.mxu0 0
      %2342 = vmatpush1.bf16.msra.mxu0 0
      %2343 = vmatprep.subr.bf16.mxu0 0
      %2344 = vmatpush1.bf16.msra.mxu0 0
      %2345 = vmatprep.subr.bf16.mxu0 0
      %2346 = vmatpush1.bf16.msra.mxu0 0
      %2347 = vmatprep.mubr.bf16.mxu0 0
      %2348 = vmatmul.mubr.bf16.gmra.mrb[0].mxu0 %v2265
      %v2349 = vpop.f32.mrb[0].mxu0
      %v2350 = vadd.f32 0.0, %v2349
      %v2351 = vpop.f32.mrb[0].mxu0
      %v2352 = vpop.f32.mrb[0].mxu0
      %v2353 = vadd.f32 0.0, %v2352
      %v2354 = vpop.f32.mrb[0].mxu0
      %2355 = vmatprep.mubr.bf16.mxu0 0
      %2356 = vmatmul.mubr.bf16.gmra.mrb[0].mxu0 %v2268
      %v2357 = vpop.f32.mrb[0].mxu0
      %v2358 = vadd.f32 0.0, %v2357
      %v2359 = vpop.f32.mrb[0].mxu0
      %v2360 = vpop.f32.mrb[0].mxu0
      %v2361 = vadd.f32 0.0, %v2360
      %v2362 = vpop.f32.mrb[0].mxu0
      %2363 = vmatprep.mubr.bf16.mxu0 0
      %2364 = vmatmul.mubr.bf16.gmra.mrb[0].mxu0 %v2271
      %v2365 = vpop.f32.mrb[0].mxu0
      %v2366 = vadd.f32 0.0, %v2365
      %v2367 = vpop.f32.mrb[0].mxu0
      %v2368 = vpop.f32.mrb[0].mxu0
      %v2369 = vadd.f32 0.0, %v2368
      %v2370 = vpop.f32.mrb[0].mxu0
      %2371 = vmatprep.mubr.bf16.mxu0 0
      %2372 = vmatmul.mubr.bf16.gmra.mrb[0].mxu0 %v2274
      %v2373 = vpop.f32.mrb[0].mxu0
      %v2374 = vadd.f32 0.0, %v2373
      %v2375 = vpop.f32.mrb[0].mxu0
      %v2376 = vpop.f32.mrb[0].mxu0
      %v2377 = vadd.f32 0.0, %v2376
      %v2378 = vpop.f32.mrb[0].mxu0
      %2379 = vmatprep.mubr.bf16.mxu0 0
      %2380 = vmatmul.mubr.bf16.gmra.mrb[0].mxu0 %v2277
      %v2381 = vpop.f32.mrb[0].mxu0
      %v2382 = vadd.f32 0.0, %v2381
      %v2383 = vpop.f32.mrb[0].mxu0
      %v2384 = vpop.f32.mrb[0].mxu0
      %v2385 = vadd.f32 0.0, %v2384
      %v2386 = vpop.f32.mrb[0].mxu0
      %2387 = vmatprep.mubr.bf16.mxu0 0
      %2388 = vmatmul.mubr.bf16.gmra.mrb[0].mxu0 %v2280
      %v2389 = vpop.f32.mrb[0].mxu0
      %v2390 = vadd.f32 0.0, %v2389
      %v2391 = vpop.f32.mrb[0].mxu0
      %v2392 = vpop.f32.mrb[0].mxu0
      %v2393 = vadd.f32 0.0, %v2392
      %v2394 = vpop.f32.mrb[0].mxu0
      %2395 = vmatprep.mubr.bf16.mxu0 0
      %2396 = vmatmul.mubr.bf16.gmra.mrb[0].mxu0 %v2283
      %v2397 = vpop.f32.mrb[0].mxu0
      %v2398 = vadd.f32 0.0, %v2397
      %v2399 = vpop.f32.mrb[0].mxu0
      %v2400 = vpop.f32.mrb[0].mxu0
      %v2401 = vadd.f32 0.0, %v2400
      %v2402 = vpop.f32.mrb[0].mxu0
      %2403 = vmatprep.mubr.bf16.mxu0 0
      %2404 = vmatmul.mubr.bf16.gmra.mrb[0].mxu0 %v2286
      %v2405 = vpop.f32.mrb[0].mxu0
      %v2406 = vadd.f32 0.0, %v2405
      %v2407 = vpop.f32.mrb[0].mxu0
      %v2408 = vpop.f32.mrb[0].mxu0
      %v2409 = vadd.f32 0.0, %v2408
      %v2410 = vpop.f32.mrb[0].mxu0
      %2411 = vmatprep.mubr.bf16.mxu0 0
      %2412 = vmatmul.mubr.bf16.gmra.mrb[0].mxu0 %v2289
      %v2413 = vpop.f32.mrb[0].mxu0
      %v2414 = vadd.f32 0.0, %v2413
      %v2415 = vpop.f32.mrb[0].mxu0
      %v2416 = vpop.f32.mrb[0].mxu0
      %v2417 = vadd.f32 0.0, %v2416
      %v2418 = vpop.f32.mrb[0].mxu0
      %2419 = vmatprep.mubr.bf16.mxu0 0
      %2420 = vmatmul.mubr.bf16.gmra.mrb[0].mxu0 %v2292
      %v2421 = vpop.f32.mrb[0].mxu0
      %v2422 = vadd.f32 0.0, %v2421
      %v2423 = vpop.f32.mrb[0].mxu0
      %v2424 = vpop.f32.mrb[0].mxu0
      %v2425 = vadd.f32 0.0, %v2424
      %v2426 = vpop.f32.mrb[0].mxu0
      %2427 = vmatprep.mubr.bf16.mxu0 0
      %2428 = vmatmul.mubr.bf16.gmra.mrb[0].mxu0 %v2295
      %v2429 = vpop.f32.mrb[0].mxu0
      %v2430 = vadd.f32 0.0, %v2429
      %v2431 = vpop.f32.mrb[0].mxu0
      %v2432 = vpop.f32.mrb[0].mxu0
      %v2433 = vadd.f32 0.0, %v2432
      %v2434 = vpop.f32.mrb[0].mxu0
      %2435 = vmatprep.mubr.bf16.mxu0 0
      %2436 = vmatmul.mubr.bf16.gmra.mrb[0].mxu0 %v2298
      %v2437 = vpop.f32.mrb[0].mxu0
      %v2438 = vadd.f32 0.0, %v2437
      %v2439 = vpop.f32.mrb[0].mxu0
      %v2440 = vpop.f32.mrb[0].mxu0
      %v2441 = vadd.f32 0.0, %v2440
      %v2442 = vpop.f32.mrb[0].mxu0
      %2443 = vmatprep.mubr.bf16.mxu0 0
      %2444 = vmatmul.mubr.bf16.gmra.mrb[0].mxu0 %v2301
      %v2445 = vpop.f32.mrb[0].mxu0
      %v2446 = vadd.f32 0.0, %v2445
      %v2447 = vpop.f32.mrb[0].mxu0
      %v2448 = vpop.f32.mrb[0].mxu0
      %v2449 = vadd.f32 0.0, %v2448
      %v2450 = vpop.f32.mrb[0].mxu0
      %2451 = vmatprep.mubr.bf16.mxu0 0
      %2452 = vmatmul.mubr.bf16.gmra.mrb[0].mxu0 %v2304
      %v2453 = vpop.f32.mrb[0].mxu0
      %v2454 = vadd.f32 0.0, %v2453
      %v2455 = vpop.f32.mrb[0].mxu0
      %v2456 = vpop.f32.mrb[0].mxu0
      %v2457 = vadd.f32 0.0, %v2456
      %v2458 = vpop.f32.mrb[0].mxu0
      %2459 = vmatprep.mubr.bf16.mxu0 0
      %2460 = vmatmul.mubr.bf16.gmra.mrb[0].mxu0 %v2307
      %v2461 = vpop.f32.mrb[0].mxu0
      %v2462 = vadd.f32 0.0, %v2461
      %v2463 = vpop.f32.mrb[0].mxu0
      %v2464 = vpop.f32.mrb[0].mxu0
      %v2465 = vadd.f32 0.0, %v2464
      %v2466 = vpop.f32.mrb[0].mxu0
      %2467 = vmatprep.mubr.bf16.mxu0 0
      %2468 = vmatmul.mubr.bf16.gmra.mrb[0].mxu0 %v2310
      %v2469 = vpop.f32.mrb[0].mxu0
      %v2470 = vadd.f32 0.0, %v2469
      %v2471 = vpop.f32.mrb[0].mxu0
      %v2472 = vpop.f32.mrb[0].mxu0
      %v2473 = vadd.f32 0.0, %v2472
      %v2474 = vpop.f32.mrb[0].mxu0
      %2475 = vdwg.mxu0
      %v2476 = vadd.f32 %v2118, %v2350
      %v2477 = vadd.f32 %v2119, %v2353
      %v2478 = vadd.f32 %v2120, %v2358
      %v2479 = vadd.f32 %v2121, %v2361
      %v2480 = vadd.f32 %v2122, %v2366
      %v2481 = vadd.f32 %v2123, %v2369
      %v2482 = vadd.f32 %v2124, %v2374
      %v2483 = vadd.f32 %v2125, %v2377
      %v2484 = vadd.f32 %v2126, %v2382
      %v2485 = vadd.f32 %v2127, %v2385
      %v2486 = vadd.f32 %v2128, %v2390
      %v2487 = vadd.f32 %v2129, %v2393
      %v2488 = vadd.f32 %v2130, %v2398
      %v2489 = vadd.f32 %v2131, %v2401
      %v2490 = vadd.f32 %v2132, %v2406
      %v2491 = vadd.f32 %v2133, %v2409
      %v2492 = vadd.f32 %v2134, %v2414
      %v2493 = vadd.f32 %v2135, %v2417
      %v2494 = vadd.f32 %v2136, %v2422
      %v2495 = vadd.f32 %v2137, %v2425
      %v2496 = vadd.f32 %v2138, %v2430
      %v2497 = vadd.f32 %v2139, %v2433
      %v2498 = vadd.f32 %v2140, %v2438
      %v2499 = vadd.f32 %v2141, %v2441
      %v2500 = vadd.f32 %v2142, %v2446
      %v2501 = vadd.f32 %v2143, %v2449
      %v2502 = vadd.f32 %v2144, %v2454
      %v2503 = vadd.f32 %v2145, %v2457
      %v2504 = vadd.f32 %v2146, %v2462
      %v2505 = vadd.f32 %v2147, %v2465
      %v2506 = vadd.f32 %v2148, %v2470
      %v2507 = vadd.f32 %v2149, %v2473
      %v2508 = vld [vmem:[%s583] sm:$0xf]
      %v2509 = vld [vmem:[%s583 + $0x4] sm:$0xf]
      %v2510 = vld [vmem:[%s583 + $0x8] sm:$0x1]
      %v2511 = vld [vmem:[%s583 + $0xc] sm:$0xf]
      %v2512 = vld [vmem:[%s583 + $0x10] sm:$0xf]
      %v2513 = vld [vmem:[%s583 + $0x14] sm:$0x1]
      %v2514 = vld [vmem:[%s583 + $0x18] sm:$0xf]
      %v2515 = vld [vmem:[%s583 + $0x1c] sm:$0xf]
      %v2516 = vld [vmem:[%s583 + $0x20] sm:$0x1]
      %v2517 = vld [vmem:[%s583 + $0x24] sm:$0xf]
      %v2518 = vld [vmem:[%s583 + $0x28] sm:$0xf]
      %v2519 = vld [vmem:[%s583 + $0x2c] sm:$0x1]
      %v2520 = vld [vmem:[%s583 + $0x30] sm:$0xf]
      %v2521 = vld [vmem:[%s583 + $0x34] sm:$0xf]
      %v2522 = vld [vmem:[%s583 + $0x38] sm:$0x1]
      %v2523 = vld [vmem:[%s583 + $0x3c] sm:$0xf]
      %v2524 = vld [vmem:[%s583 + $0x40] sm:$0xf]
      %v2525 = vld [vmem:[%s583 + $0x44] sm:$0x1]
      %v2526 = vld [vmem:[%s583 + $0x48] sm:$0xf]
      %v2527 = vld [vmem:[%s583 + $0x4c] sm:$0xf]
      %v2528 = vld [vmem:[%s583 + $0x50] sm:$0x1]
      %v2529 = vld [vmem:[%s583 + $0x54] sm:$0xf]
      %v2530 = vld [vmem:[%s583 + $0x58] sm:$0xf]
      %v2531 = vld [vmem:[%s583 + $0x5c] sm:$0x1]
      %v2532 = vld [vmem:[%s583 + $0x60] sm:$0xf]
      %v2533 = vld [vmem:[%s583 + $0x64] sm:$0xf]
      %v2534 = vld [vmem:[%s583 + $0x68] sm:$0x1]
      %v2535 = vld [vmem:[%s583 + $0x6c] sm:$0xf]
      %v2536 = vld [vmem:[%s583 + $0x70] sm:$0xf]
      %v2537 = vld [vmem:[%s583 + $0x74] sm:$0x1]
      %v2538 = vld [vmem:[%s583 + $0x78] sm:$0xf]
      %v2539 = vld [vmem:[%s583 + $0x7c] sm:$0xf]
      %v2540 = vld [vmem:[%s583 + $0x80] sm:$0x1]
      %v2541 = vld [vmem:[%s583 + $0x84] sm:$0xf]
      %v2542 = vld [vmem:[%s583 + $0x88] sm:$0xf]
      %v2543 = vld [vmem:[%s583 + $0x8c] sm:$0x1]
      %v2544 = vld [vmem:[%s583 + $0x90] sm:$0xf]
      %v2545 = vld [vmem:[%s583 + $0x94] sm:$0xf]
      %v2546 = vld [vmem:[%s583 + $0x98] sm:$0x1]
      %v2547 = vld [vmem:[%s583 + $0x9c] sm:$0xf]
      %v2548 = vld [vmem:[%s583 + $0xa0] sm:$0xf]
      %v2549 = vld [vmem:[%s583 + $0xa4] sm:$0x1]
      %v2550 = vld [vmem:[%s583 + $0xa8] sm:$0xf]
      %v2551 = vld [vmem:[%s583 + $0xac] sm:$0xf]
      %v2552 = vld [vmem:[%s583 + $0xb0] sm:$0x1]
      %v2553 = vld [vmem:[%s583 + $0xb4] sm:$0xf]
      %v2554 = vld [vmem:[%s583 + $0xb8] sm:$0xf]
      %v2555 = vld [vmem:[%s583 + $0xbc] sm:$0x1]
      %v2557 = vshrl.u32 %v2508, 16
      %v2559 = vrot.slane %v2557, 4
      %v2560 = vshll.u32 %v2508, 16
      %v2562 = vrot.slane %v2560, 5
      %v2563 = vor.u32 %v2559, %v2562
      %v2564 = vrot.slane %v2563, 4
      %v2566 = vshll.u32 %v2509, 16
      %v2568 = vrot.slane %v2566, 5
      %v2569 = vsel %vm752, %v2564, %v2568
      %v2570 = vshrl.u32 %v2509, 16
      %v2572 = vrot.slane %v2570, 4
      %v2573 = vor.u32 %v2572, %v2568
      %v2574 = vrot.slane %v2573, 4
      %v2576 = vshll.u32 %v2510, 16
      %v2578 = vrot.slane %v2576, 5
      %v2579 = vsel %vm752, %v2574, %v2578
      %v2581 = vshrl.u32 %v2511, 16
      %v2583 = vrot.slane %v2581, 4
      %v2584 = vshll.u32 %v2511, 16
      %v2586 = vrot.slane %v2584, 5
      %v2587 = vor.u32 %v2583, %v2586
      %v2588 = vrot.slane %v2587, 4
      %v2590 = vshll.u32 %v2512, 16
      %v2592 = vrot.slane %v2590, 5
      %v2593 = vsel %vm752, %v2588, %v2592
      %v2594 = vshrl.u32 %v2512, 16
      %v2596 = vrot.slane %v2594, 4
      %v2597 = vor.u32 %v2596, %v2592
      %v2598 = vrot.slane %v2597, 4
      %v2600 = vshll.u32 %v2513, 16
      %v2602 = vrot.slane %v2600, 5
      %v2603 = vsel %vm752, %v2598, %v2602
      %v2605 = vshrl.u32 %v2514, 16
      %v2607 = vrot.slane %v2605, 4
      %v2608 = vshll.u32 %v2514, 16
      %v2610 = vrot.slane %v2608, 5
      %v2611 = vor.u32 %v2607, %v2610
      %v2612 = vrot.slane %v2611, 4
      %v2614 = vshll.u32 %v2515, 16
      %v2616 = vrot.slane %v2614, 5
      %v2617 = vsel %vm752, %v2612, %v2616
      %v2618 = vshrl.u32 %v2515, 16
      %v2620 = vrot.slane %v2618, 4
      %v2621 = vor.u32 %v2620, %v2616
      %v2622 = vrot.slane %v2621, 4
      %v2624 = vshll.u32 %v2516, 16
      %v2626 = vrot.slane %v2624, 5
      %v2627 = vsel %vm752, %v2622, %v2626
      %v2629 = vshrl.u32 %v2517, 16
      %v2631 = vrot.slane %v2629, 4
      %v2632 = vshll.u32 %v2517, 16
      %v2634 = vrot.slane %v2632, 5
      %v2635 = vor.u32 %v2631, %v2634
      %v2636 = vrot.slane %v2635, 4
      %v2638 = vshll.u32 %v2518, 16
      %v2640 = vrot.slane %v2638, 5
      %v2641 = vsel %vm752, %v2636, %v2640
      %v2642 = vshrl.u32 %v2518, 16
      %v2644 = vrot.slane %v2642, 4
      %v2645 = vor.u32 %v2644, %v2640
      %v2646 = vrot.slane %v2645, 4
      %v2648 = vshll.u32 %v2519, 16
      %v2650 = vrot.slane %v2648, 5
      %v2651 = vsel %vm752, %v2646, %v2650
      %v2653 = vshrl.u32 %v2520, 16
      %v2655 = vrot.slane %v2653, 4
      %v2656 = vshll.u32 %v2520, 16
      %v2658 = vrot.slane %v2656, 5
      %v2659 = vor.u32 %v2655, %v2658
      %v2660 = vrot.slane %v2659, 4
      %v2662 = vshll.u32 %v2521, 16
      %v2664 = vrot.slane %v2662, 5
      %v2665 = vsel %vm752, %v2660, %v2664
      %v2666 = vshrl.u32 %v2521, 16
      %v2668 = vrot.slane %v2666, 4
      %v2669 = vor.u32 %v2668, %v2664
      %v2670 = vrot.slane %v2669, 4
      %v2672 = vshll.u32 %v2522, 16
      %v2674 = vrot.slane %v2672, 5
      %v2675 = vsel %vm752, %v2670, %v2674
      %v2677 = vshrl.u32 %v2523, 16
      %v2679 = vrot.slane %v2677, 4
      %v2680 = vshll.u32 %v2523, 16
      %v2682 = vrot.slane %v2680, 5
      %v2683 = vor.u32 %v2679, %v2682
      %v2684 = vrot.slane %v2683, 4
      %v2686 = vshll.u32 %v2524, 16
      %v2688 = vrot.slane %v2686, 5
      %v2689 = vsel %vm752, %v2684, %v2688
      %v2690 = vshrl.u32 %v2524, 16
      %v2692 = vrot.slane %v2690, 4
      %v2693 = vor.u32 %v2692, %v2688
      %v2694 = vrot.slane %v2693, 4
      %v2696 = vshll.u32 %v2525, 16
      %v2698 = vrot.slane %v2696, 5
      %v2699 = vsel %vm752, %v2694, %v2698
      %v2701 = vshrl.u32 %v2526, 16
      %v2703 = vrot.slane %v2701, 4
      %v2704 = vshll.u32 %v2526, 16
      %v2706 = vrot.slane %v2704, 5
      %v2707 = vor.u32 %v2703, %v2706
      %v2708 = vrot.slane %v2707, 4
      %v2710 = vshll.u32 %v2527, 16
      %v2712 = vrot.slane %v2710, 5
      %v2713 = vsel %vm752, %v2708, %v2712
      %v2714 = vshrl.u32 %v2527, 16
      %v2716 = vrot.slane %v2714, 4
      %v2717 = vor.u32 %v2716, %v2712
      %v2718 = vrot.slane %v2717, 4
      %v2720 = vshll.u32 %v2528, 16
      %v2722 = vrot.slane %v2720, 5
      %v2723 = vsel %vm752, %v2718, %v2722
      %v2725 = vshrl.u32 %v2529, 16
      %v2727 = vrot.slane %v2725, 4
      %v2728 = vshll.u32 %v2529, 16
      %v2730 = vrot.slane %v2728, 5
      %v2731 = vor.u32 %v2727, %v2730
      %v2732 = vrot.slane %v2731, 4
      %v2734 = vshll.u32 %v2530, 16
      %v2736 = vrot.slane %v2734, 5
      %v2737 = vsel %vm752, %v2732, %v2736
      %v2738 = vshrl.u32 %v2530, 16
      %v2740 = vrot.slane %v2738, 4
      %v2741 = vor.u32 %v2740, %v2736
      %v2742 = vrot.slane %v2741, 4
      %v2744 = vshll.u32 %v2531, 16
      %v2746 = vrot.slane %v2744, 5
      %v2747 = vsel %vm752, %v2742, %v2746
      %v2749 = vshrl.u32 %v2532, 16
      %v2751 = vrot.slane %v2749, 4
      %v2752 = vshll.u32 %v2532, 16
      %v2754 = vrot.slane %v2752, 5
      %v2755 = vor.u32 %v2751, %v2754
      %v2756 = vrot.slane %v2755, 4
      %v2758 = vshll.u32 %v2533, 16
      %v2760 = vrot.slane %v2758, 5
      %v2761 = vsel %vm752, %v2756, %v2760
      %v2762 = vshrl.u32 %v2533, 16
      %v2764 = vrot.slane %v2762, 4
      %v2765 = vor.u32 %v2764, %v2760
      %v2766 = vrot.slane %v2765, 4
      %v2768 = vshll.u32 %v2534, 16
      %v2770 = vrot.slane %v2768, 5
      %v2771 = vsel %vm752, %v2766, %v2770
      %v2773 = vshrl.u32 %v2535, 16
      %v2775 = vrot.slane %v2773, 4
      %v2776 = vshll.u32 %v2535, 16
      %v2778 = vrot.slane %v2776, 5
      %v2779 = vor.u32 %v2775, %v2778
      %v2780 = vrot.slane %v2779, 4
      %v2782 = vshll.u32 %v2536, 16
      %v2784 = vrot.slane %v2782, 5
      %v2785 = vsel %vm752, %v2780, %v2784
      %v2786 = vshrl.u32 %v2536, 16
      %v2788 = vrot.slane %v2786, 4
      %v2789 = vor.u32 %v2788, %v2784
      %v2790 = vrot.slane %v2789, 4
      %v2792 = vshll.u32 %v2537, 16
      %v2794 = vrot.slane %v2792, 5
      %v2795 = vsel %vm752, %v2790, %v2794
      %v2797 = vshrl.u32 %v2538, 16
      %v2799 = vrot.slane %v2797, 4
      %v2800 = vshll.u32 %v2538, 16
      %v2802 = vrot.slane %v2800, 5
      %v2803 = vor.u32 %v2799, %v2802
      %v2804 = vrot.slane %v2803, 4
      %v2806 = vshll.u32 %v2539, 16
      %v2808 = vrot.slane %v2806, 5
      %v2809 = vsel %vm752, %v2804, %v2808
      %v2810 = vshrl.u32 %v2539, 16
      %v2812 = vrot.slane %v2810, 4
      %v2813 = vor.u32 %v2812, %v2808
      %v2814 = vrot.slane %v2813, 4
      %v2816 = vshll.u32 %v2540, 16
      %v2818 = vrot.slane %v2816, 5
      %v2819 = vsel %vm752, %v2814, %v2818
      %v2821 = vshrl.u32 %v2541, 16
      %v2823 = vrot.slane %v2821, 4
      %v2824 = vshll.u32 %v2541, 16
      %v2826 = vrot.slane %v2824, 5
      %v2827 = vor.u32 %v2823, %v2826
      %v2828 = vrot.slane %v2827, 4
      %v2830 = vshll.u32 %v2542, 16
      %v2832 = vrot.slane %v2830, 5
      %v2833 = vsel %vm752, %v2828, %v2832
      %v2834 = vshrl.u32 %v2542, 16
      %v2836 = vrot.slane %v2834, 4
      %v2837 = vor.u32 %v2836, %v2832
      %v2838 = vrot.slane %v2837, 4
      %v2840 = vshll.u32 %v2543, 16
      %v2842 = vrot.slane %v2840, 5
      %v2843 = vsel %vm752, %v2838, %v2842
      %v2845 = vshrl.u32 %v2544, 16
      %v2847 = vrot.slane %v2845, 4
      %v2848 = vshll.u32 %v2544, 16
      %v2850 = vrot.slane %v2848, 5
      %v2851 = vor.u32 %v2847, %v2850
      %v2852 = vrot.slane %v2851, 4
      %v2854 = vshll.u32 %v2545, 16
      %v2856 = vrot.slane %v2854, 5
      %v2857 = vsel %vm752, %v2852, %v2856
      %v2858 = vshrl.u32 %v2545, 16
      %v2860 = vrot.slane %v2858, 4
      %v2861 = vor.u32 %v2860, %v2856
      %v2862 = vrot.slane %v2861, 4
      %v2864 = vshll.u32 %v2546, 16
      %v2866 = vrot.slane %v2864, 5
      %v2867 = vsel %vm752, %v2862, %v2866
      %v2869 = vshrl.u32 %v2547, 16
      %v2871 = vrot.slane %v2869, 4
      %v2872 = vshll.u32 %v2547, 16
      %v2874 = vrot.slane %v2872, 5
      %v2875 = vor.u32 %v2871, %v2874
      %v2876 = vrot.slane %v2875, 4
      %v2878 = vshll.u32 %v2548, 16
      %v2880 = vrot.slane %v2878, 5
      %v2881 = vsel %vm752, %v2876, %v2880
      %v2882 = vshrl.u32 %v2548, 16
      %v2884 = vrot.slane %v2882, 4
      %v2885 = vor.u32 %v2884, %v2880
      %v2886 = vrot.slane %v2885, 4
      %v2888 = vshll.u32 %v2549, 16
      %v2890 = vrot.slane %v2888, 5
      %v2891 = vsel %vm752, %v2886, %v2890
      %v2893 = vshrl.u32 %v2550, 16
      %v2895 = vrot.slane %v2893, 4
      %v2896 = vshll.u32 %v2550, 16
      %v2898 = vrot.slane %v2896, 5
      %v2899 = vor.u32 %v2895, %v2898
      %v2900 = vrot.slane %v2899, 4
      %v2902 = vshll.u32 %v2551, 16
      %v2904 = vrot.slane %v2902, 5
      %v2905 = vsel %vm752, %v2900, %v2904
      %v2906 = vshrl.u32 %v2551, 16
      %v2908 = vrot.slane %v2906, 4
      %v2909 = vor.u32 %v2908, %v2904
      %v2910 = vrot.slane %v2909, 4
      %v2912 = vshll.u32 %v2552, 16
      %v2914 = vrot.slane %v2912, 5
      %v2915 = vsel %vm752, %v2910, %v2914
      %v2917 = vshrl.u32 %v2553, 16
      %v2919 = vrot.slane %v2917, 4
      %v2920 = vshll.u32 %v2553, 16
      %v2922 = vrot.slane %v2920, 5
      %v2923 = vor.u32 %v2919, %v2922
      %v2924 = vrot.slane %v2923, 4
      %v2926 = vshll.u32 %v2554, 16
      %v2928 = vrot.slane %v2926, 5
      %v2929 = vsel %vm752, %v2924, %v2928
      %v2930 = vshrl.u32 %v2554, 16
      %v2932 = vrot.slane %v2930, 4
      %v2933 = vor.u32 %v2932, %v2928
      %v2934 = vrot.slane %v2933, 4
      %v2936 = vshll.u32 %v2555, 16
      %v2938 = vrot.slane %v2936, 5
      %v2939 = vsel %vm752, %v2934, %v2938
      %s2940 = scalar_lea.vmem %s1, 16
      %v2941 = vld [vmem:[%s2940] sm:$0xf]
      %v2942 = vunpack.c.l.b16 %v2569
      %v2943 = vunpack.c.l.b16 %v2579
      %v2944 = vunpack.c.l.b16 %v2593
      %v2945 = vunpack.c.l.b16 %v2603
      %v2946 = vunpack.c.l.b16 %v2617
      %v2947 = vunpack.c.l.b16 %v2627
      %v2948 = vunpack.c.l.b16 %v2641
      %v2949 = vunpack.c.l.b16 %v2651
      %v2950 = vunpack.c.l.b16 %v2665
      %v2951 = vunpack.c.l.b16 %v2675
      %v2952 = vunpack.c.l.b16 %v2689
      %v2953 = vunpack.c.l.b16 %v2699
      %v2954 = vunpack.c.l.b16 %v2713
      %v2955 = vunpack.c.l.b16 %v2723
      %v2956 = vunpack.c.l.b16 %v2737
      %v2957 = vunpack.c.l.b16 %v2747
      %v2958 = vunpack.c.l.b16 %v2761
      %v2959 = vunpack.c.l.b16 %v2771
      %v2960 = vunpack.c.l.b16 %v2785
      %v2961 = vunpack.c.l.b16 %v2795
      %v2962 = vunpack.c.l.b16 %v2809
      %v2963 = vunpack.c.l.b16 %v2819
      %v2964 = vunpack.c.l.b16 %v2833
      %v2965 = vunpack.c.l.b16 %v2843
      %v2966 = vunpack.c.l.b16 %v2857
      %v2967 = vunpack.c.l.b16 %v2867
      %v2968 = vunpack.c.l.b16 %v2881
      %v2969 = vunpack.c.l.b16 %v2891
      %v2970 = vunpack.c.l.b16 %v2905
      %v2971 = vunpack.c.l.b16 %v2915
      %v2972 = vunpack.c.l.b16 %v2929
      %v2973 = vunpack.c.l.b16 %v2939
      %v2974 = vpack.c.b16 %v2943, %v2942
      %v2975 = vpack.c.b16 %v2945, %v2944
      %v2976 = vpack.c.b16 %v2947, %v2946
      %v2977 = vpack.c.b16 %v2949, %v2948
      %v2978 = vpack.c.b16 %v2951, %v2950
      %v2979 = vpack.c.b16 %v2953, %v2952
      %v2980 = vpack.c.b16 %v2955, %v2954
      %v2981 = vpack.c.b16 %v2957, %v2956
      %v2982 = vpack.c.b16 %v2959, %v2958
      %v2983 = vpack.c.b16 %v2961, %v2960
      %v2984 = vpack.c.b16 %v2963, %v2962
      %v2985 = vpack.c.b16 %v2965, %v2964
      %v2986 = vpack.c.b16 %v2967, %v2966
      %v2987 = vpack.c.b16 %v2969, %v2968
      %v2988 = vpack.c.b16 %v2971, %v2970
      %v2989 = vpack.c.b16 %v2973, %v2972
      %v2991 = vsel %vm1187, %v2974, 0
      %v2994 = vsel %vm1187, %v2975, 0
      %v2997 = vsel %vm1187, %v2976, 0
      %v3000 = vsel %vm1187, %v2977, 0
      %v3003 = vsel %vm1187, %v2978, 0
      %v3006 = vsel %vm1187, %v2979, 0
      %v3009 = vsel %vm1187, %v2980, 0
      %v3012 = vsel %vm1187, %v2981, 0
      %v3015 = vsel %vm1187, %v2982, 0
      %v3018 = vsel %vm1187, %v2983, 0
      %v3021 = vsel %vm1187, %v2984, 0
      %v3024 = vsel %vm1187, %v2985, 0
      %v3027 = vsel %vm1187, %v2986, 0
      %v3030 = vsel %vm1187, %v2987, 0
      %v3033 = vsel %vm1187, %v2988, 0
      %v3036 = vsel %vm1187, %v2989, 0
      %v3039 = vsel %vm1236, %v2941, 0
      %3041 = vmatprep.subr.bf16.mxu0 0
      %3042 = vmatpush1.bf16.msra.mxu0 %v3039
      %3043 = vmatprep.subr.bf16.mxu0 0
      %3044 = vmatpush1.bf16.msra.mxu0 0
      %3045 = vmatprep.subr.bf16.mxu0 0
      %3046 = vmatpush1.bf16.msra.mxu0 0
      %3047 = vmatprep.subr.bf16.mxu0 0
      %3048 = vmatpush1.bf16.msra.mxu0 0
      %3049 = vmatprep.subr.bf16.mxu0 0
      %3050 = vmatpush1.bf16.msra.mxu0 0
      %3051 = vmatprep.subr.bf16.mxu0 0
      %3052 = vmatpush1.bf16.msra.mxu0 0
      %3053 = vmatprep.subr.bf16.mxu0 0
      %3054 = vmatpush1.bf16.msra.mxu0 0
      %3055 = vmatprep.subr.bf16.mxu0 0
      %3056 = vmatpush1.bf16.msra.mxu0 0
      %3057 = vmatprep.subr.bf16.mxu0 0
      %3058 = vmatpush1.bf16.msra.mxu0 0
      %3059 = vmatprep.subr.bf16.mxu0 0
      %3060 = vmatpush1.bf16.msra.mxu0 0
      %3061 = vmatprep.subr.bf16.mxu0 0
      %3062 = vmatpush1.bf16.msra.mxu0 0
      %3063 = vmatprep.subr.bf16.mxu0 0
      %3064 = vmatpush1.bf16.msra.mxu0 0
      %3065 = vmatprep.subr.bf16.mxu0 0
      %3066 = vmatpush1.bf16.msra.mxu0 0
      %3067 = vmatprep.subr.bf16.mxu0 0
      %3068 = vmatpush1.bf16.msra.mxu0 0
      %3069 = vmatprep.subr.bf16.mxu0 0
      %3070 = vmatpush1.bf16.msra.mxu0 0
      %3071 = vmatprep.subr.bf16.mxu0 0
      %3072 = vmatpush1.bf16.msra.mxu0 0
      %3073 = vmatprep.mubr.bf16.mxu0 0
      %3074 = vmatmul.mubr.bf16.gmra.mrb[0].mxu0 %v2991
      %v3075 = vpop.f32.mrb[0].mxu0
      %v3076 = vadd.f32 0.0, %v3075
      %v3077 = vpop.f32.mrb[0].mxu0
      %v3078 = vpop.f32.mrb[0].mxu0
      %v3079 = vadd.f32 0.0, %v3078
      %v3080 = vpop.f32.mrb[0].mxu0
      %3081 = vmatprep.mubr.bf16.mxu0 0
      %3082 = vmatmul.mubr.bf16.gmra.mrb[0].mxu0 %v2994
      %v3083 = vpop.f32.mrb[0].mxu0
      %v3084 = vadd.f32 0.0, %v3083
      %v3085 = vpop.f32.mrb[0].mxu0
      %v3086 = vpop.f32.mrb[0].mxu0
      %v3087 = vadd.f32 0.0, %v3086
      %v3088 = vpop.f32.mrb[0].mxu0
      %3089 = vmatprep.mubr.bf16.mxu0 0
      %3090 = vmatmul.mubr.bf16.gmra.mrb[0].mxu0 %v2997
      %v3091 = vpop.f32.mrb[0].mxu0
      %v3092 = vadd.f32 0.0, %v3091
      %v3093 = vpop.f32.mrb[0].mxu0
      %v3094 = vpop.f32.mrb[0].mxu0
      %v3095 = vadd.f32 0.0, %v3094
      %v3096 = vpop.f32.mrb[0].mxu0
      %3097 = vmatprep.mubr.bf16.mxu0 0
      %3098 = vmatmul.mubr.bf16.gmra.mrb[0].mxu0 %v3000
      %v3099 = vpop.f32.mrb[0].mxu0
      %v3100 = vadd.f32 0.0, %v3099
      %v3101 = vpop.f32.mrb[0].mxu0
      %v3102 = vpop.f32.mrb[0].mxu0
      %v3103 = vadd.f32 0.0, %v3102
      %v3104 = vpop.f32.mrb[0].mxu0
      %3105 = vmatprep.mubr.bf16.mxu0 0
      %3106 = vmatmul.mubr.bf16.gmra.mrb[0].mxu0 %v3003
      %v3107 = vpop.f32.mrb[0].mxu0
      %v3108 = vadd.f32 0.0, %v3107
      %v3109 = vpop.f32.mrb[0].mxu0
      %v3110 = vpop.f32.mrb[0].mxu0
      %v3111 = vadd.f32 0.0, %v3110
      %v3112 = vpop.f32.mrb[0].mxu0
      %3113 = vmatprep.mubr.bf16.mxu0 0
      %3114 = vmatmul.mubr.bf16.gmra.mrb[0].mxu0 %v3006
      %v3115 = vpop.f32.mrb[0].mxu0
      %v3116 = vadd.f32 0.0, %v3115
      %v3117 = vpop.f32.mrb[0].mxu0
      %v3118 = vpop.f32.mrb[0].mxu0
      %v3119 = vadd.f32 0.0, %v3118
      %v3120 = vpop.f32.mrb[0].mxu0
      %3121 = vmatprep.mubr.bf16.mxu0 0
      %3122 = vmatmul.mubr.bf16.gmra.mrb[0].mxu0 %v3009
      %v3123 = vpop.f32.mrb[0].mxu0
      %v3124 = vadd.f32 0.0, %v3123
      %v3125 = vpop.f32.mrb[0].mxu0
      %v3126 = vpop.f32.mrb[0].mxu0
      %v3127 = vadd.f32 0.0, %v3126
      %v3128 = vpop.f32.mrb[0].mxu0
      %3129 = vmatprep.mubr.bf16.mxu0 0
      %3130 = vmatmul.mubr.bf16.gmra.mrb[0].mxu0 %v3012
      %v3131 = vpop.f32.mrb[0].mxu0
      %v3132 = vadd.f32 0.0, %v3131
      %v3133 = vpop.f32.mrb[0].mxu0
      %v3134 = vpop.f32.mrb[0].mxu0
      %v3135 = vadd.f32 0.0, %v3134
      %v3136 = vpop.f32.mrb[0].mxu0
      %3137 = vmatprep.mubr.bf16.mxu0 0
      %3138 = vmatmul.mubr.bf16.gmra.mrb[0].mxu0 %v3015
      %v3139 = vpop.f32.mrb[0].mxu0
      %v3140 = vadd.f32 0.0, %v3139
      %v3141 = vpop.f32.mrb[0].mxu0
      %v3142 = vpop.f32.mrb[0].mxu0
      %v3143 = vadd.f32 0.0, %v3142
      %v3144 = vpop.f32.mrb[0].mxu0
      %3145 = vmatprep.mubr.bf16.mxu0 0
      %3146 = vmatmul.mubr.bf16.gmra.mrb[0].mxu0 %v3018
      %v3147 = vpop.f32.mrb[0].mxu0
      %v3148 = vadd.f32 0.0, %v3147
      %v3149 = vpop.f32.mrb[0].mxu0
      %v3150 = vpop.f32.mrb[0].mxu0
      %v3151 = vadd.f32 0.0, %v3150
      %v3152 = vpop.f32.mrb[0].mxu0
      %3153 = vmatprep.mubr.bf16.mxu0 0
      %3154 = vmatmul.mubr.bf16.gmra.mrb[0].mxu0 %v3021
      %v3155 = vpop.f32.mrb[0].mxu0
      %v3156 = vadd.f32 0.0, %v3155
      %v3157 = vpop.f32.mrb[0].mxu0
      %v3158 = vpop.f32.mrb[0].mxu0
      %v3159 = vadd.f32 0.0, %v3158
      %v3160 = vpop.f32.mrb[0].mxu0
      %3161 = vmatprep.mubr.bf16.mxu0 0
      %3162 = vmatmul.mubr.bf16.gmra.mrb[0].mxu0 %v3024
      %v3163 = vpop.f32.mrb[0].mxu0
      %v3164 = vadd.f32 0.0, %v3163
      %v3165 = vpop.f32.mrb[0].mxu0
      %v3166 = vpop.f32.mrb[0].mxu0
      %v3167 = vadd.f32 0.0, %v3166
      %v3168 = vpop.f32.mrb[0].mxu0
      %3169 = vmatprep.mubr.bf16.mxu0 0
      %3170 = vmatmul.mubr.bf16.gmra.mrb[0].mxu0 %v3027
      %v3171 = vpop.f32.mrb[0].mxu0
      %v3172 = vadd.f32 0.0, %v3171
      %v3173 = vpop.f32.mrb[0].mxu0
      %v3174 = vpop.f32.mrb[0].mxu0
      %v3175 = vadd.f32 0.0, %v3174
      %v3176 = vpop.f32.mrb[0].mxu0
      %3177 = vmatprep.mubr.bf16.mxu0 0
      %3178 = vmatmul.mubr.bf16.gmra.mrb[0].mxu0 %v3030
      %v3179 = vpop.f32.mrb[0].mxu0
      %v3180 = vadd.f32 0.0, %v3179
      %v3181 = vpop.f32.mrb[0].mxu0
      %v3182 = vpop.f32.mrb[0].mxu0
      %v3183 = vadd.f32 0.0, %v3182
      %v3184 = vpop.f32.mrb[0].mxu0
      %3185 = vmatprep.mubr.bf16.mxu0 0
      %3186 = vmatmul.mubr.bf16.gmra.mrb[0].mxu0 %v3033
      %v3187 = vpop.f32.mrb[0].mxu0
      %v3188 = vadd.f32 0.0, %v3187
      %v3189 = vpop.f32.mrb[0].mxu0
      %v3190 = vpop.f32.mrb[0].mxu0
      %v3191 = vadd.f32 0.0, %v3190
      %v3192 = vpop.f32.mrb[0].mxu0
      %3193 = vmatprep.mubr.bf16.mxu0 0
      %3194 = vmatmul.mubr.bf16.gmra.mrb[0].mxu0 %v3036
      %v3195 = vpop.f32.mrb[0].mxu0
      %v3196 = vadd.f32 0.0, %v3195
      %v3197 = vpop.f32.mrb[0].mxu0
      %v3198 = vpop.f32.mrb[0].mxu0
      %v3199 = vadd.f32 0.0, %v3198
      %v3200 = vpop.f32.mrb[0].mxu0
      %3201 = vdwg.mxu0
      %v3202 = vadd.f32 %v2476, %v3076
      %v3203 = vadd.f32 %v2477, %v3079
      %v3204 = vadd.f32 %v2478, %v3084
      %v3205 = vadd.f32 %v2479, %v3087
      %v3206 = vadd.f32 %v2480, %v3092
      %v3207 = vadd.f32 %v2481, %v3095
      %v3208 = vadd.f32 %v2482, %v3100
      %v3209 = vadd.f32 %v2483, %v3103
      %v3210 = vadd.f32 %v2484, %v3108
      %v3211 = vadd.f32 %v2485, %v3111
      %v3212 = vadd.f32 %v2486, %v3116
      %v3213 = vadd.f32 %v2487, %v3119
      %v3214 = vadd.f32 %v2488, %v3124
      %v3215 = vadd.f32 %v2489, %v3127
      %v3216 = vadd.f32 %v2490, %v3132
      %v3217 = vadd.f32 %v2491, %v3135
      %v3218 = vadd.f32 %v2492, %v3140
      %v3219 = vadd.f32 %v2493, %v3143
      %v3220 = vadd.f32 %v2494, %v3148
      %v3221 = vadd.f32 %v2495, %v3151
      %v3222 = vadd.f32 %v2496, %v3156
      %v3223 = vadd.f32 %v2497, %v3159
      %v3224 = vadd.f32 %v2498, %v3164
      %v3225 = vadd.f32 %v2499, %v3167
      %v3226 = vadd.f32 %v2500, %v3172
      %v3227 = vadd.f32 %v2501, %v3175
      %v3228 = vadd.f32 %v2502, %v3180
      %v3229 = vadd.f32 %v2503, %v3183
      %v3230 = vadd.f32 %v2504, %v3188
      %v3231 = vadd.f32 %v2505, %v3191
      %v3232 = vadd.f32 %v2506, %v3196
      %v3233 = vadd.f32 %v2507, %v3199
      %v3234 = vld [vmem:[%s583] sm:$0xe]
      %v3235 = vld [vmem:[%s583 + $0xc] sm:$0xe]
      %v3236 = vld [vmem:[%s583 + $0x18] sm:$0xe]
      %v3237 = vld [vmem:[%s583 + $0x24] sm:$0xe]
      %v3238 = vld [vmem:[%s583 + $0x30] sm:$0xe]
      %v3239 = vld [vmem:[%s583 + $0x3c] sm:$0xe]
      %v3240 = vld [vmem:[%s583 + $0x48] sm:$0xe]
      %v3241 = vld [vmem:[%s583 + $0x54] sm:$0xe]
      %v3242 = vld [vmem:[%s583 + $0x60] sm:$0xe]
      %v3243 = vld [vmem:[%s583 + $0x6c] sm:$0xe]
      %v3244 = vld [vmem:[%s583 + $0x78] sm:$0xe]
      %v3245 = vld [vmem:[%s583 + $0x84] sm:$0xe]
      %v3246 = vld [vmem:[%s583 + $0x90] sm:$0xe]
      %v3247 = vld [vmem:[%s583 + $0x9c] sm:$0xe]
      %v3248 = vld [vmem:[%s583 + $0xa8] sm:$0xe]
      %v3249 = vld [vmem:[%s583 + $0xb4] sm:$0xe]
      %v3298 = vrot.slane %v3234, 5
      %v3299 = vrot.slane %v3298, 4
      %v3300 = vrot.slane %v2509, 5
      %v3301 = vsel %vm1743, %v3299, %v3300
      %v3302 = vrot.slane %v3300, 4
      %v3303 = vrot.slane %v2510, 5
      %v3304 = vsel %vm1743, %v3302, %v3303
      %v3305 = vrot.slane %v3235, 5
      %v3306 = vrot.slane %v3305, 4
      %v3307 = vrot.slane %v2512, 5
      %v3308 = vsel %vm1743, %v3306, %v3307
      %v3309 = vrot.slane %v3307, 4
      %v3310 = vrot.slane %v2513, 5
      %v3311 = vsel %vm1743, %v3309, %v3310
      %v3312 = vrot.slane %v3236, 5
      %v3313 = vrot.slane %v3312, 4
      %v3314 = vrot.slane %v2515, 5
      %v3315 = vsel %vm1743, %v3313, %v3314
      %v3316 = vrot.slane %v3314, 4
      %v3317 = vrot.slane %v2516, 5
      %v3318 = vsel %vm1743, %v3316, %v3317
      %v3319 = vrot.slane %v3237, 5
      %v3320 = vrot.slane %v3319, 4
      %v3321 = vrot.slane %v2518, 5
      %v3322 = vsel %vm1743, %v3320, %v3321
      %v3323 = vrot.slane %v3321, 4
      %v3324 = vrot.slane %v2519, 5
      %v3325 = vsel %vm1743, %v3323, %v3324
      %v3326 = vrot.slane %v3238, 5
      %v3327 = vrot.slane %v3326, 4
      %v3328 = vrot.slane %v2521, 5
      %v3329 = vsel %vm1743, %v3327, %v3328
      %v3330 = vrot.slane %v3328, 4
      %v3331 = vrot.slane %v2522, 5
      %v3332 = vsel %vm1743, %v3330, %v3331
      %v3333 = vrot.slane %v3239, 5
      %v3334 = vrot.slane %v3333, 4
      %v3335 = vrot.slane %v2524, 5
      %v3336 = vsel %vm1743, %v3334, %v3335
      %v3337 = vrot.slane %v3335, 4
      %v3338 = vrot.slane %v2525, 5
      %v3339 = vsel %vm1743, %v3337, %v3338
      %v3340 = vrot.slane %v3240, 5
      %v3341 = vrot.slane %v3340, 4
      %v3342 = vrot.slane %v2527, 5
      %v3343 = vsel %vm1743, %v3341, %v3342
      %v3344 = vrot.slane %v3342, 4
      %v3345 = vrot.slane %v2528, 5
      %v3346 = vsel %vm1743, %v3344, %v3345
      %v3347 = vrot.slane %v3241, 5
      %v3348 = vrot.slane %v3347, 4
      %v3349 = vrot.slane %v2530, 5
      %v3350 = vsel %vm1743, %v3348, %v3349
      %v3351 = vrot.slane %v3349, 4
      %v3352 = vrot.slane %v2531, 5
      %v3353 = vsel %vm1743, %v3351, %v3352
      %v3354 = vrot.slane %v3242, 5
      %v3355 = vrot.slane %v3354, 4
      %v3356 = vrot.slane %v2533, 5
      %v3357 = vsel %vm1743, %v3355, %v3356
      %v3358 = vrot.slane %v3356, 4
      %v3359 = vrot.slane %v2534, 5
      %v3360 = vsel %vm1743, %v3358, %v3359
      %v3361 = vrot.slane %v3243, 5
      %v3362 = vrot.slane %v3361, 4
      %v3363 = vrot.slane %v2536, 5
      %v3364 = vsel %vm1743, %v3362, %v3363
      %v3365 = vrot.slane %v3363, 4
      %v3366 = vrot.slane %v2537, 5
      %v3367 = vsel %vm1743, %v3365, %v3366
      %v3368 = vrot.slane %v3244, 5
      %v3369 = vrot.slane %v3368, 4
      %v3370 = vrot.slane %v2539, 5
      %v3371 = vsel %vm1743, %v3369, %v3370
      %v3372 = vrot.slane %v3370, 4
      %v3373 = vrot.slane %v2540, 5
      %v3374 = vsel %vm1743, %v3372, %v3373
      %v3375 = vrot.slane %v3245, 5
      %v3376 = vrot.slane %v3375, 4
      %v3377 = vrot.slane %v2542, 5
      %v3378 = vsel %vm1743, %v3376, %v3377
      %v3379 = vrot.slane %v3377, 4
      %v3380 = vrot.slane %v2543, 5
      %v3381 = vsel %vm1743, %v3379, %v3380
      %v3382 = vrot.slane %v3246, 5
      %v3383 = vrot.slane %v3382, 4
      %v3384 = vrot.slane %v2545, 5
      %v3385 = vsel %vm1743, %v3383, %v3384
      %v3386 = vrot.slane %v3384, 4
      %v3387 = vrot.slane %v2546, 5
      %v3388 = vsel %vm1743, %v3386, %v3387
      %v3389 = vrot.slane %v3247, 5
      %v3390 = vrot.slane %v3389, 4
      %v3391 = vrot.slane %v2548, 5
      %v3392 = vsel %vm1743, %v3390, %v3391
      %v3393 = vrot.slane %v3391, 4
      %v3394 = vrot.slane %v2549, 5
      %v3395 = vsel %vm1743, %v3393, %v3394
      %v3396 = vrot.slane %v3248, 5
      %v3397 = vrot.slane %v3396, 4
      %v3398 = vrot.slane %v2551, 5
      %v3399 = vsel %vm1743, %v3397, %v3398
      %v3400 = vrot.slane %v3398, 4
      %v3401 = vrot.slane %v2552, 5
      %v3402 = vsel %vm1743, %v3400, %v3401
      %v3403 = vrot.slane %v3249, 5
      %v3404 = vrot.slane %v3403, 4
      %v3405 = vrot.slane %v2554, 5
      %v3406 = vsel %vm1743, %v3404, %v3405
      %v3407 = vrot.slane %v3405, 4
      %v3408 = vrot.slane %v2555, 5
      %v3409 = vsel %vm1743, %v3407, %v3408
      %s3410 = scalar_lea.vmem %s1, 20
      %v3411 = vld [vmem:[%s3410] sm:$0xf]
      %v3412 = vunpack.c.l.b16 %v3301
      %v3413 = vunpack.c.l.b16 %v3304
      %v3414 = vunpack.c.l.b16 %v3308
      %v3415 = vunpack.c.l.b16 %v3311
      %v3416 = vunpack.c.l.b16 %v3315
      %v3417 = vunpack.c.l.b16 %v3318
      %v3418 = vunpack.c.l.b16 %v3322
      %v3419 = vunpack.c.l.b16 %v3325
      %v3420 = vunpack.c.l.b16 %v3329
      %v3421 = vunpack.c.l.b16 %v3332
      %v3422 = vunpack.c.l.b16 %v3336
      %v3423 = vunpack.c.l.b16 %v3339
      %v3424 = vunpack.c.l.b16 %v3343
      %v3425 = vunpack.c.l.b16 %v3346
      %v3426 = vunpack.c.l.b16 %v3350
      %v3427 = vunpack.c.l.b16 %v3353
      %v3428 = vunpack.c.l.b16 %v3357
      %v3429 = vunpack.c.l.b16 %v3360
      %v3430 = vunpack.c.l.b16 %v3364
      %v3431 = vunpack.c.l.b16 %v3367
      %v3432 = vunpack.c.l.b16 %v3371
      %v3433 = vunpack.c.l.b16 %v3374
      %v3434 = vunpack.c.l.b16 %v3378
      %v3435 = vunpack.c.l.b16 %v3381
      %v3436 = vunpack.c.l.b16 %v3385
      %v3437 = vunpack.c.l.b16 %v3388
      %v3438 = vunpack.c.l.b16 %v3392
      %v3439 = vunpack.c.l.b16 %v3395
      %v3440 = vunpack.c.l.b16 %v3399
      %v3441 = vunpack.c.l.b16 %v3402
      %v3442 = vunpack.c.l.b16 %v3406
      %v3443 = vunpack.c.l.b16 %v3409
      %v3444 = vpack.c.b16 %v3413, %v3412
      %v3445 = vpack.c.b16 %v3415, %v3414
      %v3446 = vpack.c.b16 %v3417, %v3416
      %v3447 = vpack.c.b16 %v3419, %v3418
      %v3448 = vpack.c.b16 %v3421, %v3420
      %v3449 = vpack.c.b16 %v3423, %v3422
      %v3450 = vpack.c.b16 %v3425, %v3424
      %v3451 = vpack.c.b16 %v3427, %v3426
      %v3452 = vpack.c.b16 %v3429, %v3428
      %v3453 = vpack.c.b16 %v3431, %v3430
      %v3454 = vpack.c.b16 %v3433, %v3432
      %v3455 = vpack.c.b16 %v3435, %v3434
      %v3456 = vpack.c.b16 %v3437, %v3436
      %v3457 = vpack.c.b16 %v3439, %v3438
      %v3458 = vpack.c.b16 %v3441, %v3440
      %v3459 = vpack.c.b16 %v3443, %v3442
      %v3461 = vsel %vm1187, %v3444, 0
      %v3464 = vsel %vm1187, %v3445, 0
      %v3467 = vsel %vm1187, %v3446, 0
      %v3470 = vsel %vm1187, %v3447, 0
      %v3473 = vsel %vm1187, %v3448, 0
      %v3476 = vsel %vm1187, %v3449, 0
      %v3479 = vsel %vm1187, %v3450, 0
      %v3482 = vsel %vm1187, %v3451, 0
      %v3485 = vsel %vm1187, %v3452, 0
      %v3488 = vsel %vm1187, %v3453, 0
      %v3491 = vsel %vm1187, %v3454, 0
      %v3494 = vsel %vm1187, %v3455, 0
      %v3497 = vsel %vm1187, %v3456, 0
      %v3500 = vsel %vm1187, %v3457, 0
      %v3503 = vsel %vm1187, %v3458, 0
      %v3506 = vsel %vm1187, %v3459, 0
      %v3509 = vsel %vm1236, %v3411, 0
      %3511 = vmatprep.subr.bf16.mxu0 0
      %3512 = vmatpush1.bf16.msra.mxu0 %v3509
      %3513 = vmatprep.subr.bf16.mxu0 0
      %3514 = vmatpush1.bf16.msra.mxu0 0
      %3515 = vmatprep.subr.bf16.mxu0 0
      %3516 = vmatpush1.bf16.msra.mxu0 0
      %3517 = vmatprep.subr.bf16.mxu0 0
      %3518 = vmatpush1.bf16.msra.mxu0 0
      %3519 = vmatprep.subr.bf16.mxu0 0
      %3520 = vmatpush1.bf16.msra.mxu0 0
      %3521 = vmatprep.subr.bf16.mxu0 0
      %3522 = vmatpush1.bf16.msra.mxu0 0
      %3523 = vmatprep.subr.bf16.mxu0 0
      %3524 = vmatpush1.bf16.msra.mxu0 0
      %3525 = vmatprep.subr.bf16.mxu0 0
      %3526 = vmatpush1.bf16.msra.mxu0 0
      %3527 = vmatprep.subr.bf16.mxu0 0
      %3528 = vmatpush1.bf16.msra.mxu0 0
      %3529 = vmatprep.subr.bf16.mxu0 0
      %3530 = vmatpush1.bf16.msra.mxu0 0
      %3531 = vmatprep.subr.bf16.mxu0 0
      %3532 = vmatpush1.bf16.msra.mxu0 0
      %3533 = vmatprep.subr.bf16.mxu0 0
      %3534 = vmatpush1.bf16.msra.mxu0 0
      %3535 = vmatprep.subr.bf16.mxu0 0
      %3536 = vmatpush1.bf16.msra.mxu0 0
      %3537 = vmatprep.subr.bf16.mxu0 0
      %3538 = vmatpush1.bf16.msra.mxu0 0
      %3539 = vmatprep.subr.bf16.mxu0 0
      %3540 = vmatpush1.bf16.msra.mxu0 0
      %3541 = vmatprep.subr.bf16.mxu0 0
      %3542 = vmatpush1.bf16.msra.mxu0 0
      %3543 = vmatprep.mubr.bf16.mxu0 0
      %3544 = vmatmul.mubr.bf16.gmra.mrb[0].mxu0 %v3461
      %v3545 = vpop.f32.mrb[0].mxu0
      %v3546 = vadd.f32 0.0, %v3545
      %v3547 = vpop.f32.mrb[0].mxu0
      %v3548 = vpop.f32.mrb[0].mxu0
      %v3549 = vadd.f32 0.0, %v3548
      %v3550 = vpop.f32.mrb[0].mxu0
      %3551 = vmatprep.mubr.bf16.mxu0 0
      %3552 = vmatmul.mubr.bf16.gmra.mrb[0].mxu0 %v3464
      %v3553 = vpop.f32.mrb[0].mxu0
      %v3554 = vadd.f32 0.0, %v3553
      %v3555 = vpop.f32.mrb[0].mxu0
      %v3556 = vpop.f32.mrb[0].mxu0
      %v3557 = vadd.f32 0.0, %v3556
      %v3558 = vpop.f32.mrb[0].mxu0
      %3559 = vmatprep.mubr.bf16.mxu0 0
      %3560 = vmatmul.mubr.bf16.gmra.mrb[0].mxu0 %v3467
      %v3561 = vpop.f32.mrb[0].mxu0
      %v3562 = vadd.f32 0.0, %v3561
      %v3563 = vpop.f32.mrb[0].mxu0
      %v3564 = vpop.f32.mrb[0].mxu0
      %v3565 = vadd.f32 0.0, %v3564
      %v3566 = vpop.f32.mrb[0].mxu0
      %3567 = vmatprep.mubr.bf16.mxu0 0
      %3568 = vmatmul.mubr.bf16.gmra.mrb[0].mxu0 %v3470
      %v3569 = vpop.f32.mrb[0].mxu0
      %v3570 = vadd.f32 0.0, %v3569
      %v3571 = vpop.f32.mrb[0].mxu0
      %v3572 = vpop.f32.mrb[0].mxu0
      %v3573 = vadd.f32 0.0, %v3572
      %v3574 = vpop.f32.mrb[0].mxu0
      %3575 = vmatprep.mubr.bf16.mxu0 0
      %3576 = vmatmul.mubr.bf16.gmra.mrb[0].mxu0 %v3473
      %v3577 = vpop.f32.mrb[0].mxu0
      %v3578 = vadd.f32 0.0, %v3577
      %v3579 = vpop.f32.mrb[0].mxu0
      %v3580 = vpop.f32.mrb[0].mxu0
      %v3581 = vadd.f32 0.0, %v3580
      %v3582 = vpop.f32.mrb[0].mxu0
      %3583 = vmatprep.mubr.bf16.mxu0 0
      %3584 = vmatmul.mubr.bf16.gmra.mrb[0].mxu0 %v3476
      %v3585 = vpop.f32.mrb[0].mxu0
      %v3586 = vadd.f32 0.0, %v3585
      %v3587 = vpop.f32.mrb[0].mxu0
      %v3588 = vpop.f32.mrb[0].mxu0
      %v3589 = vadd.f32 0.0, %v3588
      %v3590 = vpop.f32.mrb[0].mxu0
      %3591 = vmatprep.mubr.bf16.mxu0 0
      %3592 = vmatmul.mubr.bf16.gmra.mrb[0].mxu0 %v3479
      %v3593 = vpop.f32.mrb[0].mxu0
      %v3594 = vadd.f32 0.0, %v3593
      %v3595 = vpop.f32.mrb[0].mxu0
      %v3596 = vpop.f32.mrb[0].mxu0
      %v3597 = vadd.f32 0.0, %v3596
      %v3598 = vpop.f32.mrb[0].mxu0
      %3599 = vmatprep.mubr.bf16.mxu0 0
      %3600 = vmatmul.mubr.bf16.gmra.mrb[0].mxu0 %v3482
      %v3601 = vpop.f32.mrb[0].mxu0
      %v3602 = vadd.f32 0.0, %v3601
      %v3603 = vpop.f32.mrb[0].mxu0
      %v3604 = vpop.f32.mrb[0].mxu0
      %v3605 = vadd.f32 0.0, %v3604
      %v3606 = vpop.f32.mrb[0].mxu0
      %3607 = vmatprep.mubr.bf16.mxu0 0
      %3608 = vmatmul.mubr.bf16.gmra.mrb[0].mxu0 %v3485
      %v3609 = vpop.f32.mrb[0].mxu0
      %v3610 = vadd.f32 0.0, %v3609
      %v3611 = vpop.f32.mrb[0].mxu0
      %v3612 = vpop.f32.mrb[0].mxu0
      %v3613 = vadd.f32 0.0, %v3612
      %v3614 = vpop.f32.mrb[0].mxu0
      %3615 = vmatprep.mubr.bf16.mxu0 0
      %3616 = vmatmul.mubr.bf16.gmra.mrb[0].mxu0 %v3488
      %v3617 = vpop.f32.mrb[0].mxu0
      %v3618 = vadd.f32 0.0, %v3617
      %v3619 = vpop.f32.mrb[0].mxu0
      %v3620 = vpop.f32.mrb[0].mxu0
      %v3621 = vadd.f32 0.0, %v3620
      %v3622 = vpop.f32.mrb[0].mxu0
      %3623 = vmatprep.mubr.bf16.mxu0 0
      %3624 = vmatmul.mubr.bf16.gmra.mrb[0].mxu0 %v3491
      %v3625 = vpop.f32.mrb[0].mxu0
      %v3626 = vadd.f32 0.0, %v3625
      %v3627 = vpop.f32.mrb[0].mxu0
      %v3628 = vpop.f32.mrb[0].mxu0
      %v3629 = vadd.f32 0.0, %v3628
      %v3630 = vpop.f32.mrb[0].mxu0
      %3631 = vmatprep.mubr.bf16.mxu0 0
      %3632 = vmatmul.mubr.bf16.gmra.mrb[0].mxu0 %v3494
      %v3633 = vpop.f32.mrb[0].mxu0
      %v3634 = vadd.f32 0.0, %v3633
      %v3635 = vpop.f32.mrb[0].mxu0
      %v3636 = vpop.f32.mrb[0].mxu0
      %v3637 = vadd.f32 0.0, %v3636
      %v3638 = vpop.f32.mrb[0].mxu0
      %3639 = vmatprep.mubr.bf16.mxu0 0
      %3640 = vmatmul.mubr.bf16.gmra.mrb[0].mxu0 %v3497
      %v3641 = vpop.f32.mrb[0].mxu0
      %v3642 = vadd.f32 0.0, %v3641
      %v3643 = vpop.f32.mrb[0].mxu0
      %v3644 = vpop.f32.mrb[0].mxu0
      %v3645 = vadd.f32 0.0, %v3644
      %v3646 = vpop.f32.mrb[0].mxu0
      %3647 = vmatprep.mubr.bf16.mxu0 0
      %3648 = vmatmul.mubr.bf16.gmra.mrb[0].mxu0 %v3500
      %v3649 = vpop.f32.mrb[0].mxu0
      %v3650 = vadd.f32 0.0, %v3649
      %v3651 = vpop.f32.mrb[0].mxu0
      %v3652 = vpop.f32.mrb[0].mxu0
      %v3653 = vadd.f32 0.0, %v3652
      %v3654 = vpop.f32.mrb[0].mxu0
      %3655 = vmatprep.mubr.bf16.mxu0 0
      %3656 = vmatmul.mubr.bf16.gmra.mrb[0].mxu0 %v3503
      %v3657 = vpop.f32.mrb[0].mxu0
      %v3658 = vadd.f32 0.0, %v3657
      %v3659 = vpop.f32.mrb[0].mxu0
      %v3660 = vpop.f32.mrb[0].mxu0
      %v3661 = vadd.f32 0.0, %v3660
      %v3662 = vpop.f32.mrb[0].mxu0
      %3663 = vmatprep.mubr.bf16.mxu0 0
      %3664 = vmatmul.mubr.bf16.gmra.mrb[0].mxu0 %v3506
      %v3665 = vpop.f32.mrb[0].mxu0
      %v3666 = vadd.f32 0.0, %v3665
      %v3667 = vpop.f32.mrb[0].mxu0
      %v3668 = vpop.f32.mrb[0].mxu0
      %v3669 = vadd.f32 0.0, %v3668
      %v3670 = vpop.f32.mrb[0].mxu0
      %3671 = vdwg.mxu0
      %v3672 = vadd.f32 %v3202, %v3546
      %v3673 = vadd.f32 %v3203, %v3549
      %v3674 = vadd.f32 %v3204, %v3554
      %v3675 = vadd.f32 %v3205, %v3557
      %v3676 = vadd.f32 %v3206, %v3562
      %v3677 = vadd.f32 %v3207, %v3565
      %v3678 = vadd.f32 %v3208, %v3570
      %v3679 = vadd.f32 %v3209, %v3573
      %v3680 = vadd.f32 %v3210, %v3578
      %v3681 = vadd.f32 %v3211, %v3581
      %v3682 = vadd.f32 %v3212, %v3586
      %v3683 = vadd.f32 %v3213, %v3589
      %v3684 = vadd.f32 %v3214, %v3594
      %v3685 = vadd.f32 %v3215, %v3597
      %v3686 = vadd.f32 %v3216, %v3602
      %v3687 = vadd.f32 %v3217, %v3605
      %v3688 = vadd.f32 %v3218, %v3610
      %v3689 = vadd.f32 %v3219, %v3613
      %v3690 = vadd.f32 %v3220, %v3618
      %v3691 = vadd.f32 %v3221, %v3621
      %v3692 = vadd.f32 %v3222, %v3626
      %v3693 = vadd.f32 %v3223, %v3629
      %v3694 = vadd.f32 %v3224, %v3634
      %v3695 = vadd.f32 %v3225, %v3637
      %v3696 = vadd.f32 %v3226, %v3642
      %v3697 = vadd.f32 %v3227, %v3645
      %v3698 = vadd.f32 %v3228, %v3650
      %v3699 = vadd.f32 %v3229, %v3653
      %v3700 = vadd.f32 %v3230, %v3658
      %v3701 = vadd.f32 %v3231, %v3661
      %v3702 = vadd.f32 %v3232, %v3666
      %v3703 = vadd.f32 %v3233, %v3669
      %s3704 = scalar_lea.vmem [#allocation2], 24
      %v3705 = vld [vmem:[%s3704] sm:$0xf]
      %v3706 = vld [vmem:[%s3704 + $0x4] sm:$0xf]
      %v3707 = vld [vmem:[%s3704 + $0xc] sm:$0xf]
      %v3708 = vld [vmem:[%s3704 + $0x10] sm:$0xf]
      %v3709 = vld [vmem:[%s3704 + $0x18] sm:$0xf]
      %v3710 = vld [vmem:[%s3704 + $0x1c] sm:$0xf]
      %v3711 = vld [vmem:[%s3704 + $0x24] sm:$0xf]
      %v3712 = vld [vmem:[%s3704 + $0x28] sm:$0xf]
      %v3713 = vld [vmem:[%s3704 + $0x30] sm:$0xf]
      %v3714 = vld [vmem:[%s3704 + $0x34] sm:$0xf]
      %v3715 = vld [vmem:[%s3704 + $0x3c] sm:$0xf]
      %v3716 = vld [vmem:[%s3704 + $0x40] sm:$0xf]
      %v3717 = vld [vmem:[%s3704 + $0x48] sm:$0xf]
      %v3718 = vld [vmem:[%s3704 + $0x4c] sm:$0xf]
      %v3719 = vld [vmem:[%s3704 + $0x54] sm:$0xf]
      %v3720 = vld [vmem:[%s3704 + $0x58] sm:$0xf]
      %v3721 = vld [vmem:[%s3704 + $0x60] sm:$0xf]
      %v3722 = vld [vmem:[%s3704 + $0x64] sm:$0xf]
      %v3723 = vld [vmem:[%s3704 + $0x6c] sm:$0xf]
      %v3724 = vld [vmem:[%s3704 + $0x70] sm:$0xf]
      %v3725 = vld [vmem:[%s3704 + $0x78] sm:$0xf]
      %v3726 = vld [vmem:[%s3704 + $0x7c] sm:$0xf]
      %v3727 = vld [vmem:[%s3704 + $0x84] sm:$0xf]
      %v3728 = vld [vmem:[%s3704 + $0x88] sm:$0xf]
      %v3729 = vld [vmem:[%s3704 + $0x90] sm:$0xf]
      %v3730 = vld [vmem:[%s3704 + $0x94] sm:$0xf]
      %v3731 = vld [vmem:[%s3704 + $0x9c] sm:$0xf]
      %v3732 = vld [vmem:[%s3704 + $0xa0] sm:$0xf]
      %v3733 = vld [vmem:[%s3704 + $0xa8] sm:$0xf]
      %v3734 = vld [vmem:[%s3704 + $0xac] sm:$0xf]
      %v3735 = vld [vmem:[%s3704 + $0xb4] sm:$0xf]
      %v3736 = vld [vmem:[%s3704 + $0xb8] sm:$0xf]
      %s3737 = scalar_lea.vmem %s1, 24
      %v3738 = vld [vmem:[%s3737] sm:$0xf]
      %v3771 = vunpack.c.l.b16 %v3705
      %v3772 = vunpack.c.l.b16 %v3706
      %v3773 = vunpack.c.l.b16 %v3707
      %v3774 = vunpack.c.l.b16 %v3708
      %v3775 = vunpack.c.l.b16 %v3709
      %v3776 = vunpack.c.l.b16 %v3710
      %v3777 = vunpack.c.l.b16 %v3711
      %v3778 = vunpack.c.l.b16 %v3712
      %v3779 = vunpack.c.l.b16 %v3713
      %v3780 = vunpack.c.l.b16 %v3714
      %v3781 = vunpack.c.l.b16 %v3715
      %v3782 = vunpack.c.l.b16 %v3716
      %v3783 = vunpack.c.l.b16 %v3717
      %v3784 = vunpack.c.l.b16 %v3718
      %v3785 = vunpack.c.l.b16 %v3719
      %v3786 = vunpack.c.l.b16 %v3720
      %v3787 = vunpack.c.l.b16 %v3721
      %v3788 = vunpack.c.l.b16 %v3722
      %v3789 = vunpack.c.l.b16 %v3723
      %v3790 = vunpack.c.l.b16 %v3724
      %v3791 = vunpack.c.l.b16 %v3725
      %v3792 = vunpack.c.l.b16 %v3726
      %v3793 = vunpack.c.l.b16 %v3727
      %v3794 = vunpack.c.l.b16 %v3728
      %v3795 = vunpack.c.l.b16 %v3729
      %v3796 = vunpack.c.l.b16 %v3730
      %v3797 = vunpack.c.l.b16 %v3731
      %v3798 = vunpack.c.l.b16 %v3732
      %v3799 = vunpack.c.l.b16 %v3733
      %v3800 = vunpack.c.l.b16 %v3734
      %v3801 = vunpack.c.l.b16 %v3735
      %v3802 = vunpack.c.l.b16 %v3736
      %v3803 = vpack.c.b16 %v3772, %v3771
      %v3804 = vpack.c.b16 %v3774, %v3773
      %v3805 = vpack.c.b16 %v3776, %v3775
      %v3806 = vpack.c.b16 %v3778, %v3777
      %v3807 = vpack.c.b16 %v3780, %v3779
      %v3808 = vpack.c.b16 %v3782, %v3781
      %v3809 = vpack.c.b16 %v3784, %v3783
      %v3810 = vpack.c.b16 %v3786, %v3785
      %v3811 = vpack.c.b16 %v3788, %v3787
      %v3812 = vpack.c.b16 %v3790, %v3789
      %v3813 = vpack.c.b16 %v3792, %v3791
      %v3814 = vpack.c.b16 %v3794, %v3793
      %v3815 = vpack.c.b16 %v3796, %v3795
      %v3816 = vpack.c.b16 %v3798, %v3797
      %v3817 = vpack.c.b16 %v3800, %v3799
      %v3818 = vpack.c.b16 %v3802, %v3801
      %v3820 = vsel %vm1187, %v3803, 0
      %v3823 = vsel %vm1187, %v3804, 0
      %v3826 = vsel %vm1187, %v3805, 0
      %v3829 = vsel %vm1187, %v3806, 0
      %v3832 = vsel %vm1187, %v3807, 0
      %v3835 = vsel %vm1187, %v3808, 0
      %v3838 = vsel %vm1187, %v3809, 0
      %v3841 = vsel %vm1187, %v3810, 0
      %v3844 = vsel %vm1187, %v3811, 0
      %v3847 = vsel %vm1187, %v3812, 0
      %v3850 = vsel %vm1187, %v3813, 0
      %v3853 = vsel %vm1187, %v3814, 0
      %v3856 = vsel %vm1187, %v3815, 0
      %v3859 = vsel %vm1187, %v3816, 0
      %v3862 = vsel %vm1187, %v3817, 0
      %v3865 = vsel %vm1187, %v3818, 0
      %v3868 = vsel %vm1236, %v3738, 0
      %3870 = vmatprep.subr.bf16.mxu0 0
      %3871 = vmatpush1.bf16.msra.mxu0 %v3868
      %3872 = vmatprep.subr.bf16.mxu0 0
      %3873 = vmatpush1.bf16.msra.mxu0 0
      %3874 = vmatprep.subr.bf16.mxu0 0
      %3875 = vmatpush1.bf16.msra.mxu0 0
      %3876 = vmatprep.subr.bf16.mxu0 0
      %3877 = vmatpush1.bf16.msra.mxu0 0
      %3878 = vmatprep.subr.bf16.mxu0 0
      %3879 = vmatpush1.bf16.msra.mxu0 0
      %3880 = vmatprep.subr.bf16.mxu0 0
      %3881 = vmatpush1.bf16.msra.mxu0 0
      %3882 = vmatprep.subr.bf16.mxu0 0
      %3883 = vmatpush1.bf16.msra.mxu0 0
      %3884 = vmatprep.subr.bf16.mxu0 0
      %3885 = vmatpush1.bf16.msra.mxu0 0
      %3886 = vmatprep.subr.bf16.mxu0 0
      %3887 = vmatpush1.bf16.msra.mxu0 0
      %3888 = vmatprep.subr.bf16.mxu0 0
      %3889 = vmatpush1.bf16.msra.mxu0 0
      %3890 = vmatprep.subr.bf16.mxu0 0
      %3891 = vmatpush1.bf16.msra.mxu0 0
      %3892 = vmatprep.subr.bf16.mxu0 0
      %3893 = vmatpush1.bf16.msra.mxu0 0
      %3894 = vmatprep.subr.bf16.mxu0 0
      %3895 = vmatpush1.bf16.msra.mxu0 0
      %3896 = vmatprep.subr.bf16.mxu0 0
      %3897 = vmatpush1.bf16.msra.mxu0 0
      %3898 = vmatprep.subr.bf16.mxu0 0
      %3899 = vmatpush1.bf16.msra.mxu0 0
      %3900 = vmatprep.subr.bf16.mxu0 0
      %3901 = vmatpush1.bf16.msra.mxu0 0
      %3902 = vmatprep.mubr.bf16.mxu0 0
      %3903 = vmatmul.mubr.bf16.gmra.mrb[0].mxu0 %v3820
      %v3904 = vpop.f32.mrb[0].mxu0
      %v3905 = vadd.f32 0.0, %v3904
      %v3906 = vpop.f32.mrb[0].mxu0
      %v3907 = vpop.f32.mrb[0].mxu0
      %v3908 = vadd.f32 0.0, %v3907
      %v3909 = vpop.f32.mrb[0].mxu0
      %3910 = vmatprep.mubr.bf16.mxu0 0
      %3911 = vmatmul.mubr.bf16.gmra.mrb[0].mxu0 %v3823
      %v3912 = vpop.f32.mrb[0].mxu0
      %v3913 = vadd.f32 0.0, %v3912
      %v3914 = vpop.f32.mrb[0].mxu0
      %v3915 = vpop.f32.mrb[0].mxu0
      %v3916 = vadd.f32 0.0, %v3915
      %v3917 = vpop.f32.mrb[0].mxu0
      %3918 = vmatprep.mubr.bf16.mxu0 0
      %3919 = vmatmul.mubr.bf16.gmra.mrb[0].mxu0 %v3826
      %v3920 = vpop.f32.mrb[0].mxu0
      %v3921 = vadd.f32 0.0, %v3920
      %v3922 = vpop.f32.mrb[0].mxu0
      %v3923 = vpop.f32.mrb[0].mxu0
      %v3924 = vadd.f32 0.0, %v3923
      %v3925 = vpop.f32.mrb[0].mxu0
      %3926 = vmatprep.mubr.bf16.mxu0 0
      %3927 = vmatmul.mubr.bf16.gmra.mrb[0].mxu0 %v3829
      %v3928 = vpop.f32.mrb[0].mxu0
      %v3929 = vadd.f32 0.0, %v3928
      %v3930 = vpop.f32.mrb[0].mxu0
      %v3931 = vpop.f32.mrb[0].mxu0
      %v3932 = vadd.f32 0.0, %v3931
      %v3933 = vpop.f32.mrb[0].mxu0
      %3934 = vmatprep.mubr.bf16.mxu0 0
      %3935 = vmatmul.mubr.bf16.gmra.mrb[0].mxu0 %v3832
      %v3936 = vpop.f32.mrb[0].mxu0
      %v3937 = vadd.f32 0.0, %v3936
      %v3938 = vpop.f32.mrb[0].mxu0
      %v3939 = vpop.f32.mrb[0].mxu0
      %v3940 = vadd.f32 0.0, %v3939
      %v3941 = vpop.f32.mrb[0].mxu0
      %3942 = vmatprep.mubr.bf16.mxu0 0
      %3943 = vmatmul.mubr.bf16.gmra.mrb[0].mxu0 %v3835
      %v3944 = vpop.f32.mrb[0].mxu0
      %v3945 = vadd.f32 0.0, %v3944
      %v3946 = vpop.f32.mrb[0].mxu0
      %v3947 = vpop.f32.mrb[0].mxu0
      %v3948 = vadd.f32 0.0, %v3947
      %v3949 = vpop.f32.mrb[0].mxu0
      %3950 = vmatprep.mubr.bf16.mxu0 0
      %3951 = vmatmul.mubr.bf16.gmra.mrb[0].mxu0 %v3838
      %v3952 = vpop.f32.mrb[0].mxu0
      %v3953 = vadd.f32 0.0, %v3952
      %v3954 = vpop.f32.mrb[0].mxu0
      %v3955 = vpop.f32.mrb[0].mxu0
      %v3956 = vadd.f32 0.0, %v3955
      %v3957 = vpop.f32.mrb[0].mxu0
      %3958 = vmatprep.mubr.bf16.mxu0 0
      %3959 = vmatmul.mubr.bf16.gmra.mrb[0].mxu0 %v3841
      %v3960 = vpop.f32.mrb[0].mxu0
      %v3961 = vadd.f32 0.0, %v3960
      %v3962 = vpop.f32.mrb[0].mxu0
      %v3963 = vpop.f32.mrb[0].mxu0
      %v3964 = vadd.f32 0.0, %v3963
      %v3965 = vpop.f32.mrb[0].mxu0
      %3966 = vmatprep.mubr.bf16.mxu0 0
      %3967 = vmatmul.mubr.bf16.gmra.mrb[0].mxu0 %v3844
      %v3968 = vpop.f32.mrb[0].mxu0
      %v3969 = vadd.f32 0.0, %v3968
      %v3970 = vpop.f32.mrb[0].mxu0
      %v3971 = vpop.f32.mrb[0].mxu0
      %v3972 = vadd.f32 0.0, %v3971
      %v3973 = vpop.f32.mrb[0].mxu0
      %3974 = vmatprep.mubr.bf16.mxu0 0
      %3975 = vmatmul.mubr.bf16.gmra.mrb[0].mxu0 %v3847
      %v3976 = vpop.f32.mrb[0].mxu0
      %v3977 = vadd.f32 0.0, %v3976
      %v3978 = vpop.f32.mrb[0].mxu0
      %v3979 = vpop.f32.mrb[0].mxu0
      %v3980 = vadd.f32 0.0, %v3979
      %v3981 = vpop.f32.mrb[0].mxu0
      %3982 = vmatprep.mubr.bf16.mxu0 0
      %3983 = vmatmul.mubr.bf16.gmra.mrb[0].mxu0 %v3850
      %v3984 = vpop.f32.mrb[0].mxu0
      %v3985 = vadd.f32 0.0, %v3984
      %v3986 = vpop.f32.mrb[0].mxu0
      %v3987 = vpop.f32.mrb[0].mxu0
      %v3988 = vadd.f32 0.0, %v3987
      %v3989 = vpop.f32.mrb[0].mxu0
      %3990 = vmatprep.mubr.bf16.mxu0 0
      %3991 = vmatmul.mubr.bf16.gmra.mrb[0].mxu0 %v3853
      %v3992 = vpop.f32.mrb[0].mxu0
      %v3993 = vadd.f32 0.0, %v3992
      %v3994 = vpop.f32.mrb[0].mxu0
      %v3995 = vpop.f32.mrb[0].mxu0
      %v3996 = vadd.f32 0.0, %v3995
      %v3997 = vpop.f32.mrb[0].mxu0
      %3998 = vmatprep.mubr.bf16.mxu0 0
      %3999 = vmatmul.mubr.bf16.gmra.mrb[0].mxu0 %v3856
      %v4000 = vpop.f32.mrb[0].mxu0
      %v4001 = vadd.f32 0.0, %v4000
      %v4002 = vpop.f32.mrb[0].mxu0
      %v4003 = vpop.f32.mrb[0].mxu0
      %v4004 = vadd.f32 0.0, %v4003
      %v4005 = vpop.f32.mrb[0].mxu0
      %4006 = vmatprep.mubr.bf16.mxu0 0
      %4007 = vmatmul.mubr.bf16.gmra.mrb[0].mxu0 %v3859
      %v4008 = vpop.f32.mrb[0].mxu0
      %v4009 = vadd.f32 0.0, %v4008
      %v4010 = vpop.f32.mrb[0].mxu0
      %v4011 = vpop.f32.mrb[0].mxu0
      %v4012 = vadd.f32 0.0, %v4011
      %v4013 = vpop.f32.mrb[0].mxu0
      %4014 = vmatprep.mubr.bf16.mxu0 0
      %4015 = vmatmul.mubr.bf16.gmra.mrb[0].mxu0 %v3862
      %v4016 = vpop.f32.mrb[0].mxu0
      %v4017 = vadd.f32 0.0, %v4016
      %v4018 = vpop.f32.mrb[0].mxu0
      %v4019 = vpop.f32.mrb[0].mxu0
      %v4020 = vadd.f32 0.0, %v4019
      %v4021 = vpop.f32.mrb[0].mxu0
      %4022 = vmatprep.mubr.bf16.mxu0 0
      %4023 = vmatmul.mubr.bf16.gmra.mrb[0].mxu0 %v3865
      %v4024 = vpop.f32.mrb[0].mxu0
      %v4025 = vadd.f32 0.0, %v4024
      %v4026 = vpop.f32.mrb[0].mxu0
      %v4027 = vpop.f32.mrb[0].mxu0
      %v4028 = vadd.f32 0.0, %v4027
      %v4029 = vpop.f32.mrb[0].mxu0
      %4030 = vdwg.mxu0
      %v4031 = vadd.f32 %v3672, %v3905
      %v4032 = vadd.f32 %v3673, %v3908
      %v4033 = vadd.f32 %v3674, %v3913
      %v4034 = vadd.f32 %v3675, %v3916
      %v4035 = vadd.f32 %v3676, %v3921
      %v4036 = vadd.f32 %v3677, %v3924
      %v4037 = vadd.f32 %v3678, %v3929
      %v4038 = vadd.f32 %v3679, %v3932
      %v4039 = vadd.f32 %v3680, %v3937
      %v4040 = vadd.f32 %v3681, %v3940
      %v4041 = vadd.f32 %v3682, %v3945
      %v4042 = vadd.f32 %v3683, %v3948
      %v4043 = vadd.f32 %v3684, %v3953
      %v4044 = vadd.f32 %v3685, %v3956
      %v4045 = vadd.f32 %v3686, %v3961
      %v4046 = vadd.f32 %v3687, %v3964
      %v4047 = vadd.f32 %v3688, %v3969
      %v4048 = vadd.f32 %v3689, %v3972
      %v4049 = vadd.f32 %v3690, %v3977
      %v4050 = vadd.f32 %v3691, %v3980
      %v4051 = vadd.f32 %v3692, %v3985
      %v4052 = vadd.f32 %v3693, %v3988
      %v4053 = vadd.f32 %v3694, %v3993
      %v4054 = vadd.f32 %v3695, %v3996
      %v4055 = vadd.f32 %v3696, %v4001
      %v4056 = vadd.f32 %v3697, %v4004
      %v4057 = vadd.f32 %v3698, %v4009
      %v4058 = vadd.f32 %v3699, %v4012
      %v4059 = vadd.f32 %v3700, %v4017
      %v4060 = vadd.f32 %v3701, %v4020
      %v4061 = vadd.f32 %v3702, %v4025
      %v4062 = vadd.f32 %v3703, %v4028
      %v4063 = vld [vmem:[%s3704] sm:$0xf]
      %v4064 = vld [vmem:[%s3704 + $0x4] sm:$0xf]
      %v4065 = vld [vmem:[%s3704 + $0x8] sm:$0x1]
      %v4066 = vld [vmem:[%s3704 + $0xc] sm:$0xf]
      %v4067 = vld [vmem:[%s3704 + $0x10] sm:$0xf]
      %v4068 = vld [vmem:[%s3704 + $0x14] sm:$0x1]
      %v4069 = vld [vmem:[%s3704 + $0x18] sm:$0xf]
      %v4070 = vld [vmem:[%s3704 + $0x1c] sm:$0xf]
      %v4071 = vld [vmem:[%s3704 + $0x20] sm:$0x1]
      %v4072 = vld [vmem:[%s3704 + $0x24] sm:$0xf]
      %v4073 = vld [vmem:[%s3704 + $0x28] sm:$0xf]
      %v4074 = vld [vmem:[%s3704 + $0x2c] sm:$0x1]
      %v4075 = vld [vmem:[%s3704 + $0x30] sm:$0xf]
      %v4076 = vld [vmem:[%s3704 + $0x34] sm:$0xf]
      %v4077 = vld [vmem:[%s3704 + $0x38] sm:$0x1]
      %v4078 = vld [vmem:[%s3704 + $0x3c] sm:$0xf]
      %v4079 = vld [vmem:[%s3704 + $0x40] sm:$0xf]
      %v4080 = vld [vmem:[%s3704 + $0x44] sm:$0x1]
      %v4081 = vld [vmem:[%s3704 + $0x48] sm:$0xf]
      %v4082 = vld [vmem:[%s3704 + $0x4c] sm:$0xf]
      %v4083 = vld [vmem:[%s3704 + $0x50] sm:$0x1]
      %v4084 = vld [vmem:[%s3704 + $0x54] sm:$0xf]
      %v4085 = vld [vmem:[%s3704 + $0x58] sm:$0xf]
      %v4086 = vld [vmem:[%s3704 + $0x5c] sm:$0x1]
      %v4087 = vld [vmem:[%s3704 + $0x60] sm:$0xf]
      %v4088 = vld [vmem:[%s3704 + $0x64] sm:$0xf]
      %v4089 = vld [vmem:[%s3704 + $0x68] sm:$0x1]
      %v4090 = vld [vmem:[%s3704 + $0x6c] sm:$0xf]
      %v4091 = vld [vmem:[%s3704 + $0x70] sm:$0xf]
      %v4092 = vld [vmem:[%s3704 + $0x74] sm:$0x1]
      %v4093 = vld [vmem:[%s3704 + $0x78] sm:$0xf]
      %v4094 = vld [vmem:[%s3704 + $0x7c] sm:$0xf]
      %v4095 = vld [vmem:[%s3704 + $0x80] sm:$0x1]
      %v4096 = vld [vmem:[%s3704 + $0x84] sm:$0xf]
      %v4097 = vld [vmem:[%s3704 + $0x88] sm:$0xf]
      %v4098 = vld [vmem:[%s3704 + $0x8c] sm:$0x1]
      %v4099 = vld [vmem:[%s3704 + $0x90] sm:$0xf]
      %v4100 = vld [vmem:[%s3704 + $0x94] sm:$0xf]
      %v4101 = vld [vmem:[%s3704 + $0x98] sm:$0x1]
      %v4102 = vld [vmem:[%s3704 + $0x9c] sm:$0xf]
      %v4103 = vld [vmem:[%s3704 + $0xa0] sm:$0xf]
      %v4104 = vld [vmem:[%s3704 + $0xa4] sm:$0x1]
      %v4105 = vld [vmem:[%s3704 + $0xa8] sm:$0xf]
      %v4106 = vld [vmem:[%s3704 + $0xac] sm:$0xf]
      %v4107 = vld [vmem:[%s3704 + $0xb0] sm:$0x1]
      %v4108 = vld [vmem:[%s3704 + $0xb4] sm:$0xf]
      %v4109 = vld [vmem:[%s3704 + $0xb8] sm:$0xf]
      %v4110 = vld [vmem:[%s3704 + $0xbc] sm:$0x1]
      %v4112 = vshrl.u32 %v4063, 16
      %v4114 = vrot.slane %v4112, 4
      %v4115 = vshll.u32 %v4063, 16
      %v4117 = vrot.slane %v4115, 5
      %v4118 = vor.u32 %v4114, %v4117
      %v4119 = vrot.slane %v4118, 4
      %v4121 = vshll.u32 %v4064, 16
      %v4123 = vrot.slane %v4121, 5
      %v4124 = vsel %vm752, %v4119, %v4123
      %v4125 = vshrl.u32 %v4064, 16
      %v4127 = vrot.slane %v4125, 4
      %v4128 = vor.u32 %v4127, %v4123
      %v4129 = vrot.slane %v4128, 4
      %v4131 = vshll.u32 %v4065, 16
      %v4133 = vrot.slane %v4131, 5
      %v4134 = vsel %vm752, %v4129, %v4133
      %v4136 = vshrl.u32 %v4066, 16
      %v4138 = vrot.slane %v4136, 4
      %v4139 = vshll.u32 %v4066, 16
      %v4141 = vrot.slane %v4139, 5
      %v4142 = vor.u32 %v4138, %v4141
      %v4143 = vrot.slane %v4142, 4
      %v4145 = vshll.u32 %v4067, 16
      %v4147 = vrot.slane %v4145, 5
      %v4148 = vsel %vm752, %v4143, %v4147
      %v4149 = vshrl.u32 %v4067, 16
      %v4151 = vrot.slane %v4149, 4
      %v4152 = vor.u32 %v4151, %v4147
      %v4153 = vrot.slane %v4152, 4
      %v4155 = vshll.u32 %v4068, 16
      %v4157 = vrot.slane %v4155, 5
      %v4158 = vsel %vm752, %v4153, %v4157
      %v4160 = vshrl.u32 %v4069, 16
      %v4162 = vrot.slane %v4160, 4
      %v4163 = vshll.u32 %v4069, 16
      %v4165 = vrot.slane %v4163, 5
      %v4166 = vor.u32 %v4162, %v4165
      %v4167 = vrot.slane %v4166, 4
      %v4169 = vshll.u32 %v4070, 16
      %v4171 = vrot.slane %v4169, 5
      %v4172 = vsel %vm752, %v4167, %v4171
      %v4173 = vshrl.u32 %v4070, 16
      %v4175 = vrot.slane %v4173, 4
      %v4176 = vor.u32 %v4175, %v4171
      %v4177 = vrot.slane %v4176, 4
      %v4179 = vshll.u32 %v4071, 16
      %v4181 = vrot.slane %v4179, 5
      %v4182 = vsel %vm752, %v4177, %v4181
      %v4184 = vshrl.u32 %v4072, 16
      %v4186 = vrot.slane %v4184, 4
      %v4187 = vshll.u32 %v4072, 16
      %v4189 = vrot.slane %v4187, 5
      %v4190 = vor.u32 %v4186, %v4189
      %v4191 = vrot.slane %v4190, 4
      %v4193 = vshll.u32 %v4073, 16
      %v4195 = vrot.slane %v4193, 5
      %v4196 = vsel %vm752, %v4191, %v4195
      %v4197 = vshrl.u32 %v4073, 16
      %v4199 = vrot.slane %v4197, 4
      %v4200 = vor.u32 %v4199, %v4195
      %v4201 = vrot.slane %v4200, 4
      %v4203 = vshll.u32 %v4074, 16
      %v4205 = vrot.slane %v4203, 5
      %v4206 = vsel %vm752, %v4201, %v4205
      %v4208 = vshrl.u32 %v4075, 16
      %v4210 = vrot.slane %v4208, 4
      %v4211 = vshll.u32 %v4075, 16
      %v4213 = vrot.slane %v4211, 5
      %v4214 = vor.u32 %v4210, %v4213
      %v4215 = vrot.slane %v4214, 4
      %v4217 = vshll.u32 %v4076, 16
      %v4219 = vrot.slane %v4217, 5
      %v4220 = vsel %vm752, %v4215, %v4219
      %v4221 = vshrl.u32 %v4076, 16
      %v4223 = vrot.slane %v4221, 4
      %v4224 = vor.u32 %v4223, %v4219
      %v4225 = vrot.slane %v4224, 4
      %v4227 = vshll.u32 %v4077, 16
      %v4229 = vrot.slane %v4227, 5
      %v4230 = vsel %vm752, %v4225, %v4229
      %v4232 = vshrl.u32 %v4078, 16
      %v4234 = vrot.slane %v4232, 4
      %v4235 = vshll.u32 %v4078, 16
      %v4237 = vrot.slane %v4235, 5
      %v4238 = vor.u32 %v4234, %v4237
      %v4239 = vrot.slane %v4238, 4
      %v4241 = vshll.u32 %v4079, 16
      %v4243 = vrot.slane %v4241, 5
      %v4244 = vsel %vm752, %v4239, %v4243
      %v4245 = vshrl.u32 %v4079, 16
      %v4247 = vrot.slane %v4245, 4
      %v4248 = vor.u32 %v4247, %v4243
      %v4249 = vrot.slane %v4248, 4
      %v4251 = vshll.u32 %v4080, 16
      %v4253 = vrot.slane %v4251, 5
      %v4254 = vsel %vm752, %v4249, %v4253
      %v4256 = vshrl.u32 %v4081, 16
      %v4258 = vrot.slane %v4256, 4
      %v4259 = vshll.u32 %v4081, 16
      %v4261 = vrot.slane %v4259, 5
      %v4262 = vor.u32 %v4258, %v4261
      %v4263 = vrot.slane %v4262, 4
      %v4265 = vshll.u32 %v4082, 16
      %v4267 = vrot.slane %v4265, 5
      %v4268 = vsel %vm752, %v4263, %v4267
      %v4269 = vshrl.u32 %v4082, 16
      %v4271 = vrot.slane %v4269, 4
      %v4272 = vor.u32 %v4271, %v4267
      %v4273 = vrot.slane %v4272, 4
      %v4275 = vshll.u32 %v4083, 16
      %v4277 = vrot.slane %v4275, 5
      %v4278 = vsel %vm752, %v4273, %v4277
      %v4280 = vshrl.u32 %v4084, 16
      %v4282 = vrot.slane %v4280, 4
      %v4283 = vshll.u32 %v4084, 16
      %v4285 = vrot.slane %v4283, 5
      %v4286 = vor.u32 %v4282, %v4285
      %v4287 = vrot.slane %v4286, 4
      %v4289 = vshll.u32 %v4085, 16
      %v4291 = vrot.slane %v4289, 5
      %v4292 = vsel %vm752, %v4287, %v4291
      %v4293 = vshrl.u32 %v4085, 16
      %v4295 = vrot.slane %v4293, 4
      %v4296 = vor.u32 %v4295, %v4291
      %v4297 = vrot.slane %v4296, 4
      %v4299 = vshll.u32 %v4086, 16
      %v4301 = vrot.slane %v4299, 5
      %v4302 = vsel %vm752, %v4297, %v4301
      %v4304 = vshrl.u32 %v4087, 16
      %v4306 = vrot.slane %v4304, 4
      %v4307 = vshll.u32 %v4087, 16
      %v4309 = vrot.slane %v4307, 5
      %v4310 = vor.u32 %v4306, %v4309
      %v4311 = vrot.slane %v4310, 4
      %v4313 = vshll.u32 %v4088, 16
      %v4315 = vrot.slane %v4313, 5
      %v4316 = vsel %vm752, %v4311, %v4315
      %v4317 = vshrl.u32 %v4088, 16
      %v4319 = vrot.slane %v4317, 4
      %v4320 = vor.u32 %v4319, %v4315
      %v4321 = vrot.slane %v4320, 4
      %v4323 = vshll.u32 %v4089, 16
      %v4325 = vrot.slane %v4323, 5
      %v4326 = vsel %vm752, %v4321, %v4325
      %v4328 = vshrl.u32 %v4090, 16
      %v4330 = vrot.slane %v4328, 4
      %v4331 = vshll.u32 %v4090, 16
      %v4333 = vrot.slane %v4331, 5
      %v4334 = vor.u32 %v4330, %v4333
      %v4335 = vrot.slane %v4334, 4
      %v4337 = vshll.u32 %v4091, 16
      %v4339 = vrot.slane %v4337, 5
      %v4340 = vsel %vm752, %v4335, %v4339
      %v4341 = vshrl.u32 %v4091, 16
      %v4343 = vrot.slane %v4341, 4
      %v4344 = vor.u32 %v4343, %v4339
      %v4345 = vrot.slane %v4344, 4
      %v4347 = vshll.u32 %v4092, 16
      %v4349 = vrot.slane %v4347, 5
      %v4350 = vsel %vm752, %v4345, %v4349
      %v4352 = vshrl.u32 %v4093, 16
      %v4354 = vrot.slane %v4352, 4
      %v4355 = vshll.u32 %v4093, 16
      %v4357 = vrot.slane %v4355, 5
      %v4358 = vor.u32 %v4354, %v4357
      %v4359 = vrot.slane %v4358, 4
      %v4361 = vshll.u32 %v4094, 16
      %v4363 = vrot.slane %v4361, 5
      %v4364 = vsel %vm752, %v4359, %v4363
      %v4365 = vshrl.u32 %v4094, 16
      %v4367 = vrot.slane %v4365, 4
      %v4368 = vor.u32 %v4367, %v4363
      %v4369 = vrot.slane %v4368, 4
      %v4371 = vshll.u32 %v4095, 16
      %v4373 = vrot.slane %v4371, 5
      %v4374 = vsel %vm752, %v4369, %v4373
      %v4376 = vshrl.u32 %v4096, 16
      %v4378 = vrot.slane %v4376, 4
      %v4379 = vshll.u32 %v4096, 16
      %v4381 = vrot.slane %v4379, 5
      %v4382 = vor.u32 %v4378, %v4381
      %v4383 = vrot.slane %v4382, 4
      %v4385 = vshll.u32 %v4097, 16
      %v4387 = vrot.slane %v4385, 5
      %v4388 = vsel %vm752, %v4383, %v4387
      %v4389 = vshrl.u32 %v4097, 16
      %v4391 = vrot.slane %v4389, 4
      %v4392 = vor.u32 %v4391, %v4387
      %v4393 = vrot.slane %v4392, 4
      %v4395 = vshll.u32 %v4098, 16
      %v4397 = vrot.slane %v4395, 5
      %v4398 = vsel %vm752, %v4393, %v4397
      %v4400 = vshrl.u32 %v4099, 16
      %v4402 = vrot.slane %v4400, 4
      %v4403 = vshll.u32 %v4099, 16
      %v4405 = vrot.slane %v4403, 5
      %v4406 = vor.u32 %v4402, %v4405
      %v4407 = vrot.slane %v4406, 4
      %v4409 = vshll.u32 %v4100, 16
      %v4411 = vrot.slane %v4409, 5
      %v4412 = vsel %vm752, %v4407, %v4411
      %v4413 = vshrl.u32 %v4100, 16
      %v4415 = vrot.slane %v4413, 4
      %v4416 = vor.u32 %v4415, %v4411
      %v4417 = vrot.slane %v4416, 4
      %v4419 = vshll.u32 %v4101, 16
      %v4421 = vrot.slane %v4419, 5
      %v4422 = vsel %vm752, %v4417, %v4421
      %v4424 = vshrl.u32 %v4102, 16
      %v4426 = vrot.slane %v4424, 4
      %v4427 = vshll.u32 %v4102, 16
      %v4429 = vrot.slane %v4427, 5
      %v4430 = vor.u32 %v4426, %v4429
      %v4431 = vrot.slane %v4430, 4
      %v4433 = vshll.u32 %v4103, 16
      %v4435 = vrot.slane %v4433, 5
      %v4436 = vsel %vm752, %v4431, %v4435
      %v4437 = vshrl.u32 %v4103, 16
      %v4439 = vrot.slane %v4437, 4
      %v4440 = vor.u32 %v4439, %v4435
      %v4441 = vrot.slane %v4440, 4
      %v4443 = vshll.u32 %v4104, 16
      %v4445 = vrot.slane %v4443, 5
      %v4446 = vsel %vm752, %v4441, %v4445
      %v4448 = vshrl.u32 %v4105, 16
      %v4450 = vrot.slane %v4448, 4
      %v4451 = vshll.u32 %v4105, 16
      %v4453 = vrot.slane %v4451, 5
      %v4454 = vor.u32 %v4450, %v4453
      %v4455 = vrot.slane %v4454, 4
      %v4457 = vshll.u32 %v4106, 16
      %v4459 = vrot.slane %v4457, 5
      %v4460 = vsel %vm752, %v4455, %v4459
      %v4461 = vshrl.u32 %v4106, 16
      %v4463 = vrot.slane %v4461, 4
      %v4464 = vor.u32 %v4463, %v4459
      %v4465 = vrot.slane %v4464, 4
      %v4467 = vshll.u32 %v4107, 16
      %v4469 = vrot.slane %v4467, 5
      %v4470 = vsel %vm752, %v4465, %v4469
      %v4472 = vshrl.u32 %v4108, 16
      %v4474 = vrot.slane %v4472, 4
      %v4475 = vshll.u32 %v4108, 16
      %v4477 = vrot.slane %v4475, 5
      %v4478 = vor.u32 %v4474, %v4477
      %v4479 = vrot.slane %v4478, 4
      %v4481 = vshll.u32 %v4109, 16
      %v4483 = vrot.slane %v4481, 5
      %v4484 = vsel %vm752, %v4479, %v4483
      %v4485 = vshrl.u32 %v4109, 16
      %v4487 = vrot.slane %v4485, 4
      %v4488 = vor.u32 %v4487, %v4483
      %v4489 = vrot.slane %v4488, 4
      %v4491 = vshll.u32 %v4110, 16
      %v4493 = vrot.slane %v4491, 5
      %v4494 = vsel %vm752, %v4489, %v4493
      %s4495 = scalar_lea.vmem %s1, 28
      %v4496 = vld [vmem:[%s4495] sm:$0xf]
      %v4497 = vunpack.c.l.b16 %v4124
      %v4498 = vunpack.c.l.b16 %v4134
      %v4499 = vunpack.c.l.b16 %v4148
      %v4500 = vunpack.c.l.b16 %v4158
      %v4501 = vunpack.c.l.b16 %v4172
      %v4502 = vunpack.c.l.b16 %v4182
      %v4503 = vunpack.c.l.b16 %v4196
      %v4504 = vunpack.c.l.b16 %v4206
      %v4505 = vunpack.c.l.b16 %v4220
      %v4506 = vunpack.c.l.b16 %v4230
      %v4507 = vunpack.c.l.b16 %v4244
      %v4508 = vunpack.c.l.b16 %v4254
      %v4509 = vunpack.c.l.b16 %v4268
      %v4510 = vunpack.c.l.b16 %v4278
      %v4511 = vunpack.c.l.b16 %v4292
      %v4512 = vunpack.c.l.b16 %v4302
      %v4513 = vunpack.c.l.b16 %v4316
      %v4514 = vunpack.c.l.b16 %v4326
      %v4515 = vunpack.c.l.b16 %v4340
      %v4516 = vunpack.c.l.b16 %v4350
      %v4517 = vunpack.c.l.b16 %v4364
      %v4518 = vunpack.c.l.b16 %v4374
      %v4519 = vunpack.c.l.b16 %v4388
      %v4520 = vunpack.c.l.b16 %v4398
      %v4521 = vunpack.c.l.b16 %v4412
      %v4522 = vunpack.c.l.b16 %v4422
      %v4523 = vunpack.c.l.b16 %v4436
      %v4524 = vunpack.c.l.b16 %v4446
      %v4525 = vunpack.c.l.b16 %v4460
      %v4526 = vunpack.c.l.b16 %v4470
      %v4527 = vunpack.c.l.b16 %v4484
      %v4528 = vunpack.c.l.b16 %v4494
      %v4529 = vpack.c.b16 %v4498, %v4497
      %v4530 = vpack.c.b16 %v4500, %v4499
      %v4531 = vpack.c.b16 %v4502, %v4501
      %v4532 = vpack.c.b16 %v4504, %v4503
      %v4533 = vpack.c.b16 %v4506, %v4505
      %v4534 = vpack.c.b16 %v4508, %v4507
      %v4535 = vpack.c.b16 %v4510, %v4509
      %v4536 = vpack.c.b16 %v4512, %v4511
      %v4537 = vpack.c.b16 %v4514, %v4513
      %v4538 = vpack.c.b16 %v4516, %v4515
      %v4539 = vpack.c.b16 %v4518, %v4517
      %v4540 = vpack.c.b16 %v4520, %v4519
      %v4541 = vpack.c.b16 %v4522, %v4521
      %v4542 = vpack.c.b16 %v4524, %v4523
      %v4543 = vpack.c.b16 %v4526, %v4525
      %v4544 = vpack.c.b16 %v4528, %v4527
      %v4546 = vsel %vm1187, %v4529, 0
      %v4549 = vsel %vm1187, %v4530, 0
      %v4552 = vsel %vm1187, %v4531, 0
      %v4555 = vsel %vm1187, %v4532, 0
      %v4558 = vsel %vm1187, %v4533, 0
      %v4561 = vsel %vm1187, %v4534, 0
      %v4564 = vsel %vm1187, %v4535, 0
      %v4567 = vsel %vm1187, %v4536, 0
      %v4570 = vsel %vm1187, %v4537, 0
      %v4573 = vsel %vm1187, %v4538, 0
      %v4576 = vsel %vm1187, %v4539, 0
      %v4579 = vsel %vm1187, %v4540, 0
      %v4582 = vsel %vm1187, %v4541, 0
      %v4585 = vsel %vm1187, %v4542, 0
      %v4588 = vsel %vm1187, %v4543, 0
      %v4591 = vsel %vm1187, %v4544, 0
      %v4594 = vsel %vm1236, %v4496, 0
      %4596 = vmatprep.subr.bf16.mxu0 0
      %4597 = vmatpush1.bf16.msra.mxu0 %v4594
      %4598 = vmatprep.subr.bf16.mxu0 0
      %4599 = vmatpush1.bf16.msra.mxu0 0
      %4600 = vmatprep.subr.bf16.mxu0 0
      %4601 = vmatpush1.bf16.msra.mxu0 0
      %4602 = vmatprep.subr.bf16.mxu0 0
      %4603 = vmatpush1.bf16.msra.mxu0 0
      %4604 = vmatprep.subr.bf16.mxu0 0
      %4605 = vmatpush1.bf16.msra.mxu0 0
      %4606 = vmatprep.subr.bf16.mxu0 0
      %4607 = vmatpush1.bf16.msra.mxu0 0
      %4608 = vmatprep.subr.bf16.mxu0 0
      %4609 = vmatpush1.bf16.msra.mxu0 0
      %4610 = vmatprep.subr.bf16.mxu0 0
      %4611 = vmatpush1.bf16.msra.mxu0 0
      %4612 = vmatprep.subr.bf16.mxu0 0
      %4613 = vmatpush1.bf16.msra.mxu0 0
      %4614 = vmatprep.subr.bf16.mxu0 0
      %4615 = vmatpush1.bf16.msra.mxu0 0
      %4616 = vmatprep.subr.bf16.mxu0 0
      %4617 = vmatpush1.bf16.msra.mxu0 0
      %4618 = vmatprep.subr.bf16.mxu0 0
      %4619 = vmatpush1.bf16.msra.mxu0 0
      %4620 = vmatprep.subr.bf16.mxu0 0
      %4621 = vmatpush1.bf16.msra.mxu0 0
      %4622 = vmatprep.subr.bf16.mxu0 0
      %4623 = vmatpush1.bf16.msra.mxu0 0
      %4624 = vmatprep.subr.bf16.mxu0 0
      %4625 = vmatpush1.bf16.msra.mxu0 0
      %4626 = vmatprep.subr.bf16.mxu0 0
      %4627 = vmatpush1.bf16.msra.mxu0 0
      %4628 = vmatprep.mubr.bf16.mxu0 0
      %4629 = vmatmul.mubr.bf16.gmra.mrb[0].mxu0 %v4546
      %v4630 = vpop.f32.mrb[0].mxu0
      %v4631 = vadd.f32 0.0, %v4630
      %v4632 = vpop.f32.mrb[0].mxu0
      %v4633 = vpop.f32.mrb[0].mxu0
      %v4634 = vadd.f32 0.0, %v4633
      %v4635 = vpop.f32.mrb[0].mxu0
      %4636 = vmatprep.mubr.bf16.mxu0 0
      %4637 = vmatmul.mubr.bf16.gmra.mrb[0].mxu0 %v4549
      %v4638 = vpop.f32.mrb[0].mxu0
      %v4639 = vadd.f32 0.0, %v4638
      %v4640 = vpop.f32.mrb[0].mxu0
      %v4641 = vpop.f32.mrb[0].mxu0
      %v4642 = vadd.f32 0.0, %v4641
      %v4643 = vpop.f32.mrb[0].mxu0
      %4644 = vmatprep.mubr.bf16.mxu0 0
      %4645 = vmatmul.mubr.bf16.gmra.mrb[0].mxu0 %v4552
      %v4646 = vpop.f32.mrb[0].mxu0
      %v4647 = vadd.f32 0.0, %v4646
      %v4648 = vpop.f32.mrb[0].mxu0
      %v4649 = vpop.f32.mrb[0].mxu0
      %v4650 = vadd.f32 0.0, %v4649
      %v4651 = vpop.f32.mrb[0].mxu0
      %4652 = vmatprep.mubr.bf16.mxu0 0
      %4653 = vmatmul.mubr.bf16.gmra.mrb[0].mxu0 %v4555
      %v4654 = vpop.f32.mrb[0].mxu0
      %v4655 = vadd.f32 0.0, %v4654
      %v4656 = vpop.f32.mrb[0].mxu0
      %v4657 = vpop.f32.mrb[0].mxu0
      %v4658 = vadd.f32 0.0, %v4657
      %v4659 = vpop.f32.mrb[0].mxu0
      %4660 = vmatprep.mubr.bf16.mxu0 0
      %4661 = vmatmul.mubr.bf16.gmra.mrb[0].mxu0 %v4558
      %v4662 = vpop.f32.mrb[0].mxu0
      %v4663 = vadd.f32 0.0, %v4662
      %v4664 = vpop.f32.mrb[0].mxu0
      %v4665 = vpop.f32.mrb[0].mxu0
      %v4666 = vadd.f32 0.0, %v4665
      %v4667 = vpop.f32.mrb[0].mxu0
      %4668 = vmatprep.mubr.bf16.mxu0 0
      %4669 = vmatmul.mubr.bf16.gmra.mrb[0].mxu0 %v4561
      %v4670 = vpop.f32.mrb[0].mxu0
      %v4671 = vadd.f32 0.0, %v4670
      %v4672 = vpop.f32.mrb[0].mxu0
      %v4673 = vpop.f32.mrb[0].mxu0
      %v4674 = vadd.f32 0.0, %v4673
      %v4675 = vpop.f32.mrb[0].mxu0
      %4676 = vmatprep.mubr.bf16.mxu0 0
      %4677 = vmatmul.mubr.bf16.gmra.mrb[0].mxu0 %v4564
      %v4678 = vpop.f32.mrb[0].mxu0
      %v4679 = vadd.f32 0.0, %v4678
      %v4680 = vpop.f32.mrb[0].mxu0
      %v4681 = vpop.f32.mrb[0].mxu0
      %v4682 = vadd.f32 0.0, %v4681
      %v4683 = vpop.f32.mrb[0].mxu0
      %4684 = vmatprep.mubr.bf16.mxu0 0
      %4685 = vmatmul.mubr.bf16.gmra.mrb[0].mxu0 %v4567
      %v4686 = vpop.f32.mrb[0].mxu0
      %v4687 = vadd.f32 0.0, %v4686
      %v4688 = vpop.f32.mrb[0].mxu0
      %v4689 = vpop.f32.mrb[0].mxu0
      %v4690 = vadd.f32 0.0, %v4689
      %v4691 = vpop.f32.mrb[0].mxu0
      %4692 = vmatprep.mubr.bf16.mxu0 0
      %4693 = vmatmul.mubr.bf16.gmra.mrb[0].mxu0 %v4570
      %v4694 = vpop.f32.mrb[0].mxu0
      %v4695 = vadd.f32 0.0, %v4694
      %v4696 = vpop.f32.mrb[0].mxu0
      %v4697 = vpop.f32.mrb[0].mxu0
      %v4698 = vadd.f32 0.0, %v4697
      %v4699 = vpop.f32.mrb[0].mxu0
      %4700 = vmatprep.mubr.bf16.mxu0 0
      %4701 = vmatmul.mubr.bf16.gmra.mrb[0].mxu0 %v4573
      %v4702 = vpop.f32.mrb[0].mxu0
      %v4703 = vadd.f32 0.0, %v4702
      %v4704 = vpop.f32.mrb[0].mxu0
      %v4705 = vpop.f32.mrb[0].mxu0
      %v4706 = vadd.f32 0.0, %v4705
      %v4707 = vpop.f32.mrb[0].mxu0
      %4708 = vmatprep.mubr.bf16.mxu0 0
      %4709 = vmatmul.mubr.bf16.gmra.mrb[0].mxu0 %v4576
      %v4710 = vpop.f32.mrb[0].mxu0
      %v4711 = vadd.f32 0.0, %v4710
      %v4712 = vpop.f32.mrb[0].mxu0
      %v4713 = vpop.f32.mrb[0].mxu0
      %v4714 = vadd.f32 0.0, %v4713
      %v4715 = vpop.f32.mrb[0].mxu0
      %4716 = vmatprep.mubr.bf16.mxu0 0
      %4717 = vmatmul.mubr.bf16.gmra.mrb[0].mxu0 %v4579
      %v4718 = vpop.f32.mrb[0].mxu0
      %v4719 = vadd.f32 0.0, %v4718
      %v4720 = vpop.f32.mrb[0].mxu0
      %v4721 = vpop.f32.mrb[0].mxu0
      %v4722 = vadd.f32 0.0, %v4721
      %v4723 = vpop.f32.mrb[0].mxu0
      %4724 = vmatprep.mubr.bf16.mxu0 0
      %4725 = vmatmul.mubr.bf16.gmra.mrb[0].mxu0 %v4582
      %v4726 = vpop.f32.mrb[0].mxu0
      %v4727 = vadd.f32 0.0, %v4726
      %v4728 = vpop.f32.mrb[0].mxu0
      %v4729 = vpop.f32.mrb[0].mxu0
      %v4730 = vadd.f32 0.0, %v4729
      %v4731 = vpop.f32.mrb[0].mxu0
      %4732 = vmatprep.mubr.bf16.mxu0 0
      %4733 = vmatmul.mubr.bf16.gmra.mrb[0].mxu0 %v4585
      %v4734 = vpop.f32.mrb[0].mxu0
      %v4735 = vadd.f32 0.0, %v4734
      %v4736 = vpop.f32.mrb[0].mxu0
      %v4737 = vpop.f32.mrb[0].mxu0
      %v4738 = vadd.f32 0.0, %v4737
      %v4739 = vpop.f32.mrb[0].mxu0
      %4740 = vmatprep.mubr.bf16.mxu0 0
      %4741 = vmatmul.mubr.bf16.gmra.mrb[0].mxu0 %v4588
      %v4742 = vpop.f32.mrb[0].mxu0
      %v4743 = vadd.f32 0.0, %v4742
      %v4744 = vpop.f32.mrb[0].mxu0
      %v4745 = vpop.f32.mrb[0].mxu0
      %v4746 = vadd.f32 0.0, %v4745
      %v4747 = vpop.f32.mrb[0].mxu0
      %4748 = vmatprep.mubr.bf16.mxu0 0
      %4749 = vmatmul.mubr.bf16.gmra.mrb[0].mxu0 %v4591
      %v4750 = vpop.f32.mrb[0].mxu0
      %v4751 = vadd.f32 0.0, %v4750
      %v4752 = vpop.f32.mrb[0].mxu0
      %v4753 = vpop.f32.mrb[0].mxu0
      %v4754 = vadd.f32 0.0, %v4753
      %v4755 = vpop.f32.mrb[0].mxu0
      %4756 = vdwg.mxu0
      %v4757 = vadd.f32 %v4031, %v4631
      %v4758 = vadd.f32 %v4032, %v4634
      %v4759 = vadd.f32 %v4033, %v4639
      %v4760 = vadd.f32 %v4034, %v4642
      %v4761 = vadd.f32 %v4035, %v4647
      %v4762 = vadd.f32 %v4036, %v4650
      %v4763 = vadd.f32 %v4037, %v4655
      %v4764 = vadd.f32 %v4038, %v4658
      %v4765 = vadd.f32 %v4039, %v4663
      %v4766 = vadd.f32 %v4040, %v4666
      %v4767 = vadd.f32 %v4041, %v4671
      %v4768 = vadd.f32 %v4042, %v4674
      %v4769 = vadd.f32 %v4043, %v4679
      %v4770 = vadd.f32 %v4044, %v4682
      %v4771 = vadd.f32 %v4045, %v4687
      %v4772 = vadd.f32 %v4046, %v4690
      %v4773 = vadd.f32 %v4047, %v4695
      %v4774 = vadd.f32 %v4048, %v4698
      %v4775 = vadd.f32 %v4049, %v4703
      %v4776 = vadd.f32 %v4050, %v4706
      %v4777 = vadd.f32 %v4051, %v4711
      %v4778 = vadd.f32 %v4052, %v4714
      %v4779 = vadd.f32 %v4053, %v4719
      %v4780 = vadd.f32 %v4054, %v4722
      %v4781 = vadd.f32 %v4055, %v4727
      %v4782 = vadd.f32 %v4056, %v4730
      %v4783 = vadd.f32 %v4057, %v4735
      %v4784 = vadd.f32 %v4058, %v4738
      %v4785 = vadd.f32 %v4059, %v4743
      %v4786 = vadd.f32 %v4060, %v4746
      %v4787 = vadd.f32 %v4061, %v4751
      %v4788 = vadd.f32 %v4062, %v4754
      %v4789 = vld [vmem:[%s3704] sm:$0xe]
      %v4790 = vld [vmem:[%s3704 + $0xc] sm:$0xe]
      %v4791 = vld [vmem:[%s3704 + $0x18] sm:$0xe]
      %v4792 = vld [vmem:[%s3704 + $0x24] sm:$0xe]
      %v4793 = vld [vmem:[%s3704 + $0x30] sm:$0xe]
      %v4794 = vld [vmem:[%s3704 + $0x3c] sm:$0xe]
      %v4795 = vld [vmem:[%s3704 + $0x48] sm:$0xe]
      %v4796 = vld [vmem:[%s3704 + $0x54] sm:$0xe]
      %v4797 = vld [vmem:[%s3704 + $0x60] sm:$0xe]
      %v4798 = vld [vmem:[%s3704 + $0x6c] sm:$0xe]
      %v4799 = vld [vmem:[%s3704 + $0x78] sm:$0xe]
      %v4800 = vld [vmem:[%s3704 + $0x84] sm:$0xe]
      %v4801 = vld [vmem:[%s3704 + $0x90] sm:$0xe]
      %v4802 = vld [vmem:[%s3704 + $0x9c] sm:$0xe]
      %v4803 = vld [vmem:[%s3704 + $0xa8] sm:$0xe]
      %v4804 = vld [vmem:[%s3704 + $0xb4] sm:$0xe]
      %v4853 = vrot.slane %v4789, 5
      %v4854 = vrot.slane %v4853, 4
      %v4855 = vrot.slane %v4064, 5
      %v4856 = vsel %vm1743, %v4854, %v4855
      %v4857 = vrot.slane %v4855, 4
      %v4858 = vrot.slane %v4065, 5
      %v4859 = vsel %vm1743, %v4857, %v4858
      %v4860 = vrot.slane %v4790, 5
      %v4861 = vrot.slane %v4860, 4
      %v4862 = vrot.slane %v4067, 5
      %v4863 = vsel %vm1743, %v4861, %v4862
      %v4864 = vrot.slane %v4862, 4
      %v4865 = vrot.slane %v4068, 5
      %v4866 = vsel %vm1743, %v4864, %v4865
      %v4867 = vrot.slane %v4791, 5
      %v4868 = vrot.slane %v4867, 4
      %v4869 = vrot.slane %v4070, 5
      %v4870 = vsel %vm1743, %v4868, %v4869
      %v4871 = vrot.slane %v4869, 4
      %v4872 = vrot.slane %v4071, 5
      %v4873 = vsel %vm1743, %v4871, %v4872
      %v4874 = vrot.slane %v4792, 5
      %v4875 = vrot.slane %v4874, 4
      %v4876 = vrot.slane %v4073, 5
      %v4877 = vsel %vm1743, %v4875, %v4876
      %v4878 = vrot.slane %v4876, 4
      %v4879 = vrot.slane %v4074, 5
      %v4880 = vsel %vm1743, %v4878, %v4879
      %v4881 = vrot.slane %v4793, 5
      %v4882 = vrot.slane %v4881, 4
      %v4883 = vrot.slane %v4076, 5
      %v4884 = vsel %vm1743, %v4882, %v4883
      %v4885 = vrot.slane %v4883, 4
      %v4886 = vrot.slane %v4077, 5
      %v4887 = vsel %vm1743, %v4885, %v4886
      %v4888 = vrot.slane %v4794, 5
      %v4889 = vrot.slane %v4888, 4
      %v4890 = vrot.slane %v4079, 5
      %v4891 = vsel %vm1743, %v4889, %v4890
      %v4892 = vrot.slane %v4890, 4
      %v4893 = vrot.slane %v4080, 5
      %v4894 = vsel %vm1743, %v4892, %v4893
      %v4895 = vrot.slane %v4795, 5
      %v4896 = vrot.slane %v4895, 4
      %v4897 = vrot.slane %v4082, 5
      %v4898 = vsel %vm1743, %v4896, %v4897
      %v4899 = vrot.slane %v4897, 4
      %v4900 = vrot.slane %v4083, 5
      %v4901 = vsel %vm1743, %v4899, %v4900
      %v4902 = vrot.slane %v4796, 5
      %v4903 = vrot.slane %v4902, 4
      %v4904 = vrot.slane %v4085, 5
      %v4905 = vsel %vm1743, %v4903, %v4904
      %v4906 = vrot.slane %v4904, 4
      %v4907 = vrot.slane %v4086, 5
      %v4908 = vsel %vm1743, %v4906, %v4907
      %v4909 = vrot.slane %v4797, 5
      %v4910 = vrot.slane %v4909, 4
      %v4911 = vrot.slane %v4088, 5
      %v4912 = vsel %vm1743, %v4910, %v4911
      %v4913 = vrot.slane %v4911, 4
      %v4914 = vrot.slane %v4089, 5
      %v4915 = vsel %vm1743, %v4913, %v4914
      %v4916 = vrot.slane %v4798, 5
      %v4917 = vrot.slane %v4916, 4
      %v4918 = vrot.slane %v4091, 5
      %v4919 = vsel %vm1743, %v4917, %v4918
      %v4920 = vrot.slane %v4918, 4
      %v4921 = vrot.slane %v4092, 5
      %v4922 = vsel %vm1743, %v4920, %v4921
      %v4923 = vrot.slane %v4799, 5
      %v4924 = vrot.slane %v4923, 4
      %v4925 = vrot.slane %v4094, 5
      %v4926 = vsel %vm1743, %v4924, %v4925
      %v4927 = vrot.slane %v4925, 4
      %v4928 = vrot.slane %v4095, 5
      %v4929 = vsel %vm1743, %v4927, %v4928
      %v4930 = vrot.slane %v4800, 5
      %v4931 = vrot.slane %v4930, 4
      %v4932 = vrot.slane %v4097, 5
      %v4933 = vsel %vm1743, %v4931, %v4932
      %v4934 = vrot.slane %v4932, 4
      %v4935 = vrot.slane %v4098, 5
      %v4936 = vsel %vm1743, %v4934, %v4935
      %v4937 = vrot.slane %v4801, 5
      %v4938 = vrot.slane %v4937, 4
      %v4939 = vrot.slane %v4100, 5
      %v4940 = vsel %vm1743, %v4938, %v4939
      %v4941 = vrot.slane %v4939, 4
      %v4942 = vrot.slane %v4101, 5
      %v4943 = vsel %vm1743, %v4941, %v4942
      %v4944 = vrot.slane %v4802, 5
      %v4945 = vrot.slane %v4944, 4
      %v4946 = vrot.slane %v4103, 5
      %v4947 = vsel %vm1743, %v4945, %v4946
      %v4948 = vrot.slane %v4946, 4
      %v4949 = vrot.slane %v4104, 5
      %v4950 = vsel %vm1743, %v4948, %v4949
      %v4951 = vrot.slane %v4803, 5
      %v4952 = vrot.slane %v4951, 4
      %v4953 = vrot.slane %v4106, 5
      %v4954 = vsel %vm1743, %v4952, %v4953
      %v4955 = vrot.slane %v4953, 4
      %v4956 = vrot.slane %v4107, 5
      %v4957 = vsel %vm1743, %v4955, %v4956
      %v4958 = vrot.slane %v4804, 5
      %v4959 = vrot.slane %v4958, 4
      %v4960 = vrot.slane %v4109, 5
      %v4961 = vsel %vm1743, %v4959, %v4960
      %v4962 = vrot.slane %v4960, 4
      %v4963 = vrot.slane %v4110, 5
      %v4964 = vsel %vm1743, %v4962, %v4963
      %s4965 = scalar_lea.vmem %s1, 32
      %v4966 = vld [vmem:[%s4965] sm:$0xf]
      %v4967 = vunpack.c.l.b16 %v4856
      %v4968 = vunpack.c.l.b16 %v4859
      %v4969 = vunpack.c.l.b16 %v4863
      %v4970 = vunpack.c.l.b16 %v4866
      %v4971 = vunpack.c.l.b16 %v4870
      %v4972 = vunpack.c.l.b16 %v4873
      %v4973 = vunpack.c.l.b16 %v4877
      %v4974 = vunpack.c.l.b16 %v4880
      %v4975 = vunpack.c.l.b16 %v4884
      %v4976 = vunpack.c.l.b16 %v4887
      %v4977 = vunpack.c.l.b16 %v4891
      %v4978 = vunpack.c.l.b16 %v4894
      %v4979 = vunpack.c.l.b16 %v4898
      %v4980 = vunpack.c.l.b16 %v4901
      %v4981 = vunpack.c.l.b16 %v4905
      %v4982 = vunpack.c.l.b16 %v4908
      %v4983 = vunpack.c.l.b16 %v4912
      %v4984 = vunpack.c.l.b16 %v4915
      %v4985 = vunpack.c.l.b16 %v4919
      %v4986 = vunpack.c.l.b16 %v4922
      %v4987 = vunpack.c.l.b16 %v4926
      %v4988 = vunpack.c.l.b16 %v4929
      %v4989 = vunpack.c.l.b16 %v4933
      %v4990 = vunpack.c.l.b16 %v4936
      %v4991 = vunpack.c.l.b16 %v4940
      %v4992 = vunpack.c.l.b16 %v4943
      %v4993 = vunpack.c.l.b16 %v4947
      %v4994 = vunpack.c.l.b16 %v4950
      %v4995 = vunpack.c.l.b16 %v4954
      %v4996 = vunpack.c.l.b16 %v4957
      %v4997 = vunpack.c.l.b16 %v4961
      %v4998 = vunpack.c.l.b16 %v4964
      %v4999 = vpack.c.b16 %v4968, %v4967
      %v5000 = vpack.c.b16 %v4970, %v4969
      %v5001 = vpack.c.b16 %v4972, %v4971
      %v5002 = vpack.c.b16 %v4974, %v4973
      %v5003 = vpack.c.b16 %v4976, %v4975
      %v5004 = vpack.c.b16 %v4978, %v4977
      %v5005 = vpack.c.b16 %v4980, %v4979
      %v5006 = vpack.c.b16 %v4982, %v4981
      %v5007 = vpack.c.b16 %v4984, %v4983
      %v5008 = vpack.c.b16 %v4986, %v4985
      %v5009 = vpack.c.b16 %v4988, %v4987
      %v5010 = vpack.c.b16 %v4990, %v4989
      %v5011 = vpack.c.b16 %v4992, %v4991
      %v5012 = vpack.c.b16 %v4994, %v4993
      %v5013 = vpack.c.b16 %v4996, %v4995
      %v5014 = vpack.c.b16 %v4998, %v4997
      %v5016 = vsel %vm1187, %v4999, 0
      %v5019 = vsel %vm1187, %v5000, 0
      %v5022 = vsel %vm1187, %v5001, 0
      %v5025 = vsel %vm1187, %v5002, 0
      %v5028 = vsel %vm1187, %v5003, 0
      %v5031 = vsel %vm1187, %v5004, 0
      %v5034 = vsel %vm1187, %v5005, 0
      %v5037 = vsel %vm1187, %v5006, 0
      %v5040 = vsel %vm1187, %v5007, 0
      %v5043 = vsel %vm1187, %v5008, 0
      %v5046 = vsel %vm1187, %v5009, 0
      %v5049 = vsel %vm1187, %v5010, 0
      %v5052 = vsel %vm1187, %v5011, 0
      %v5055 = vsel %vm1187, %v5012, 0
      %v5058 = vsel %vm1187, %v5013, 0
      %v5061 = vsel %vm1187, %v5014, 0
      %v5064 = vsel %vm1236, %v4966, 0
      %5066 = vmatprep.subr.bf16.mxu0 0
      %5067 = vmatpush1.bf16.msra.mxu0 %v5064
      %5068 = vmatprep.subr.bf16.mxu0 0
      %5069 = vmatpush1.bf16.msra.mxu0 0
      %5070 = vmatprep.subr.bf16.mxu0 0
      %5071 = vmatpush1.bf16.msra.mxu0 0
      %5072 = vmatprep.subr.bf16.mxu0 0
      %5073 = vmatpush1.bf16.msra.mxu0 0
      %5074 = vmatprep.subr.bf16.mxu0 0
      %5075 = vmatpush1.bf16.msra.mxu0 0
      %5076 = vmatprep.subr.bf16.mxu0 0
      %5077 = vmatpush1.bf16.msra.mxu0 0
      %5078 = vmatprep.subr.bf16.mxu0 0
      %5079 = vmatpush1.bf16.msra.mxu0 0
      %5080 = vmatprep.subr.bf16.mxu0 0
      %5081 = vmatpush1.bf16.msra.mxu0 0
      %5082 = vmatprep.subr.bf16.mxu0 0
      %5083 = vmatpush1.bf16.msra.mxu0 0
      %5084 = vmatprep.subr.bf16.mxu0 0
      %5085 = vmatpush1.bf16.msra.mxu0 0
      %5086 = vmatprep.subr.bf16.mxu0 0
      %5087 = vmatpush1.bf16.msra.mxu0 0
      %5088 = vmatprep.subr.bf16.mxu0 0
      %5089 = vmatpush1.bf16.msra.mxu0 0
      %5090 = vmatprep.subr.bf16.mxu0 0
      %5091 = vmatpush1.bf16.msra.mxu0 0
      %5092 = vmatprep.subr.bf16.mxu0 0
      %5093 = vmatpush1.bf16.msra.mxu0 0
      %5094 = vmatprep.subr.bf16.mxu0 0
      %5095 = vmatpush1.bf16.msra.mxu0 0
      %5096 = vmatprep.subr.bf16.mxu0 0
      %5097 = vmatpush1.bf16.msra.mxu0 0
      %5098 = vmatprep.mubr.bf16.mxu0 0
      %5099 = vmatmul.mubr.bf16.gmra.mrb[0].mxu0 %v5016
      %v5100 = vpop.f32.mrb[0].mxu0
      %v5101 = vadd.f32 0.0, %v5100
      %v5102 = vpop.f32.mrb[0].mxu0
      %v5103 = vpop.f32.mrb[0].mxu0
      %v5104 = vadd.f32 0.0, %v5103
      %v5105 = vpop.f32.mrb[0].mxu0
      %5106 = vmatprep.mubr.bf16.mxu0 0
      %5107 = vmatmul.mubr.bf16.gmra.mrb[0].mxu0 %v5019
      %v5108 = vpop.f32.mrb[0].mxu0
      %v5109 = vadd.f32 0.0, %v5108
      %v5110 = vpop.f32.mrb[0].mxu0
      %v5111 = vpop.f32.mrb[0].mxu0
      %v5112 = vadd.f32 0.0, %v5111
      %v5113 = vpop.f32.mrb[0].mxu0
      %5114 = vmatprep.mubr.bf16.mxu0 0
      %5115 = vmatmul.mubr.bf16.gmra.mrb[0].mxu0 %v5022
      %v5116 = vpop.f32.mrb[0].mxu0
      %v5117 = vadd.f32 0.0, %v5116
      %v5118 = vpop.f32.mrb[0].mxu0
      %v5119 = vpop.f32.mrb[0].mxu0
      %v5120 = vadd.f32 0.0, %v5119
      %v5121 = vpop.f32.mrb[0].mxu0
      %5122 = vmatprep.mubr.bf16.mxu0 0
      %5123 = vmatmul.mubr.bf16.gmra.mrb[0].mxu0 %v5025
      %v5124 = vpop.f32.mrb[0].mxu0
      %v5125 = vadd.f32 0.0, %v5124
      %v5126 = vpop.f32.mrb[0].mxu0
      %v5127 = vpop.f32.mrb[0].mxu0
      %v5128 = vadd.f32 0.0, %v5127
      %v5129 = vpop.f32.mrb[0].mxu0
      %5130 = vmatprep.mubr.bf16.mxu0 0
      %5131 = vmatmul.mubr.bf16.gmra.mrb[0].mxu0 %v5028
      %v5132 = vpop.f32.mrb[0].mxu0
      %v5133 = vadd.f32 0.0, %v5132
      %v5134 = vpop.f32.mrb[0].mxu0
      %v5135 = vpop.f32.mrb[0].mxu0
      %v5136 = vadd.f32 0.0, %v5135
      %v5137 = vpop.f32.mrb[0].mxu0
      %5138 = vmatprep.mubr.bf16.mxu0 0
      %5139 = vmatmul.mubr.bf16.gmra.mrb[0].mxu0 %v5031
      %v5140 = vpop.f32.mrb[0].mxu0
      %v5141 = vadd.f32 0.0, %v5140
      %v5142 = vpop.f32.mrb[0].mxu0
      %v5143 = vpop.f32.mrb[0].mxu0
      %v5144 = vadd.f32 0.0, %v5143
      %v5145 = vpop.f32.mrb[0].mxu0
      %5146 = vmatprep.mubr.bf16.mxu0 0
      %5147 = vmatmul.mubr.bf16.gmra.mrb[0].mxu0 %v5034
      %v5148 = vpop.f32.mrb[0].mxu0
      %v5149 = vadd.f32 0.0, %v5148
      %v5150 = vpop.f32.mrb[0].mxu0
      %v5151 = vpop.f32.mrb[0].mxu0
      %v5152 = vadd.f32 0.0, %v5151
      %v5153 = vpop.f32.mrb[0].mxu0
      %5154 = vmatprep.mubr.bf16.mxu0 0
      %5155 = vmatmul.mubr.bf16.gmra.mrb[0].mxu0 %v5037
      %v5156 = vpop.f32.mrb[0].mxu0
      %v5157 = vadd.f32 0.0, %v5156
      %v5158 = vpop.f32.mrb[0].mxu0
      %v5159 = vpop.f32.mrb[0].mxu0
      %v5160 = vadd.f32 0.0, %v5159
      %v5161 = vpop.f32.mrb[0].mxu0
      %5162 = vmatprep.mubr.bf16.mxu0 0
      %5163 = vmatmul.mubr.bf16.gmra.mrb[0].mxu0 %v5040
      %v5164 = vpop.f32.mrb[0].mxu0
      %v5165 = vadd.f32 0.0, %v5164
      %v5166 = vpop.f32.mrb[0].mxu0
      %v5167 = vpop.f32.mrb[0].mxu0
      %v5168 = vadd.f32 0.0, %v5167
      %v5169 = vpop.f32.mrb[0].mxu0
      %5170 = vmatprep.mubr.bf16.mxu0 0
      %5171 = vmatmul.mubr.bf16.gmra.mrb[0].mxu0 %v5043
      %v5172 = vpop.f32.mrb[0].mxu0
      %v5173 = vadd.f32 0.0, %v5172
      %v5174 = vpop.f32.mrb[0].mxu0
      %v5175 = vpop.f32.mrb[0].mxu0
      %v5176 = vadd.f32 0.0, %v5175
      %v5177 = vpop.f32.mrb[0].mxu0
      %5178 = vmatprep.mubr.bf16.mxu0 0
      %5179 = vmatmul.mubr.bf16.gmra.mrb[0].mxu0 %v5046
      %v5180 = vpop.f32.mrb[0].mxu0
      %v5181 = vadd.f32 0.0, %v5180
      %v5182 = vpop.f32.mrb[0].mxu0
      %v5183 = vpop.f32.mrb[0].mxu0
      %v5184 = vadd.f32 0.0, %v5183
      %v5185 = vpop.f32.mrb[0].mxu0
      %5186 = vmatprep.mubr.bf16.mxu0 0
      %5187 = vmatmul.mubr.bf16.gmra.mrb[0].mxu0 %v5049
      %v5188 = vpop.f32.mrb[0].mxu0
      %v5189 = vadd.f32 0.0, %v5188
      %v5190 = vpop.f32.mrb[0].mxu0
      %v5191 = vpop.f32.mrb[0].mxu0
      %v5192 = vadd.f32 0.0, %v5191
      %v5193 = vpop.f32.mrb[0].mxu0
      %5194 = vmatprep.mubr.bf16.mxu0 0
      %5195 = vmatmul.mubr.bf16.gmra.mrb[0].mxu0 %v5052
      %v5196 = vpop.f32.mrb[0].mxu0
      %v5197 = vadd.f32 0.0, %v5196
      %v5198 = vpop.f32.mrb[0].mxu0
      %v5199 = vpop.f32.mrb[0].mxu0
      %v5200 = vadd.f32 0.0, %v5199
      %v5201 = vpop.f32.mrb[0].mxu0
      %5202 = vmatprep.mubr.bf16.mxu0 0
      %5203 = vmatmul.mubr.bf16.gmra.mrb[0].mxu0 %v5055
      %v5204 = vpop.f32.mrb[0].mxu0
      %v5205 = vadd.f32 0.0, %v5204
      %v5206 = vpop.f32.mrb[0].mxu0
      %v5207 = vpop.f32.mrb[0].mxu0
      %v5208 = vadd.f32 0.0, %v5207
      %v5209 = vpop.f32.mrb[0].mxu0
      %5210 = vmatprep.mubr.bf16.mxu0 0
      %5211 = vmatmul.mubr.bf16.gmra.mrb[0].mxu0 %v5058
      %v5212 = vpop.f32.mrb[0].mxu0
      %v5213 = vadd.f32 0.0, %v5212
      %v5214 = vpop.f32.mrb[0].mxu0
      %v5215 = vpop.f32.mrb[0].mxu0
      %v5216 = vadd.f32 0.0, %v5215
      %v5217 = vpop.f32.mrb[0].mxu0
      %5218 = vmatprep.mubr.bf16.mxu0 0
      %5219 = vmatmul.mubr.bf16.gmra.mrb[0].mxu0 %v5061
      %v5220 = vpop.f32.mrb[0].mxu0
      %v5221 = vadd.f32 0.0, %v5220
      %v5222 = vpop.f32.mrb[0].mxu0
      %v5223 = vpop.f32.mrb[0].mxu0
      %v5224 = vadd.f32 0.0, %v5223
      %v5225 = vpop.f32.mrb[0].mxu0
      %5226 = vdwg.mxu0
      %v5227 = vadd.f32 %v4757, %v5101
      %v5228 = vadd.f32 %v4758, %v5104
      %v5229 = vadd.f32 %v4759, %v5109
      %v5230 = vadd.f32 %v4760, %v5112
      %v5231 = vadd.f32 %v4761, %v5117
      %v5232 = vadd.f32 %v4762, %v5120
      %v5233 = vadd.f32 %v4763, %v5125
      %v5234 = vadd.f32 %v4764, %v5128
      %v5235 = vadd.f32 %v4765, %v5133
      %v5236 = vadd.f32 %v4766, %v5136
      %v5237 = vadd.f32 %v4767, %v5141
      %v5238 = vadd.f32 %v4768, %v5144
      %v5239 = vadd.f32 %v4769, %v5149
      %v5240 = vadd.f32 %v4770, %v5152
      %v5241 = vadd.f32 %v4771, %v5157
      %v5242 = vadd.f32 %v4772, %v5160
      %v5243 = vadd.f32 %v4773, %v5165
      %v5244 = vadd.f32 %v4774, %v5168
      %v5245 = vadd.f32 %v4775, %v5173
      %v5246 = vadd.f32 %v4776, %v5176
      %v5247 = vadd.f32 %v4777, %v5181
      %v5248 = vadd.f32 %v4778, %v5184
      %v5249 = vadd.f32 %v4779, %v5189
      %v5250 = vadd.f32 %v4780, %v5192
      %v5251 = vadd.f32 %v4781, %v5197
      %v5252 = vadd.f32 %v4782, %v5200
      %v5253 = vadd.f32 %v4783, %v5205
      %v5254 = vadd.f32 %v4784, %v5208
      %v5255 = vadd.f32 %v4785, %v5213
      %v5256 = vadd.f32 %v4786, %v5216
      %v5257 = vadd.f32 %v4787, %v5221
      %v5258 = vadd.f32 %v4788, %v5224
      %v5259 = vld [vmem:[%s2] sm:$0x1]
      %v5261 = vlaneseq
      %v5262 = vshrl.u32 %v5261, 7
      %v5263 = vsub.s32 0, %v5262
      %v5264 = vrot.slane %v5259, %v5263
      %v5266 = vadd.f32 %v5227, %v5264
      %v5267 = vadd.f32 %v5228, %v5264
      %v5268 = vadd.f32 %v5229, %v5264
      %v5269 = vadd.f32 %v5230, %v5264
      %v5270 = vadd.f32 %v5231, %v5264
      %v5271 = vadd.f32 %v5232, %v5264
      %v5272 = vadd.f32 %v5233, %v5264
      %v5273 = vadd.f32 %v5234, %v5264
      %v5274 = vadd.f32 %v5235, %v5264
      %v5275 = vadd.f32 %v5236, %v5264
      %v5276 = vadd.f32 %v5237, %v5264
      %v5277 = vadd.f32 %v5238, %v5264
      %v5278 = vadd.f32 %v5239, %v5264
      %v5279 = vadd.f32 %v5240, %v5264
      %v5280 = vadd.f32 %v5241, %v5264
      %v5281 = vadd.f32 %v5242, %v5264
      %v5282 = vadd.f32 %v5243, %v5264
      %v5283 = vadd.f32 %v5244, %v5264
      %v5284 = vadd.f32 %v5245, %v5264
      %v5285 = vadd.f32 %v5246, %v5264
      %v5286 = vadd.f32 %v5247, %v5264
      %v5287 = vadd.f32 %v5248, %v5264
      %v5288 = vadd.f32 %v5249, %v5264
      %v5289 = vadd.f32 %v5250, %v5264
      %v5290 = vadd.f32 %v5251, %v5264
      %v5291 = vadd.f32 %v5252, %v5264
      %v5292 = vadd.f32 %v5253, %v5264
      %v5293 = vadd.f32 %v5254, %v5264
      %v5294 = vadd.f32 %v5255, %v5264
      %v5295 = vadd.f32 %v5256, %v5264
      %v5296 = vadd.f32 %v5257, %v5264
      %v5297 = vadd.f32 %v5258, %v5264
      %v5298 = vmax.f32 %v5266, 0.0
      %v5299 = vmax.f32 %v5267, 0.0
      %v5300 = vmax.f32 %v5268, 0.0
      %v5301 = vmax.f32 %v5269, 0.0
      %v5302 = vmax.f32 %v5270, 0.0
      %v5303 = vmax.f32 %v5271, 0.0
      %v5304 = vmax.f32 %v5272, 0.0
      %v5305 = vmax.f32 %v5273, 0.0
      %v5306 = vmax.f32 %v5274, 0.0
      %v5307 = vmax.f32 %v5275, 0.0
      %v5308 = vmax.f32 %v5276, 0.0
      %v5309 = vmax.f32 %v5277, 0.0
      %v5310 = vmax.f32 %v5278, 0.0
      %v5311 = vmax.f32 %v5279, 0.0
      %v5312 = vmax.f32 %v5280, 0.0
      %v5313 = vmax.f32 %v5281, 0.0
      %v5314 = vmax.f32 %v5282, 0.0
      %v5315 = vmax.f32 %v5283, 0.0
      %v5316 = vmax.f32 %v5284, 0.0
      %v5317 = vmax.f32 %v5285, 0.0
      %v5318 = vmax.f32 %v5286, 0.0
      %v5319 = vmax.f32 %v5287, 0.0
      %v5320 = vmax.f32 %v5288, 0.0
      %v5321 = vmax.f32 %v5289, 0.0
      %v5322 = vmax.f32 %v5290, 0.0
      %v5323 = vmax.f32 %v5291, 0.0
      %v5324 = vmax.f32 %v5292, 0.0
      %v5325 = vmax.f32 %v5293, 0.0
      %v5326 = vmax.f32 %v5294, 0.0
      %v5327 = vmax.f32 %v5295, 0.0
      %v5328 = vmax.f32 %v5296, 0.0
      %v5329 = vmax.f32 %v5297, 0.0
      %v5330 = vld [vmem:[%s165] sm:$0xf]
      %v5331 = vld [vmem:[%s165 + $0x4] sm:$0xf]
      %v5332 = vld [vmem:[%s165 + $0x8] sm:$0xf]
      %v5333 = vld [vmem:[%s165 + $0xc] sm:$0xf]
      %v5334 = vld [vmem:[%s165 + $0x10] sm:$0xf]
      %v5335 = vld [vmem:[%s165 + $0x14] sm:$0xf]
      %v5336 = vld [vmem:[%s165 + $0x18] sm:$0xf]
      %v5337 = vld [vmem:[%s165 + $0x1c] sm:$0xf]
      %v5338 = vld [vmem:[%s165 + $0x20] sm:$0xf]
      %v5339 = vld [vmem:[%s165 + $0x24] sm:$0xf]
      %v5340 = vld [vmem:[%s165 + $0x28] sm:$0xf]
      %v5341 = vld [vmem:[%s165 + $0x2c] sm:$0xf]
      %v5342 = vld [vmem:[%s165 + $0x30] sm:$0xf]
      %v5343 = vld [vmem:[%s165 + $0x34] sm:$0xf]
      %v5344 = vld [vmem:[%s165 + $0x38] sm:$0xf]
      %v5345 = vld [vmem:[%s165 + $0x3c] sm:$0xf]
      %v5346 = vld [vmem:[%s165 + $0x40] sm:$0xf]
      %v5347 = vld [vmem:[%s165 + $0x44] sm:$0xf]
      %v5348 = vld [vmem:[%s165 + $0x48] sm:$0xf]
      %v5349 = vld [vmem:[%s165 + $0x4c] sm:$0xf]
      %v5350 = vld [vmem:[%s165 + $0x50] sm:$0xf]
      %v5351 = vld [vmem:[%s165 + $0x54] sm:$0xf]
      %v5352 = vld [vmem:[%s165 + $0x58] sm:$0xf]
      %v5353 = vld [vmem:[%s165 + $0x5c] sm:$0xf]
      %v5354 = vld [vmem:[%s165 + $0x60] sm:$0xf]
      %v5355 = vld [vmem:[%s165 + $0x64] sm:$0xf]
      %v5356 = vld [vmem:[%s165 + $0x68] sm:$0xf]
      %v5357 = vld [vmem:[%s165 + $0x6c] sm:$0xf]
      %v5358 = vld [vmem:[%s165 + $0x70] sm:$0xf]
      %v5359 = vld [vmem:[%s165 + $0x74] sm:$0xf]
      %v5360 = vld [vmem:[%s165 + $0x78] sm:$0xf]
      %v5361 = vld [vmem:[%s165 + $0x7c] sm:$0xf]
      %v5362 = vunpack.c.l.bf16 %v5330
      %v5363 = vunpack.c.l.bf16 %v5331
      %v5364 = vunpack.c.l.bf16 %v5332
      %v5365 = vunpack.c.l.bf16 %v5333
      %v5366 = vunpack.c.l.bf16 %v5334
      %v5367 = vunpack.c.l.bf16 %v5335
      %v5368 = vunpack.c.l.bf16 %v5336
      %v5369 = vunpack.c.l.bf16 %v5337
      %v5370 = vunpack.c.l.bf16 %v5338
      %v5371 = vunpack.c.l.bf16 %v5339
      %v5372 = vunpack.c.l.bf16 %v5340
      %v5373 = vunpack.c.l.bf16 %v5341
      %v5374 = vunpack.c.l.bf16 %v5342
      %v5375 = vunpack.c.l.bf16 %v5343
      %v5376 = vunpack.c.l.bf16 %v5344
      %v5377 = vunpack.c.l.bf16 %v5345
      %v5378 = vunpack.c.l.bf16 %v5346
      %v5379 = vunpack.c.l.bf16 %v5347
      %v5380 = vunpack.c.l.bf16 %v5348
      %v5381 = vunpack.c.l.bf16 %v5349
      %v5382 = vunpack.c.l.bf16 %v5350
      %v5383 = vunpack.c.l.bf16 %v5351
      %v5384 = vunpack.c.l.bf16 %v5352
      %v5385 = vunpack.c.l.bf16 %v5353
      %v5386 = vunpack.c.l.bf16 %v5354
      %v5387 = vunpack.c.l.bf16 %v5355
      %v5388 = vunpack.c.l.bf16 %v5356
      %v5389 = vunpack.c.l.bf16 %v5357
      %v5390 = vunpack.c.l.bf16 %v5358
      %v5391 = vunpack.c.l.bf16 %v5359
      %v5392 = vunpack.c.l.bf16 %v5360
      %v5393 = vunpack.c.l.bf16 %v5361
      %v5394 = vadd.f32 %v5298, %v5362
      %v5395 = vadd.f32 %v5299, %v5363
      %v5396 = vadd.f32 %v5300, %v5364
      %v5397 = vadd.f32 %v5301, %v5365
      %v5398 = vadd.f32 %v5302, %v5366
      %v5399 = vadd.f32 %v5303, %v5367
      %v5400 = vadd.f32 %v5304, %v5368
      %v5401 = vadd.f32 %v5305, %v5369
      %v5402 = vadd.f32 %v5306, %v5370
      %v5403 = vadd.f32 %v5307, %v5371
      %v5404 = vadd.f32 %v5308, %v5372
      %v5405 = vadd.f32 %v5309, %v5373
      %v5406 = vadd.f32 %v5310, %v5374
      %v5407 = vadd.f32 %v5311, %v5375
      %v5408 = vadd.f32 %v5312, %v5376
      %v5409 = vadd.f32 %v5313, %v5377
      %v5410 = vadd.f32 %v5314, %v5378
      %v5411 = vadd.f32 %v5315, %v5379
      %v5412 = vadd.f32 %v5316, %v5380
      %v5413 = vadd.f32 %v5317, %v5381
      %v5414 = vadd.f32 %v5318, %v5382
      %v5415 = vadd.f32 %v5319, %v5383
      %v5416 = vadd.f32 %v5320, %v5384
      %v5417 = vadd.f32 %v5321, %v5385
      %v5418 = vadd.f32 %v5322, %v5386
      %v5419 = vadd.f32 %v5323, %v5387
      %v5420 = vadd.f32 %v5324, %v5388
      %v5421 = vadd.f32 %v5325, %v5389
      %v5422 = vadd.f32 %v5326, %v5390
      %v5423 = vadd.f32 %v5327, %v5391
      %v5424 = vadd.f32 %v5328, %v5392
      %v5425 = vadd.f32 %v5329, %v5393
      %5426 = vst.msk [vmem:[%s170] sm:$0xff] %vm1187, %v5394
      %5427 = vst.msk [vmem:[%s170 + $0x8] sm:$0xff] %vm1187, %v5395
      %5428 = vst.msk [vmem:[%s170 + $0x10] sm:$0xff] %vm1187, %v5396
      %5429 = vst.msk [vmem:[%s170 + $0x18] sm:$0xff] %vm1187, %v5397
      %5430 = vst.msk [vmem:[%s170 + $0x20] sm:$0xff] %vm1187, %v5398
      %5431 = vst.msk [vmem:[%s170 + $0x28] sm:$0xff] %vm1187, %v5399
      %5432 = vst.msk [vmem:[%s170 + $0x30] sm:$0xff] %vm1187, %v5400
      %5433 = vst.msk [vmem:[%s170 + $0x38] sm:$0xff] %vm1187, %v5401
      %5434 = vst.msk [vmem:[%s170 + $0x40] sm:$0xff] %vm1187, %v5402
      %5435 = vst.msk [vmem:[%s170 + $0x48] sm:$0xff] %vm1187, %v5403
      %5436 = vst.msk [vmem:[%s170 + $0x50] sm:$0xff] %vm1187, %v5404
      %5437 = vst.msk [vmem:[%s170 + $0x58] sm:$0xff] %vm1187, %v5405
      %5438 = vst.msk [vmem:[%s170 + $0x60] sm:$0xff] %vm1187, %v5406
      %5439 = vst.msk [vmem:[%s170 + $0x68] sm:$0xff] %vm1187, %v5407
      %5440 = vst.msk [vmem:[%s170 + $0x70] sm:$0xff] %vm1187, %v5408
      %5441 = vst.msk [vmem:[%s170 + $0x78] sm:$0xff] %vm1187, %v5409
      %5442 = vst.msk [vmem:[%s170 + $0x80] sm:$0xff] %vm1187, %v5410
      %5443 = vst.msk [vmem:[%s170 + $0x88] sm:$0xff] %vm1187, %v5411
      %5444 = vst.msk [vmem:[%s170 + $0x90] sm:$0xff] %vm1187, %v5412
      %5445 = vst.msk [vmem:[%s170 + $0x98] sm:$0xff] %vm1187, %v5413
      %5446 = vst.msk [vmem:[%s170 + $0xa0] sm:$0xff] %vm1187, %v5414
      %5447 = vst.msk [vmem:[%s170 + $0xa8] sm:$0xff] %vm1187, %v5415
      %5448 = vst.msk [vmem:[%s170 + $0xb0] sm:$0xff] %vm1187, %v5416
      %5449 = vst.msk [vmem:[%s170 + $0xb8] sm:$0xff] %vm1187, %v5417
      %5450 = vst.msk [vmem:[%s170 + $0xc0] sm:$0xff] %vm1187, %v5418
      %5451 = vst.msk [vmem:[%s170 + $0xc8] sm:$0xff] %vm1187, %v5419
      %5452 = vst.msk [vmem:[%s170 + $0xd0] sm:$0xff] %vm1187, %v5420
      %5453 = vst.msk [vmem:[%s170 + $0xd8] sm:$0xff] %vm1187, %v5421
      %5454 = vst.msk [vmem:[%s170 + $0xe0] sm:$0xff] %vm1187, %v5422
      %5455 = vst.msk [vmem:[%s170 + $0xe8] sm:$0xff] %vm1187, %v5423
      %5456 = vst.msk [vmem:[%s170 + $0xf0] sm:$0xff] %vm1187, %v5424
      %5457 = vst.msk [vmem:[%s170 + $0xf8] sm:$0xff] %vm1187, %v5425
      %p5458 = scmp.lt.s32.totalorder %s14, 1
      %s5459 = scalar_select %p5458, %s14, 1
      %s5460 = smul.addr %s5459, 32
      %s5461 = smul.addr %s5460, 8
      %s5462 = scalar_lea.vmem %s3, %s5461
      // Predicated region
      $region33: #{tpu_custom_call.1} parent=31 // pred_check
        %p5463 = pneg %p100
      $region34: #{tpu_custom_call.1} parent=31 // pred_check_branch
        %5465 = sbr.rel (%p5463) target = $region36
      $region35: #{tpu_custom_call.1} parent=31 // pred_region
        _
      $region36: #{tpu_custom_call.1} parent=31 // pred_fallthru
        _
    $region32: #{tpu_custom_call.1} parent=5 // pred_fallthru
      _
    %p5466 = scmp.le.s32.totalorder 2, %s9
    // Predicated region
    $region37: #{tpu_custom_call.1} parent=5 // pred_check
      %p5467 = pneg %p5466
    $region38: #{tpu_custom_call.1} parent=5 // pred_check_branch
      %5469 = sbr.rel (%p5467) target = $region40
    $region39: #{tpu_custom_call.1} parent=5 // pred_region
      %s5470 = ssub.s32 %s9, 2
      // Predicated region
      $region41: #{tpu_custom_call.1} parent=39 // pred_check
        %p5471 = pneg %p106
      $region42: #{tpu_custom_call.1} parent=39 // pred_check_branch
        %5473 = sbr.rel (%p5471) target = $region44
      $region43: #{tpu_custom_call.1} parent=39 // pred_region
        %p5474 = scmp.lt.s32.totalorder %s15, 1
        %s5475 = scalar_select %p5474, %s15, 1
        %s5476 = smul.addr %s5475, 32
        %s5477 = smul.addr %s5476, 8
        %s5478 = scalar_lea.vmem %s3, %s5477
      $region44: #{tpu_custom_call.1} parent=39 // pred_fallthru
        _
    $region40: #{tpu_custom_call.1} parent=5 // pred_fallthru
      _
  $region6: #{tpu_custom_call.1} parent=0 // loop_footer
    %s13 = sadd.s32 1, %s9
  $region7: #{tpu_custom_call.1} parent=0 // loop_footer_branch
    %8 = sbr.rel target = $region3
  $region8: #{tpu_custom_call.1} parent=0 // loop_exit
    _

</llo_original>
